<compile_context>
chip_gen: v5e
topology: v5e:2x2
jax: 0.10.0
libtpu: 0.0.40
codegen_flags: <defaults>
</compile_context>

<pallas_src>
import math

import jax
import jax.numpy as jnp
import numpy as np
from jax.experimental import pallas as pl
from jax.experimental.pallas import tpu as pltpu

N_LETTERS = len('abcdefghijklmnopqrstuvwxyz ?!.,:;01')  # 35
N_HIDDEN = 35
NUM_LAYERS = 3
HP = 128  # lane-padded hidden / input / per-gate width (35 -> 128)


def _lstm_stack_kernel(x_ref, h0_ref, c0_ref, wih_ref, whh_ref, b_ref,
                       out_ref, hn_ref, cn_ref):
    """Whole 3-layer LSTM in one invocation (no grid).

    Shapes (all lane-padded to Hp=128, f32):
      x_ref   : (S*B, Hp)        padded input sequence, time-major rows
      h0_ref  : (L, B, Hp)       initial hidden per layer
      c0_ref  : (L, B, Hp)       initial cell per layer
      wih_ref : (L, Hp, 4*Hp)    fused-gate input weights, columns [i|f|o|g]
      whh_ref : (L, Hp, 4*Hp)    fused-gate hidden weights, columns [i|f|o|g]
      b_ref   : (L, 1, 4*Hp)     combined bias (b_ih + b_hh), [i|f|o|g]
      out_ref : (S*B, Hp)        top-layer output sequence
      hn_ref  : (L, B, Hp)       final hidden per layer
      cn_ref  : (L, B, Hp)       final cell per layer
    """
    SB, Hp = x_ref.shape
    L, B, _ = h0_ref.shape
    S = SB // B
    G3 = 3 * Hp

    layer_in = x_ref[...]                     # (S*B, Hp)
    hn_list, cn_list = [], []

    for layer in range(L):                    # layers are strictly sequential
        wih = wih_ref[layer]                  # (Hp, 4*Hp)
        whh = whh_ref[layer]                  # (Hp, 4*Hp), loop-invariant in t
        b = b_ref[layer]                      # (1, 4*Hp)

        # Hoisted input projection for the whole sequence: one wide MXU call.
        xw = jnp.dot(layer_in, wih,
                     preferred_element_type=jnp.float32) + b     # (S*B, 4*Hp)

        h = h0_ref[layer]                     # (B, Hp) vreg-resident carry
        c = c0_ref[layer]                     # (B, Hp) vreg-resident carry
        outs = []
        for t in range(S):                    # static, fully unrolled
            # Single fused-gate matmul on the recurrence critical path.
            gates = xw[t * B:(t + 1) * B, :] + jnp.dot(
                h, whh, preferred_element_type=jnp.float32)       # (B, 4*Hp)
            sig = jax.nn.sigmoid(gates[:, :G3])   # i|f|o contiguous: 1 EUP pass
            i_g = sig[:, 0 * Hp:1 * Hp]
            f_g = sig[:, 1 * Hp:2 * Hp]
            o_g = sig[:, 2 * Hp:3 * Hp]
            g_g = jnp.tanh(gates[:, G3:])
            c = f_g * c + i_g * g_g
            h = o_g * jnp.tanh(c)
            outs.append(h)

        # One lane/sublane-dense value per layer; feeds layer l+1 directly.
        layer_in = jnp.concatenate(outs, axis=0)   # (S*B, Hp)
        hn_list.append(h)
        cn_list.append(c)

    # Single dense stores for every output.
    out_ref[...] = layer_in
    hn_ref[...] = jnp.stack(hn_list, axis=0)
    cn_ref[...] = jnp.stack(cn_list, axis=0)


def _pad_last(a, target):
    pad = target - a.shape[-1]
    if pad == 0:
        return a
    return jnp.pad(a, [(0, 0)] * (a.ndim - 1) + [(0, pad)])


def prepare_lstm_weights(params, hidden_size, hp=HP):
    """Fuse per-gate weights once at init (outside the jit'd forward path).

    Input `params` is a list of per-layer PyTorch-layout tensors
      (w_ih (4H, in), w_hh (4H, H), b_ih (4H,), b_hh (4H,)) with PyTorch gate
    row order [i, f, g, o].  Output is the kernel packing:
      wih_p : (L, Hp, 4*Hp)  columns grouped [i | f | o | g], zero lane-padded
      whh_p : (L, Hp, 4*Hp)
      b_p   : (L, 1,  4*Hp)  b_ih + b_hh
    """
    H = hidden_size
    perm = [0, 1, 3, 2]  # [i, f, g, o] -> [i, f, o, g]
    wih_l, whh_l, b_l = [], [], []
    for (w_ih, w_hh, b_ih, b_hh) in params:
        def fuse(w):
            in_sz = w.shape[1]
            w4 = w.reshape(4, H, in_sz)[perm, :, :]        # (4, H, in)
            w4 = jnp.transpose(w4, (2, 0, 1))              # (in, 4, H)
            w4 = jnp.pad(w4, ((0, hp - in_sz), (0, 0), (0, hp - H)))
            return w4.reshape(hp, 4 * hp)
        wih_l.append(fuse(w_ih))
        whh_l.append(fuse(w_hh))
        bb = (b_ih + b_hh).reshape(4, H)[perm, :]          # (4, H)
        bb = jnp.pad(bb, ((0, 0), (0, hp - H))).reshape(1, 4 * hp)
        b_l.append(bb)
    return jnp.stack(wih_l), jnp.stack(whh_l), jnp.stack(b_l)


@jax.jit
def lstm_forward(x, hidden, cell, wih_p, whh_p, b_p):
    """Equivalent of LSTMModel.forward(input_, hidden, cell).

    x      : (S, B, I)  time-major (nn.LSTM default batch_first=False)
    hidden : (L, B, H)
    cell   : (L, B, H)
    wih_p, whh_p, b_p : pre-fused, pre-padded weights from prepare_lstm_weights.
    """
    S, B, I = x.shape
    L, _, H = hidden.shape
    Hp = wih_p.shape[1]
    assert I <= Hp and H <= Hp

    # Lane-pad activations with zeros; padded lanes stay exactly 0 in-kernel.
    xp = _pad_last(x, Hp).reshape(S * B, Hp)
    hp = _pad_last(hidden, Hp)
    cp = _pad_last(cell, Hp)

    out_shapes = (
        jax.ShapeDtypeStruct((S * B, Hp), jnp.float32),   # output (top layer)
        jax.ShapeDtypeStruct((L, B, Hp), jnp.float32),    # final hidden
        jax.ShapeDtypeStruct((L, B, Hp), jnp.float32),    # final cell
    )
    vmem_spec = pl.BlockSpec(memory_space=pltpu.MemorySpace.VMEM)
    out_p, hn_p, cn_p = pl.pallas_call(
        _lstm_stack_kernel,
        out_shape=out_shapes,
        # Single invocation, no grid: every operand gets exactly one
        # VMEM-resident copy (no pipeline double-buffering of weights).
        in_specs=[vmem_spec] * 6,
        out_specs=(vmem_spec, vmem_spec, vmem_spec),
    )(xp, hp, cp, wih_p, whh_p, b_p)

    out = out_p.reshape(S, B, Hp)[:, :, :H].astype(x.dtype)
    hn = hn_p[:, :, :H].astype(x.dtype)
    cn = cn_p[:, :, :H].astype(x.dtype)
    return out, hn, cn


def init_lstm_params(key, input_size, hidden_size, num_layers):
    """Deterministic init matching nn.LSTM's U(-1/sqrt(H), 1/sqrt(H)).

    Returns PyTorch-layout per-layer tensors (gate row order i, f, g, o).
    """
    k = 1.0 / math.sqrt(hidden_size)
    params = []
    for layer in range(num_layers):
        in_sz = input_size if layer == 0 else hidden_size
        key, k1, k2, k3, k4 = jax.random.split(key, 5)
        w_ih = jax.random.uniform(k1, (4 * hidden_size, in_sz), jnp.float32, -k, k)
        w_hh = jax.random.uniform(k2, (4 * hidden_size, hidden_size), jnp.float32, -k, k)
        b_ih = jax.random.uniform(k3, (4 * hidden_size,), jnp.float32, -k, k)
        b_hh = jax.random.uniform(k4, (4 * hidden_size,), jnp.float32, -k, k)
        params.append((w_ih, w_hh, b_ih, b_hh))
    return params


def lstm_reference(x, hidden, cell, params):
    """Pure-JAX reference with PyTorch LSTM semantics (gate order i,f,g,o)."""
    L, _, H = hidden.shape
    layer_in = x
    hn, cn = [], []
    for l in range(L):
        w_ih, w_hh, b_ih, b_hh = params[l]
        h, c = hidden[l], cell[l]
        outs = []
        for t in range(x.shape[0]):
            g = layer_in[t] @ w_ih.T + h @ w_hh.T + b_ih + b_hh   # (B, 4H)
            i = jax.nn.sigmoid(g[:, 0 * H:1 * H])
            f = jax.nn.sigmoid(g[:, 1 * H:2 * H])
            gg = jnp.tanh(g[:, 2 * H:3 * H])
            o = jax.nn.sigmoid(g[:, 3 * H:4 * H])
            c = f * c + i * gg
            h = o * jnp.tanh(c)
            outs.append(h)
        layer_in = jnp.stack(outs)
        hn.append(h)
        cn.append(c)
    return layer_in, jnp.stack(hn), jnp.stack(cn)


if __name__ == "__main__":
    SEQ, BATCH = 8, 1   # batch_size = 1 in the module

    key = jax.random.PRNGKey(0)
    key, pkey, xkey = jax.random.split(key, 3)

    params = init_lstm_params(pkey, N_LETTERS, N_HIDDEN, NUM_LAYERS)
    # Weight fusion / gate reorder / lane padding done ONCE, outside the
    # jit'd per-call forward path.
    wih_p, whh_p, b_p = prepare_lstm_weights(params, N_HIDDEN)

    x = jax.random.normal(xkey, (SEQ, BATCH, N_LETTERS), jnp.float32)
    hidden = jnp.zeros((NUM_LAYERS, BATCH, N_HIDDEN), jnp.float32)  # init_hidden_cell
    cell = jnp.zeros((NUM_LAYERS, BATCH, N_HIDDEN), jnp.float32)

    out, hn, cn = jax.block_until_ready(
        lstm_forward(x, hidden, cell, wih_p, whh_p, b_p))

    ref_out, ref_hn, ref_cn = lstm_reference(x, hidden, cell, params)
    np.testing.assert_allclose(np.asarray(out), np.asarray(ref_out), rtol=1e-3, atol=1e-3)
    np.testing.assert_allclose(np.asarray(hn), np.asarray(ref_hn), rtol=1e-3, atol=1e-3)
    np.testing.assert_allclose(np.asarray(cn), np.asarray(ref_cn), rtol=1e-3, atol=1e-3)

    print("KERNEL_OK")
</pallas_src>

<mosaic_0001>
module attributes {stable_mosaic.version = 11 : i64} {
  func.func @_lstm_stack_kernel(%arg0: memref<8x128xf32, #tpu.memory_space<vmem>>, %arg1: memref<3x1x128xf32, #tpu.memory_space<vmem>>, %arg2: memref<3x1x128xf32, #tpu.memory_space<vmem>>, %arg3: memref<3x128x512xf32, #tpu.memory_space<vmem>>, %arg4: memref<3x128x512xf32, #tpu.memory_space<vmem>>, %arg5: memref<3x1x512xf32, #tpu.memory_space<vmem>>, %arg6: memref<8x128xf32, #tpu.memory_space<vmem>>, %arg7: memref<3x1x128xf32, #tpu.memory_space<vmem>>, %arg8: memref<3x1x128xf32, #tpu.memory_space<vmem>>) attributes {dimension_semantics = [], scalar_prefetch = 0 : i64, scratch_operands = 0 : i64, tpu.core_type = #tpu.core_type<tc>} {
    %c0 = arith.constant 0 : index
    %c0_0 = arith.constant 0 : index
    %0 = vector.load %arg0[%c0, %c0_0] : memref<8x128xf32, #tpu.memory_space<vmem>>, vector<8x128xf32>
    %c0_1 = arith.constant 0 : index
    %c0_2 = arith.constant 0 : index
    %c0_3 = arith.constant 0 : index
    %1 = vector.load %arg3[%c0_1, %c0_2, %c0_3] : memref<3x128x512xf32, #tpu.memory_space<vmem>>, vector<1x128x512xf32>
    %2 = vector.shape_cast %1 : vector<1x128x512xf32> to vector<128x512xf32>
    %c0_4 = arith.constant 0 : index
    %c0_5 = arith.constant 0 : index
    %c0_6 = arith.constant 0 : index
    %3 = vector.load %arg4[%c0_4, %c0_5, %c0_6] : memref<3x128x512xf32, #tpu.memory_space<vmem>>, vector<1x128x512xf32>
    %4 = vector.shape_cast %3 : vector<1x128x512xf32> to vector<128x512xf32>
    %c0_7 = arith.constant 0 : index
    %c0_8 = arith.constant 0 : index
    %c0_9 = arith.constant 0 : index
    %5 = vector.load %arg5[%c0_7, %c0_8, %c0_9] : memref<3x1x512xf32, #tpu.memory_space<vmem>>, vector<1x1x512xf32>
    %6 = vector.shape_cast %5 : vector<1x1x512xf32> to vector<1x512xf32>
    %cst = arith.constant dense<0.000000e+00> : vector<8x512xf32>
    %7 = tpu.matmul %0, %2, %cst {dimension_numbers = #tpu.dot_dimension_numbers<[1], [0], [0], [1], [0, 0, 1, 1], [], []>} : vector<8x128xf32>, vector<128x512xf32>, vector<8x512xf32> -> vector<8x512xf32>
    %8 = vector.broadcast %6 : vector<1x512xf32> to vector<8x512xf32>
    %9 = arith.addf %7, %8 : vector<8x512xf32>
    %c0_10 = arith.constant 0 : index
    %c0_11 = arith.constant 0 : index
    %c0_12 = arith.constant 0 : index
    %10 = vector.load %arg1[%c0_10, %c0_11, %c0_12] : memref<3x1x128xf32, #tpu.memory_space<vmem>>, vector<1x1x128xf32>
    %11 = vector.shape_cast %10 : vector<1x1x128xf32> to vector<1x128xf32>
    %c0_13 = arith.constant 0 : index
    %c0_14 = arith.constant 0 : index
    %c0_15 = arith.constant 0 : index
    %12 = vector.load %arg2[%c0_13, %c0_14, %c0_15] : memref<3x1x128xf32, #tpu.memory_space<vmem>>, vector<1x1x128xf32>
    %13 = vector.shape_cast %12 : vector<1x1x128xf32> to vector<1x128xf32>
    %14 = vector.extract_strided_slice %9 {offsets = [0, 0], sizes = [1, 512], strides = [1, 1]} : vector<8x512xf32> to vector<1x512xf32>
    %cst_16 = arith.constant dense<0.000000e+00> : vector<1x512xf32>
    %15 = tpu.matmul %11, %4, %cst_16 {dimension_numbers = #tpu.dot_dimension_numbers<[1], [0], [0], [1], [0, 0, 1, 1], [], []>} : vector<1x128xf32>, vector<128x512xf32>, vector<1x512xf32> -> vector<1x512xf32>
    %16 = arith.addf %14, %15 : vector<1x512xf32>
    %17 = vector.extract_strided_slice %16 {offsets = [0, 0], sizes = [1, 384], strides = [1, 1]} : vector<1x512xf32> to vector<1x384xf32>
    %18 = arith.negf %17 : vector<1x384xf32>
    %19 = math.exp %18 : vector<1x384xf32>
    %cst_17 = arith.constant 1.000000e+00 : f32
    %20 = vector.broadcast %cst_17 : f32 to vector<1x384xf32>
    %21 = arith.addf %20, %19 : vector<1x384xf32>
    %22 = arith.divf %20, %21 : vector<1x384xf32>
    %23 = vector.extract_strided_slice %22 {offsets = [0, 0], sizes = [1, 128], strides = [1, 1]} : vector<1x384xf32> to vector<1x128xf32>
    %24 = vector.extract_strided_slice %22 {offsets = [0, 128], sizes = [1, 128], strides = [1, 1]} : vector<1x384xf32> to vector<1x128xf32>
    %25 = vector.extract_strided_slice %22 {offsets = [0, 256], sizes = [1, 128], strides = [1, 1]} : vector<1x384xf32> to vector<1x128xf32>
    %26 = vector.extract_strided_slice %16 {offsets = [0, 384], sizes = [1, 128], strides = [1, 1]} : vector<1x512xf32> to vector<1x128xf32>
    %27 = math.tanh %26 : vector<1x128xf32>
    %28 = arith.mulf %24, %13 : vector<1x128xf32>
    %29 = arith.mulf %23, %27 : vector<1x128xf32>
    %30 = arith.addf %28, %29 : vector<1x128xf32>
    %31 = math.tanh %30 : vector<1x128xf32>
    %32 = arith.mulf %25, %31 : vector<1x128xf32>
    %33 = vector.extract_strided_slice %9 {offsets = [1, 0], sizes = [1, 512], strides = [1, 1]} : vector<8x512xf32> to vector<1x512xf32>
    %cst_18 = arith.constant dense<0.000000e+00> : vector<1x512xf32>
    %34 = tpu.matmul %32, %4, %cst_18 {dimension_numbers = #tpu.dot_dimension_numbers<[1], [0], [0], [1], [0, 0, 1, 1], [], []>} : vector<1x128xf32>, vector<128x512xf32>, vector<1x512xf32> -> vector<1x512xf32>
    %35 = arith.addf %33, %34 : vector<1x512xf32>
    %36 = vector.extract_strided_slice %35 {offsets = [0, 0], sizes = [1, 384], strides = [1, 1]} : vector<1x512xf32> to vector<1x384xf32>
    %37 = arith.negf %36 : vector<1x384xf32>
    %38 = math.exp %37 : vector<1x384xf32>
    %cst_19 = arith.constant 1.000000e+00 : f32
    %39 = vector.broadcast %cst_19 : f32 to vector<1x384xf32>
    %40 = arith.addf %39, %38 : vector<1x384xf32>
    %41 = arith.divf %39, %40 : vector<1x384xf32>
    %42 = vector.extract_strided_slice %41 {offsets = [0, 0], sizes = [1, 128], strides = [1, 1]} : vector<1x384xf32> to vector<1x128xf32>
    %43 = vector.extract_strided_slice %41 {offsets = [0, 128], sizes = [1, 128], strides = [1, 1]} : vector<1x384xf32> to vector<1x128xf32>
    %44 = vector.extract_strided_slice %41 {offsets = [0, 256], sizes = [1, 128], strides = [1, 1]} : vector<1x384xf32> to vector<1x128xf32>
    %45 = vector.extract_strided_slice %35 {offsets = [0, 384], sizes = [1, 128], strides = [1, 1]} : vector<1x512xf32> to vector<1x128xf32>
    %46 = math.tanh %45 : vector<1x128xf32>
    %47 = arith.mulf %43, %30 : vector<1x128xf32>
    %48 = arith.mulf %42, %46 : vector<1x128xf32>
    %49 = arith.addf %47, %48 : vector<1x128xf32>
    %50 = math.tanh %49 : vector<1x128xf32>
    %51 = arith.mulf %44, %50 : vector<1x128xf32>
    %52 = vector.extract_strided_slice %9 {offsets = [2, 0], sizes = [1, 512], strides = [1, 1]} : vector<8x512xf32> to vector<1x512xf32>
    %cst_20 = arith.constant dense<0.000000e+00> : vector<1x512xf32>
    %53 = tpu.matmul %51, %4, %cst_20 {dimension_numbers = #tpu.dot_dimension_numbers<[1], [0], [0], [1], [0, 0, 1, 1], [], []>} : vector<1x128xf32>, vector<128x512xf32>, vector<1x512xf32> -> vector<1x512xf32>
    %54 = arith.addf %52, %53 : vector<1x512xf32>
    %55 = vector.extract_strided_slice %54 {offsets = [0, 0], sizes = [1, 384], strides = [1, 1]} : vector<1x512xf32> to vector<1x384xf32>
    %56 = arith.negf %55 : vector<1x384xf32>
    %57 = math.exp %56 : vector<1x384xf32>
    %cst_21 = arith.constant 1.000000e+00 : f32
    %58 = vector.broadcast %cst_21 : f32 to vector<1x384xf32>
    %59 = arith.addf %58, %57 : vector<1x384xf32>
    %60 = arith.divf %58, %59 : vector<1x384xf32>
    %61 = vector.extract_strided_slice %60 {offsets = [0, 0], sizes = [1, 128], strides = [1, 1]} : vector<1x384xf32> to vector<1x128xf32>
    %62 = vector.extract_strided_slice %60 {offsets = [0, 128], sizes = [1, 128], strides = [1, 1]} : vector<1x384xf32> to vector<1x128xf32>
    %63 = vector.extract_strided_slice %60 {offsets = [0, 256], sizes = [1, 128], strides = [1, 1]} : vector<1x384xf32> to vector<1x128xf32>
    %64 = vector.extract_strided_slice %54 {offsets = [0, 384], sizes = [1, 128], strides = [1, 1]} : vector<1x512xf32> to vector<1x128xf32>
    %65 = math.tanh %64 : vector<1x128xf32>
    %66 = arith.mulf %62, %49 : vector<1x128xf32>
    %67 = arith.mulf %61, %65 : vector<1x128xf32>
    %68 = arith.addf %66, %67 : vector<1x128xf32>
    %69 = math.tanh %68 : vector<1x128xf32>
    %70 = arith.mulf %63, %69 : vector<1x128xf32>
    %71 = vector.extract_strided_slice %9 {offsets = [3, 0], sizes = [1, 512], strides = [1, 1]} : vector<8x512xf32> to vector<1x512xf32>
    %cst_22 = arith.constant dense<0.000000e+00> : vector<1x512xf32>
    %72 = tpu.matmul %70, %4, %cst_22 {dimension_numbers = #tpu.dot_dimension_numbers<[1], [0], [0], [1], [0, 0, 1, 1], [], []>} : vector<1x128xf32>, vector<128x512xf32>, vector<1x512xf32> -> vector<1x512xf32>
    %73 = arith.addf %71, %72 : vector<1x512xf32>
    %74 = vector.extract_strided_slice %73 {offsets = [0, 0], sizes = [1, 384], strides = [1, 1]} : vector<1x512xf32> to vector<1x384xf32>
    %75 = arith.negf %74 : vector<1x384xf32>
    %76 = math.exp %75 : vector<1x384xf32>
    %cst_23 = arith.constant 1.000000e+00 : f32
    %77 = vector.broadcast %cst_23 : f32 to vector<1x384xf32>
    %78 = arith.addf %77, %76 : vector<1x384xf32>
    %79 = arith.divf %77, %78 : vector<1x384xf32>
    %80 = vector.extract_strided_slice %79 {offsets = [0, 0], sizes = [1, 128], strides = [1, 1]} : vector<1x384xf32> to vector<1x128xf32>
    %81 = vector.extract_strided_slice %79 {offsets = [0, 128], sizes = [1, 128], strides = [1, 1]} : vector<1x384xf32> to vector<1x128xf32>
    %82 = vector.extract_strided_slice %79 {offsets = [0, 256], sizes = [1, 128], strides = [1, 1]} : vector<1x384xf32> to vector<1x128xf32>
    %83 = vector.extract_strided_slice %73 {offsets = [0, 384], sizes = [1, 128], strides = [1, 1]} : vector<1x512xf32> to vector<1x128xf32>
    %84 = math.tanh %83 : vector<1x128xf32>
    %85 = arith.mulf %81, %68 : vector<1x128xf32>
    %86 = arith.mulf %80, %84 : vector<1x128xf32>
    %87 = arith.addf %85, %86 : vector<1x128xf32>
    %88 = math.tanh %87 : vector<1x128xf32>
    %89 = arith.mulf %82, %88 : vector<1x128xf32>
    %90 = vector.extract_strided_slice %9 {offsets = [4, 0], sizes = [1, 512], strides = [1, 1]} : vector<8x512xf32> to vector<1x512xf32>
    %cst_24 = arith.constant dense<0.000000e+00> : vector<1x512xf32>
    %91 = tpu.matmul %89, %4, %cst_24 {dimension_numbers = #tpu.dot_dimension_numbers<[1], [0], [0], [1], [0, 0, 1, 1], [], []>} : vector<1x128xf32>, vector<128x512xf32>, vector<1x512xf32> -> vector<1x512xf32>
    %92 = arith.addf %90, %91 : vector<1x512xf32>
    %93 = vector.extract_strided_slice %92 {offsets = [0, 0], sizes = [1, 384], strides = [1, 1]} : vector<1x512xf32> to vector<1x384xf32>
    %94 = arith.negf %93 : vector<1x384xf32>
    %95 = math.exp %94 : vector<1x384xf32>
    %cst_25 = arith.constant 1.000000e+00 : f32
    %96 = vector.broadcast %cst_25 : f32 to vector<1x384xf32>
    %97 = arith.addf %96, %95 : vector<1x384xf32>
    %98 = arith.divf %96, %97 : vector<1x384xf32>
    %99 = vector.extract_strided_slice %98 {offsets = [0, 0], sizes = [1, 128], strides = [1, 1]} : vector<1x384xf32> to vector<1x128xf32>
    %100 = vector.extract_strided_slice %98 {offsets = [0, 128], sizes = [1, 128], strides = [1, 1]} : vector<1x384xf32> to vector<1x128xf32>
    %101 = vector.extract_strided_slice %98 {offsets = [0, 256], sizes = [1, 128], strides = [1, 1]} : vector<1x384xf32> to vector<1x128xf32>
    %102 = vector.extract_strided_slice %92 {offsets = [0, 384], sizes = [1, 128], strides = [1, 1]} : vector<1x512xf32> to vector<1x128xf32>
    %103 = math.tanh %102 : vector<1x128xf32>
    %104 = arith.mulf %100, %87 : vector<1x128xf32>
    %105 = arith.mulf %99, %103 : vector<1x128xf32>
    %106 = arith.addf %104, %105 : vector<1x128xf32>
    %107 = math.tanh %106 : vector<1x128xf32>
    %108 = arith.mulf %101, %107 : vector<1x128xf32>
    %109 = vector.extract_strided_slice %9 {offsets = [5, 0], sizes = [1, 512], strides = [1, 1]} : vector<8x512xf32> to vector<1x512xf32>
    %cst_26 = arith.constant dense<0.000000e+00> : vector<1x512xf32>
    %110 = tpu.matmul %108, %4, %cst_26 {dimension_numbers = #tpu.dot_dimension_numbers<[1], [0], [0], [1], [0, 0, 1, 1], [], []>} : vector<1x128xf32>, vector<128x512xf32>, vector<1x512xf32> -> vector<1x512xf32>
    %111 = arith.addf %109, %110 : vector<1x512xf32>
    %112 = vector.extract_strided_slice %111 {offsets = [0, 0], sizes = [1, 384], strides = [1, 1]} : vector<1x512xf32> to vector<1x384xf32>
    %113 = arith.negf %112 : vector<1x384xf32>
    %114 = math.exp %113 : vector<1x384xf32>
    %cst_27 = arith.constant 1.000000e+00 : f32
    %115 = vector.broadcast %cst_27 : f32 to vector<1x384xf32>
    %116 = arith.addf %115, %114 : vector<1x384xf32>
    %117 = arith.divf %115, %116 : vector<1x384xf32>
    %118 = vector.extract_strided_slice %117 {offsets = [0, 0], sizes = [1, 128], strides = [1, 1]} : vector<1x384xf32> to vector<1x128xf32>
    %119 = vector.extract_strided_slice %117 {offsets = [0, 128], sizes = [1, 128], strides = [1, 1]} : vector<1x384xf32> to vector<1x128xf32>
    %120 = vector.extract_strided_slice %117 {offsets = [0, 256], sizes = [1, 128], strides = [1, 1]} : vector<1x384xf32> to vector<1x128xf32>
    %121 = vector.extract_strided_slice %111 {offsets = [0, 384], sizes = [1, 128], strides = [1, 1]} : vector<1x512xf32> to vector<1x128xf32>
    %122 = math.tanh %121 : vector<1x128xf32>
    %123 = arith.mulf %119, %106 : vector<1x128xf32>
    %124 = arith.mulf %118, %122 : vector<1x128xf32>
    %125 = arith.addf %123, %124 : vector<1x128xf32>
    %126 = math.tanh %125 : vector<1x128xf32>
    %127 = arith.mulf %120, %126 : vector<1x128xf32>
    %128 = vector.extract_strided_slice %9 {offsets = [6, 0], sizes = [1, 512], strides = [1, 1]} : vector<8x512xf32> to vector<1x512xf32>
    %cst_28 = arith.constant dense<0.000000e+00> : vector<1x512xf32>
    %129 = tpu.matmul %127, %4, %cst_28 {dimension_numbers = #tpu.dot_dimension_numbers<[1], [0], [0], [1], [0, 0, 1, 1], [], []>} : vector<1x128xf32>, vector<128x512xf32>, vector<1x512xf32> -> vector<1x512xf32>
    %130 = arith.addf %128, %129 : vector<1x512xf32>
    %131 = vector.extract_strided_slice %130 {offsets = [0, 0], sizes = [1, 384], strides = [1, 1]} : vector<1x512xf32> to vector<1x384xf32>
    %132 = arith.negf %131 : vector<1x384xf32>
    %133 = math.exp %132 : vector<1x384xf32>
    %cst_29 = arith.constant 1.000000e+00 : f32
    %134 = vector.broadcast %cst_29 : f32 to vector<1x384xf32>
    %135 = arith.addf %134, %133 : vector<1x384xf32>
    %136 = arith.divf %134, %135 : vector<1x384xf32>
    %137 = vector.extract_strided_slice %136 {offsets = [0, 0], sizes = [1, 128], strides = [1, 1]} : vector<1x384xf32> to vector<1x128xf32>
    %138 = vector.extract_strided_slice %136 {offsets = [0, 128], sizes = [1, 128], strides = [1, 1]} : vector<1x384xf32> to vector<1x128xf32>
    %139 = vector.extract_strided_slice %136 {offsets = [0, 256], sizes = [1, 128], strides = [1, 1]} : vector<1x384xf32> to vector<1x128xf32>
    %140 = vector.extract_strided_slice %130 {offsets = [0, 384], sizes = [1, 128], strides = [1, 1]} : vector<1x512xf32> to vector<1x128xf32>
    %141 = math.tanh %140 : vector<1x128xf32>
    %142 = arith.mulf %138, %125 : vector<1x128xf32>
    %143 = arith.mulf %137, %141 : vector<1x128xf32>
    %144 = arith.addf %142, %143 : vector<1x128xf32>
    %145 = math.tanh %144 : vector<1x128xf32>
    %146 = arith.mulf %139, %145 : vector<1x128xf32>
    %147 = vector.extract_strided_slice %9 {offsets = [7, 0], sizes = [1, 512], strides = [1, 1]} : vector<8x512xf32> to vector<1x512xf32>
    %cst_30 = arith.constant dense<0.000000e+00> : vector<1x512xf32>
    %148 = tpu.matmul %146, %4, %cst_30 {dimension_numbers = #tpu.dot_dimension_numbers<[1], [0], [0], [1], [0, 0, 1, 1], [], []>} : vector<1x128xf32>, vector<128x512xf32>, vector<1x512xf32> -> vector<1x512xf32>
    %149 = arith.addf %147, %148 : vector<1x512xf32>
    %150 = vector.extract_strided_slice %149 {offsets = [0, 0], sizes = [1, 384], strides = [1, 1]} : vector<1x512xf32> to vector<1x384xf32>
    %151 = arith.negf %150 : vector<1x384xf32>
    %152 = math.exp %151 : vector<1x384xf32>
    %cst_31 = arith.constant 1.000000e+00 : f32
    %153 = vector.broadcast %cst_31 : f32 to vector<1x384xf32>
    %154 = arith.addf %153, %152 : vector<1x384xf32>
    %155 = arith.divf %153, %154 : vector<1x384xf32>
    %156 = vector.extract_strided_slice %155 {offsets = [0, 0], sizes = [1, 128], strides = [1, 1]} : vector<1x384xf32> to vector<1x128xf32>
    %157 = vector.extract_strided_slice %155 {offsets = [0, 128], sizes = [1, 128], strides = [1, 1]} : vector<1x384xf32> to vector<1x128xf32>
    %158 = vector.extract_strided_slice %155 {offsets = [0, 256], sizes = [1, 128], strides = [1, 1]} : vector<1x384xf32> to vector<1x128xf32>
    %159 = vector.extract_strided_slice %149 {offsets = [0, 384], sizes = [1, 128], strides = [1, 1]} : vector<1x512xf32> to vector<1x128xf32>
    %160 = math.tanh %159 : vector<1x128xf32>
    %161 = arith.mulf %157, %144 : vector<1x128xf32>
    %162 = arith.mulf %156, %160 : vector<1x128xf32>
    %163 = arith.addf %161, %162 : vector<1x128xf32>
    %164 = math.tanh %163 : vector<1x128xf32>
    %165 = arith.mulf %158, %164 : vector<1x128xf32>
    %166 = tpu.concatenate %32, %51, %70, %89, %108, %127, %146, %165 in 0 : vector<1x128xf32>, vector<1x128xf32>, vector<1x128xf32>, vector<1x128xf32>, vector<1x128xf32>, vector<1x128xf32>, vector<1x128xf32>, vector<1x128xf32> -> vector<8x128xf32>
    %c1 = arith.constant 1 : index
    %c0_32 = arith.constant 0 : index
    %c0_33 = arith.constant 0 : index
    %167 = vector.load %arg3[%c1, %c0_32, %c0_33] : memref<3x128x512xf32, #tpu.memory_space<vmem>>, vector<1x128x512xf32>
    %168 = vector.shape_cast %167 : vector<1x128x512xf32> to vector<128x512xf32>
    %c1_34 = arith.constant 1 : index
    %c0_35 = arith.constant 0 : index
    %c0_36 = arith.constant 0 : index
    %169 = vector.load %arg4[%c1_34, %c0_35, %c0_36] : memref<3x128x512xf32, #tpu.memory_space<vmem>>, vector<1x128x512xf32>
    %170 = vector.shape_cast %169 : vector<1x128x512xf32> to vector<128x512xf32>
    %c1_37 = arith.constant 1 : index
    %c0_38 = arith.constant 0 : index
    %c0_39 = arith.constant 0 : index
    %171 = vector.load %arg5[%c1_37, %c0_38, %c0_39] : memref<3x1x512xf32, #tpu.memory_space<vmem>>, vector<1x1x512xf32>
    %172 = vector.shape_cast %171 : vector<1x1x512xf32> to vector<1x512xf32>
    %cst_40 = arith.constant dense<0.000000e+00> : vector<8x512xf32>
    %173 = tpu.matmul %166, %168, %cst_40 {dimension_numbers = #tpu.dot_dimension_numbers<[1], [0], [0], [1], [0, 0, 1, 1], [], []>} : vector<8x128xf32>, vector<128x512xf32>, vector<8x512xf32> -> vector<8x512xf32>
    %174 = vector.broadcast %172 : vector<1x512xf32> to vector<8x512xf32>
    %175 = arith.addf %173, %174 : vector<8x512xf32>
    %c1_41 = arith.constant 1 : index
    %c0_42 = arith.constant 0 : index
    %c0_43 = arith.constant 0 : index
    %176 = vector.load %arg1[%c1_41, %c0_42, %c0_43] : memref<3x1x128xf32, #tpu.memory_space<vmem>>, vector<1x1x128xf32>
    %177 = vector.shape_cast %176 : vector<1x1x128xf32> to vector<1x128xf32>
    %c1_44 = arith.constant 1 : index
    %c0_45 = arith.constant 0 : index
    %c0_46 = arith.constant 0 : index
    %178 = vector.load %arg2[%c1_44, %c0_45, %c0_46] : memref<3x1x128xf32, #tpu.memory_space<vmem>>, vector<1x1x128xf32>
    %179 = vector.shape_cast %178 : vector<1x1x128xf32> to vector<1x128xf32>
    %180 = vector.extract_strided_slice %175 {offsets = [0, 0], sizes = [1, 512], strides = [1, 1]} : vector<8x512xf32> to vector<1x512xf32>
    %cst_47 = arith.constant dense<0.000000e+00> : vector<1x512xf32>
    %181 = tpu.matmul %177, %170, %cst_47 {dimension_numbers = #tpu.dot_dimension_numbers<[1], [0], [0], [1], [0, 0, 1, 1], [], []>} : vector<1x128xf32>, vector<128x512xf32>, vector<1x512xf32> -> vector<1x512xf32>
    %182 = arith.addf %180, %181 : vector<1x512xf32>
    %183 = vector.extract_strided_slice %182 {offsets = [0, 0], sizes = [1, 384], strides = [1, 1]} : vector<1x512xf32> to vector<1x384xf32>
    %184 = arith.negf %183 : vector<1x384xf32>
    %185 = math.exp %184 : vector<1x384xf32>
    %cst_48 = arith.constant 1.000000e+00 : f32
    %186 = vector.broadcast %cst_48 : f32 to vector<1x384xf32>
    %187 = arith.addf %186, %185 : vector<1x384xf32>
    %188 = arith.divf %186, %187 : vector<1x384xf32>
    %189 = vector.extract_strided_slice %188 {offsets = [0, 0], sizes = [1, 128], strides = [1, 1]} : vector<1x384xf32> to vector<1x128xf32>
    %190 = vector.extract_strided_slice %188 {offsets = [0, 128], sizes = [1, 128], strides = [1, 1]} : vector<1x384xf32> to vector<1x128xf32>
    %191 = vector.extract_strided_slice %188 {offsets = [0, 256], sizes = [1, 128], strides = [1, 1]} : vector<1x384xf32> to vector<1x128xf32>
    %192 = vector.extract_strided_slice %182 {offsets = [0, 384], sizes = [1, 128], strides = [1, 1]} : vector<1x512xf32> to vector<1x128xf32>
    %193 = math.tanh %192 : vector<1x128xf32>
    %194 = arith.mulf %190, %179 : vector<1x128xf32>
    %195 = arith.mulf %189, %193 : vector<1x128xf32>
    %196 = arith.addf %194, %195 : vector<1x128xf32>
    %197 = math.tanh %196 : vector<1x128xf32>
    %198 = arith.mulf %191, %197 : vector<1x128xf32>
    %199 = vector.extract_strided_slice %175 {offsets = [1, 0], sizes = [1, 512], strides = [1, 1]} : vector<8x512xf32> to vector<1x512xf32>
    %cst_49 = arith.constant dense<0.000000e+00> : vector<1x512xf32>
    %200 = tpu.matmul %198, %170, %cst_49 {dimension_numbers = #tpu.dot_dimension_numbers<[1], [0], [0], [1], [0, 0, 1, 1], [], []>} : vector<1x128xf32>, vector<128x512xf32>, vector<1x512xf32> -> vector<1x512xf32>
    %201 = arith.addf %199, %200 : vector<1x512xf32>
    %202 = vector.extract_strided_slice %201 {offsets = [0, 0], sizes = [1, 384], strides = [1, 1]} : vector<1x512xf32> to vector<1x384xf32>
    %203 = arith.negf %202 : vector<1x384xf32>
    %204 = math.exp %203 : vector<1x384xf32>
    %cst_50 = arith.constant 1.000000e+00 : f32
    %205 = vector.broadcast %cst_50 : f32 to vector<1x384xf32>
    %206 = arith.addf %205, %204 : vector<1x384xf32>
    %207 = arith.divf %205, %206 : vector<1x384xf32>
    %208 = vector.extract_strided_slice %207 {offsets = [0, 0], sizes = [1, 128], strides = [1, 1]} : vector<1x384xf32> to vector<1x128xf32>
    %209 = vector.extract_strided_slice %207 {offsets = [0, 128], sizes = [1, 128], strides = [1, 1]} : vector<1x384xf32> to vector<1x128xf32>
    %210 = vector.extract_strided_slice %207 {offsets = [0, 256], sizes = [1, 128], strides = [1, 1]} : vector<1x384xf32> to vector<1x128xf32>
    %211 = vector.extract_strided_slice %201 {offsets = [0, 384], sizes = [1, 128], strides = [1, 1]} : vector<1x512xf32> to vector<1x128xf32>
    %212 = math.tanh %211 : vector<1x128xf32>
    %213 = arith.mulf %209, %196 : vector<1x128xf32>
    %214 = arith.mulf %208, %212 : vector<1x128xf32>
    %215 = arith.addf %213, %214 : vector<1x128xf32>
    %216 = math.tanh %215 : vector<1x128xf32>
    %217 = arith.mulf %210, %216 : vector<1x128xf32>
    %218 = vector.extract_strided_slice %175 {offsets = [2, 0], sizes = [1, 512], strides = [1, 1]} : vector<8x512xf32> to vector<1x512xf32>
    %cst_51 = arith.constant dense<0.000000e+00> : vector<1x512xf32>
    %219 = tpu.matmul %217, %170, %cst_51 {dimension_numbers = #tpu.dot_dimension_numbers<[1], [0], [0], [1], [0, 0, 1, 1], [], []>} : vector<1x128xf32>, vector<128x512xf32>, vector<1x512xf32> -> vector<1x512xf32>
    %220 = arith.addf %218, %219 : vector<1x512xf32>
    %221 = vector.extract_strided_slice %220 {offsets = [0, 0], sizes = [1, 384], strides = [1, 1]} : vector<1x512xf32> to vector<1x384xf32>
    %222 = arith.negf %221 : vector<1x384xf32>
    %223 = math.exp %222 : vector<1x384xf32>
    %cst_52 = arith.constant 1.000000e+00 : f32
    %224 = vector.broadcast %cst_52 : f32 to vector<1x384xf32>
    %225 = arith.addf %224, %223 : vector<1x384xf32>
    %226 = arith.divf %224, %225 : vector<1x384xf32>
    %227 = vector.extract_strided_slice %226 {offsets = [0, 0], sizes = [1, 128], strides = [1, 1]} : vector<1x384xf32> to vector<1x128xf32>
    %228 = vector.extract_strided_slice %226 {offsets = [0, 128], sizes = [1, 128], strides = [1, 1]} : vector<1x384xf32> to vector<1x128xf32>
    %229 = vector.extract_strided_slice %226 {offsets = [0, 256], sizes = [1, 128], strides = [1, 1]} : vector<1x384xf32> to vector<1x128xf32>
    %230 = vector.extract_strided_slice %220 {offsets = [0, 384], sizes = [1, 128], strides = [1, 1]} : vector<1x512xf32> to vector<1x128xf32>
    %231 = math.tanh %230 : vector<1x128xf32>
    %232 = arith.mulf %228, %215 : vector<1x128xf32>
    %233 = arith.mulf %227, %231 : vector<1x128xf32>
    %234 = arith.addf %232, %233 : vector<1x128xf32>
    %235 = math.tanh %234 : vector<1x128xf32>
    %236 = arith.mulf %229, %235 : vector<1x128xf32>
    %237 = vector.extract_strided_slice %175 {offsets = [3, 0], sizes = [1, 512], strides = [1, 1]} : vector<8x512xf32> to vector<1x512xf32>
    %cst_53 = arith.constant dense<0.000000e+00> : vector<1x512xf32>
    %238 = tpu.matmul %236, %170, %cst_53 {dimension_numbers = #tpu.dot_dimension_numbers<[1], [0], [0], [1], [0, 0, 1, 1], [], []>} : vector<1x128xf32>, vector<128x512xf32>, vector<1x512xf32> -> vector<1x512xf32>
    %239 = arith.addf %237, %238 : vector<1x512xf32>
    %240 = vector.extract_strided_slice %239 {offsets = [0, 0], sizes = [1, 384], strides = [1, 1]} : vector<1x512xf32> to vector<1x384xf32>
    %241 = arith.negf %240 : vector<1x384xf32>
    %242 = math.exp %241 : vector<1x384xf32>
    %cst_54 = arith.constant 1.000000e+00 : f32
    %243 = vector.broadcast %cst_54 : f32 to vector<1x384xf32>
    %244 = arith.addf %243, %242 : vector<1x384xf32>
    %245 = arith.divf %243, %244 : vector<1x384xf32>
    %246 = vector.extract_strided_slice %245 {offsets = [0, 0], sizes = [1, 128], strides = [1, 1]} : vector<1x384xf32> to vector<1x128xf32>
    %247 = vector.extract_strided_slice %245 {offsets = [0, 128], sizes = [1, 128], strides = [1, 1]} : vector<1x384xf32> to vector<1x128xf32>
    %248 = vector.extract_strided_slice %245 {offsets = [0, 256], sizes = [1, 128], strides = [1, 1]} : vector<1x384xf32> to vector<1x128xf32>
    %249 = vector.extract_strided_slice %239 {offsets = [0, 384], sizes = [1, 128], strides = [1, 1]} : vector<1x512xf32> to vector<1x128xf32>
    %250 = math.tanh %249 : vector<1x128xf32>
    %251 = arith.mulf %247, %234 : vector<1x128xf32>
    %252 = arith.mulf %246, %250 : vector<1x128xf32>
    %253 = arith.addf %251, %252 : vector<1x128xf32>
    %254 = math.tanh %253 : vector<1x128xf32>
    %255 = arith.mulf %248, %254 : vector<1x128xf32>
    %256 = vector.extract_strided_slice %175 {offsets = [4, 0], sizes = [1, 512], strides = [1, 1]} : vector<8x512xf32> to vector<1x512xf32>
    %cst_55 = arith.constant dense<0.000000e+00> : vector<1x512xf32>
    %257 = tpu.matmul %255, %170, %cst_55 {dimension_numbers = #tpu.dot_dimension_numbers<[1], [0], [0], [1], [0, 0, 1, 1], [], []>} : vector<1x128xf32>, vector<128x512xf32>, vector<1x512xf32> -> vector<1x512xf32>
    %258 = arith.addf %256, %257 : vector<1x512xf32>
    %259 = vector.extract_strided_slice %258 {offsets = [0, 0], sizes = [1, 384], strides = [1, 1]} : vector<1x512xf32> to vector<1x384xf32>
    %260 = arith.negf %259 : vector<1x384xf32>
    %261 = math.exp %260 : vector<1x384xf32>
    %cst_56 = arith.constant 1.000000e+00 : f32
    %262 = vector.broadcast %cst_56 : f32 to vector<1x384xf32>
    %263 = arith.addf %262, %261 : vector<1x384xf32>
    %264 = arith.divf %262, %263 : vector<1x384xf32>
    %265 = vector.extract_strided_slice %264 {offsets = [0, 0], sizes = [1, 128], strides = [1, 1]} : vector<1x384xf32> to vector<1x128xf32>
    %266 = vector.extract_strided_slice %264 {offsets = [0, 128], sizes = [1, 128], strides = [1, 1]} : vector<1x384xf32> to vector<1x128xf32>
    %267 = vector.extract_strided_slice %264 {offsets = [0, 256], sizes = [1, 128], strides = [1, 1]} : vector<1x384xf32> to vector<1x128xf32>
    %268 = vector.extract_strided_slice %258 {offsets = [0, 384], sizes = [1, 128], strides = [1, 1]} : vector<1x512xf32> to vector<1x128xf32>
    %269 = math.tanh %268 : vector<1x128xf32>
    %270 = arith.mulf %266, %253 : vector<1x128xf32>
    %271 = arith.mulf %265, %269 : vector<1x128xf32>
    %272 = arith.addf %270, %271 : vector<1x128xf32>
    %273 = math.tanh %272 : vector<1x128xf32>
    %274 = arith.mulf %267, %273 : vector<1x128xf32>
    %275 = vector.extract_strided_slice %175 {offsets = [5, 0], sizes = [1, 512], strides = [1, 1]} : vector<8x512xf32> to vector<1x512xf32>
    %cst_57 = arith.constant dense<0.000000e+00> : vector<1x512xf32>
    %276 = tpu.matmul %274, %170, %cst_57 {dimension_numbers = #tpu.dot_dimension_numbers<[1], [0], [0], [1], [0, 0, 1, 1], [], []>} : vector<1x128xf32>, vector<128x512xf32>, vector<1x512xf32> -> vector<1x512xf32>
    %277 = arith.addf %275, %276 : vector<1x512xf32>
    %278 = vector.extract_strided_slice %277 {offsets = [0, 0], sizes = [1, 384], strides = [1, 1]} : vector<1x512xf32> to vector<1x384xf32>
    %279 = arith.negf %278 : vector<1x384xf32>
    %280 = math.exp %279 : vector<1x384xf32>
    %cst_58 = arith.constant 1.000000e+00 : f32
    %281 = vector.broadcast %cst_58 : f32 to vector<1x384xf32>
    %282 = arith.addf %281, %280 : vector<1x384xf32>
    %283 = arith.divf %281, %282 : vector<1x384xf32>
    %284 = vector.extract_strided_slice %283 {offsets = [0, 0], sizes = [1, 128], strides = [1, 1]} : vector<1x384xf32> to vector<1x128xf32>
    %285 = vector.extract_strided_slice %283 {offsets = [0, 128], sizes = [1, 128], strides = [1, 1]} : vector<1x384xf32> to vector<1x128xf32>
    %286 = vector.extract_strided_slice %283 {offsets = [0, 256], sizes = [1, 128], strides = [1, 1]} : vector<1x384xf32> to vector<1x128xf32>
    %287 = vector.extract_strided_slice %277 {offsets = [0, 384], sizes = [1, 128], strides = [1, 1]} : vector<1x512xf32> to vector<1x128xf32>
    %288 = math.tanh %287 : vector<1x128xf32>
    %289 = arith.mulf %285, %272 : vector<1x128xf32>
    %290 = arith.mulf %284, %288 : vector<1x128xf32>
    %291 = arith.addf %289, %290 : vector<1x128xf32>
    %292 = math.tanh %291 : vector<1x128xf32>
    %293 = arith.mulf %286, %292 : vector<1x128xf32>
    %294 = vector.extract_strided_slice %175 {offsets = [6, 0], sizes = [1, 512], strides = [1, 1]} : vector<8x512xf32> to vector<1x512xf32>
    %cst_59 = arith.constant dense<0.000000e+00> : vector<1x512xf32>
    %295 = tpu.matmul %293, %170, %cst_59 {dimension_numbers = #tpu.dot_dimension_numbers<[1], [0], [0], [1], [0, 0, 1, 1], [], []>} : vector<1x128xf32>, vector<128x512xf32>, vector<1x512xf32> -> vector<1x512xf32>
    %296 = arith.addf %294, %295 : vector<1x512xf32>
    %297 = vector.extract_strided_slice %296 {offsets = [0, 0], sizes = [1, 384], strides = [1, 1]} : vector<1x512xf32> to vector<1x384xf32>
    %298 = arith.negf %297 : vector<1x384xf32>
    %299 = math.exp %298 : vector<1x384xf32>
    %cst_60 = arith.constant 1.000000e+00 : f32
    %300 = vector.broadcast %cst_60 : f32 to vector<1x384xf32>
    %301 = arith.addf %300, %299 : vector<1x384xf32>
    %302 = arith.divf %300, %301 : vector<1x384xf32>
    %303 = vector.extract_strided_slice %302 {offsets = [0, 0], sizes = [1, 128], strides = [1, 1]} : vector<1x384xf32> to vector<1x128xf32>
    %304 = vector.extract_strided_slice %302 {offsets = [0, 128], sizes = [1, 128], strides = [1, 1]} : vector<1x384xf32> to vector<1x128xf32>
    %305 = vector.extract_strided_slice %302 {offsets = [0, 256], sizes = [1, 128], strides = [1, 1]} : vector<1x384xf32> to vector<1x128xf32>
    %306 = vector.extract_strided_slice %296 {offsets = [0, 384], sizes = [1, 128], strides = [1, 1]} : vector<1x512xf32> to vector<1x128xf32>
    %307 = math.tanh %306 : vector<1x128xf32>
    %308 = arith.mulf %304, %291 : vector<1x128xf32>
    %309 = arith.mulf %303, %307 : vector<1x128xf32>
    %310 = arith.addf %308, %309 : vector<1x128xf32>
    %311 = math.tanh %310 : vector<1x128xf32>
    %312 = arith.mulf %305, %311 : vector<1x128xf32>
    %313 = vector.extract_strided_slice %175 {offsets = [7, 0], sizes = [1, 512], strides = [1, 1]} : vector<8x512xf32> to vector<1x512xf32>
    %cst_61 = arith.constant dense<0.000000e+00> : vector<1x512xf32>
    %314 = tpu.matmul %312, %170, %cst_61 {dimension_numbers = #tpu.dot_dimension_numbers<[1], [0], [0], [1], [0, 0, 1, 1], [], []>} : vector<1x128xf32>, vector<128x512xf32>, vector<1x512xf32> -> vector<1x512xf32>
    %315 = arith.addf %313, %314 : vector<1x512xf32>
    %316 = vector.extract_strided_slice %315 {offsets = [0, 0], sizes = [1, 384], strides = [1, 1]} : vector<1x512xf32> to vector<1x384xf32>
    %317 = arith.negf %316 : vector<1x384xf32>
    %318 = math.exp %317 : vector<1x384xf32>
    %cst_62 = arith.constant 1.000000e+00 : f32
    %319 = vector.broadcast %cst_62 : f32 to vector<1x384xf32>
    %320 = arith.addf %319, %318 : vector<1x384xf32>
    %321 = arith.divf %319, %320 : vector<1x384xf32>
    %322 = vector.extract_strided_slice %321 {offsets = [0, 0], sizes = [1, 128], strides = [1, 1]} : vector<1x384xf32> to vector<1x128xf32>
    %323 = vector.extract_strided_slice %321 {offsets = [0, 128], sizes = [1, 128], strides = [1, 1]} : vector<1x384xf32> to vector<1x128xf32>
    %324 = vector.extract_strided_slice %321 {offsets = [0, 256], sizes = [1, 128], strides = [1, 1]} : vector<1x384xf32> to vector<1x128xf32>
    %325 = vector.extract_strided_slice %315 {offsets = [0, 384], sizes = [1, 128], strides = [1, 1]} : vector<1x512xf32> to vector<1x128xf32>
    %326 = math.tanh %325 : vector<1x128xf32>
    %327 = arith.mulf %323, %310 : vector<1x128xf32>
    %328 = arith.mulf %322, %326 : vector<1x128xf32>
    %329 = arith.addf %327, %328 : vector<1x128xf32>
    %330 = math.tanh %329 : vector<1x128xf32>
    %331 = arith.mulf %324, %330 : vector<1x128xf32>
    %332 = tpu.concatenate %198, %217, %236, %255, %274, %293, %312, %331 in 0 : vector<1x128xf32>, vector<1x128xf32>, vector<1x128xf32>, vector<1x128xf32>, vector<1x128xf32>, vector<1x128xf32>, vector<1x128xf32>, vector<1x128xf32> -> vector<8x128xf32>
    %c2 = arith.constant 2 : index
    %c0_63 = arith.constant 0 : index
    %c0_64 = arith.constant 0 : index
    %333 = vector.load %arg3[%c2, %c0_63, %c0_64] : memref<3x128x512xf32, #tpu.memory_space<vmem>>, vector<1x128x512xf32>
    %334 = vector.shape_cast %333 : vector<1x128x512xf32> to vector<128x512xf32>
    %c2_65 = arith.constant 2 : index
    %c0_66 = arith.constant 0 : index
    %c0_67 = arith.constant 0 : index
    %335 = vector.load %arg4[%c2_65, %c0_66, %c0_67] : memref<3x128x512xf32, #tpu.memory_space<vmem>>, vector<1x128x512xf32>
    %336 = vector.shape_cast %335 : vector<1x128x512xf32> to vector<128x512xf32>
    %c2_68 = arith.constant 2 : index
    %c0_69 = arith.constant 0 : index
    %c0_70 = arith.constant 0 : index
    %337 = vector.load %arg5[%c2_68, %c0_69, %c0_70] : memref<3x1x512xf32, #tpu.memory_space<vmem>>, vector<1x1x512xf32>
    %338 = vector.shape_cast %337 : vector<1x1x512xf32> to vector<1x512xf32>
    %cst_71 = arith.constant dense<0.000000e+00> : vector<8x512xf32>
    %339 = tpu.matmul %332, %334, %cst_71 {dimension_numbers = #tpu.dot_dimension_numbers<[1], [0], [0], [1], [0, 0, 1, 1], [], []>} : vector<8x128xf32>, vector<128x512xf32>, vector<8x512xf32> -> vector<8x512xf32>
    %340 = vector.broadcast %338 : vector<1x512xf32> to vector<8x512xf32>
    %341 = arith.addf %339, %340 : vector<8x512xf32>
    %c2_72 = arith.constant 2 : index
    %c0_73 = arith.constant 0 : index
    %c0_74 = arith.constant 0 : index
    %342 = vector.load %arg1[%c2_72, %c0_73, %c0_74] : memref<3x1x128xf32, #tpu.memory_space<vmem>>, vector<1x1x128xf32>
    %343 = vector.shape_cast %342 : vector<1x1x128xf32> to vector<1x128xf32>
    %c2_75 = arith.constant 2 : index
    %c0_76 = arith.constant 0 : index
    %c0_77 = arith.constant 0 : index
    %344 = vector.load %arg2[%c2_75, %c0_76, %c0_77] : memref<3x1x128xf32, #tpu.memory_space<vmem>>, vector<1x1x128xf32>
    %345 = vector.shape_cast %344 : vector<1x1x128xf32> to vector<1x128xf32>
    %346 = vector.extract_strided_slice %341 {offsets = [0, 0], sizes = [1, 512], strides = [1, 1]} : vector<8x512xf32> to vector<1x512xf32>
    %cst_78 = arith.constant dense<0.000000e+00> : vector<1x512xf32>
    %347 = tpu.matmul %343, %336, %cst_78 {dimension_numbers = #tpu.dot_dimension_numbers<[1], [0], [0], [1], [0, 0, 1, 1], [], []>} : vector<1x128xf32>, vector<128x512xf32>, vector<1x512xf32> -> vector<1x512xf32>
    %348 = arith.addf %346, %347 : vector<1x512xf32>
    %349 = vector.extract_strided_slice %348 {offsets = [0, 0], sizes = [1, 384], strides = [1, 1]} : vector<1x512xf32> to vector<1x384xf32>
    %350 = arith.negf %349 : vector<1x384xf32>
    %351 = math.exp %350 : vector<1x384xf32>
    %cst_79 = arith.constant 1.000000e+00 : f32
    %352 = vector.broadcast %cst_79 : f32 to vector<1x384xf32>
    %353 = arith.addf %352, %351 : vector<1x384xf32>
    %354 = arith.divf %352, %353 : vector<1x384xf32>
    %355 = vector.extract_strided_slice %354 {offsets = [0, 0], sizes = [1, 128], strides = [1, 1]} : vector<1x384xf32> to vector<1x128xf32>
    %356 = vector.extract_strided_slice %354 {offsets = [0, 128], sizes = [1, 128], strides = [1, 1]} : vector<1x384xf32> to vector<1x128xf32>
    %357 = vector.extract_strided_slice %354 {offsets = [0, 256], sizes = [1, 128], strides = [1, 1]} : vector<1x384xf32> to vector<1x128xf32>
    %358 = vector.extract_strided_slice %348 {offsets = [0, 384], sizes = [1, 128], strides = [1, 1]} : vector<1x512xf32> to vector<1x128xf32>
    %359 = math.tanh %358 : vector<1x128xf32>
    %360 = arith.mulf %356, %345 : vector<1x128xf32>
    %361 = arith.mulf %355, %359 : vector<1x128xf32>
    %362 = arith.addf %360, %361 : vector<1x128xf32>
    %363 = math.tanh %362 : vector<1x128xf32>
    %364 = arith.mulf %357, %363 : vector<1x128xf32>
    %365 = vector.extract_strided_slice %341 {offsets = [1, 0], sizes = [1, 512], strides = [1, 1]} : vector<8x512xf32> to vector<1x512xf32>
    %cst_80 = arith.constant dense<0.000000e+00> : vector<1x512xf32>
    %366 = tpu.matmul %364, %336, %cst_80 {dimension_numbers = #tpu.dot_dimension_numbers<[1], [0], [0], [1], [0, 0, 1, 1], [], []>} : vector<1x128xf32>, vector<128x512xf32>, vector<1x512xf32> -> vector<1x512xf32>
    %367 = arith.addf %365, %366 : vector<1x512xf32>
    %368 = vector.extract_strided_slice %367 {offsets = [0, 0], sizes = [1, 384], strides = [1, 1]} : vector<1x512xf32> to vector<1x384xf32>
    %369 = arith.negf %368 : vector<1x384xf32>
    %370 = math.exp %369 : vector<1x384xf32>
    %cst_81 = arith.constant 1.000000e+00 : f32
    %371 = vector.broadcast %cst_81 : f32 to vector<1x384xf32>
    %372 = arith.addf %371, %370 : vector<1x384xf32>
    %373 = arith.divf %371, %372 : vector<1x384xf32>
    %374 = vector.extract_strided_slice %373 {offsets = [0, 0], sizes = [1, 128], strides = [1, 1]} : vector<1x384xf32> to vector<1x128xf32>
    %375 = vector.extract_strided_slice %373 {offsets = [0, 128], sizes = [1, 128], strides = [1, 1]} : vector<1x384xf32> to vector<1x128xf32>
    %376 = vector.extract_strided_slice %373 {offsets = [0, 256], sizes = [1, 128], strides = [1, 1]} : vector<1x384xf32> to vector<1x128xf32>
    %377 = vector.extract_strided_slice %367 {offsets = [0, 384], sizes = [1, 128], strides = [1, 1]} : vector<1x512xf32> to vector<1x128xf32>
    %378 = math.tanh %377 : vector<1x128xf32>
    %379 = arith.mulf %375, %362 : vector<1x128xf32>
    %380 = arith.mulf %374, %378 : vector<1x128xf32>
    %381 = arith.addf %379, %380 : vector<1x128xf32>
    %382 = math.tanh %381 : vector<1x128xf32>
    %383 = arith.mulf %376, %382 : vector<1x128xf32>
    %384 = vector.extract_strided_slice %341 {offsets = [2, 0], sizes = [1, 512], strides = [1, 1]} : vector<8x512xf32> to vector<1x512xf32>
    %cst_82 = arith.constant dense<0.000000e+00> : vector<1x512xf32>
    %385 = tpu.matmul %383, %336, %cst_82 {dimension_numbers = #tpu.dot_dimension_numbers<[1], [0], [0], [1], [0, 0, 1, 1], [], []>} : vector<1x128xf32>, vector<128x512xf32>, vector<1x512xf32> -> vector<1x512xf32>
    %386 = arith.addf %384, %385 : vector<1x512xf32>
    %387 = vector.extract_strided_slice %386 {offsets = [0, 0], sizes = [1, 384], strides = [1, 1]} : vector<1x512xf32> to vector<1x384xf32>
    %388 = arith.negf %387 : vector<1x384xf32>
    %389 = math.exp %388 : vector<1x384xf32>
    %cst_83 = arith.constant 1.000000e+00 : f32
    %390 = vector.broadcast %cst_83 : f32 to vector<1x384xf32>
    %391 = arith.addf %390, %389 : vector<1x384xf32>
    %392 = arith.divf %390, %391 : vector<1x384xf32>
    %393 = vector.extract_strided_slice %392 {offsets = [0, 0], sizes = [1, 128], strides = [1, 1]} : vector<1x384xf32> to vector<1x128xf32>
    %394 = vector.extract_strided_slice %392 {offsets = [0, 128], sizes = [1, 128], strides = [1, 1]} : vector<1x384xf32> to vector<1x128xf32>
    %395 = vector.extract_strided_slice %392 {offsets = [0, 256], sizes = [1, 128], strides = [1, 1]} : vector<1x384xf32> to vector<1x128xf32>
    %396 = vector.extract_strided_slice %386 {offsets = [0, 384], sizes = [1, 128], strides = [1, 1]} : vector<1x512xf32> to vector<1x128xf32>
    %397 = math.tanh %396 : vector<1x128xf32>
    %398 = arith.mulf %394, %381 : vector<1x128xf32>
    %399 = arith.mulf %393, %397 : vector<1x128xf32>
    %400 = arith.addf %398, %399 : vector<1x128xf32>
    %401 = math.tanh %400 : vector<1x128xf32>
    %402 = arith.mulf %395, %401 : vector<1x128xf32>
    %403 = vector.extract_strided_slice %341 {offsets = [3, 0], sizes = [1, 512], strides = [1, 1]} : vector<8x512xf32> to vector<1x512xf32>
    %cst_84 = arith.constant dense<0.000000e+00> : vector<1x512xf32>
    %404 = tpu.matmul %402, %336, %cst_84 {dimension_numbers = #tpu.dot_dimension_numbers<[1], [0], [0], [1], [0, 0, 1, 1], [], []>} : vector<1x128xf32>, vector<128x512xf32>, vector<1x512xf32> -> vector<1x512xf32>
    %405 = arith.addf %403, %404 : vector<1x512xf32>
    %406 = vector.extract_strided_slice %405 {offsets = [0, 0], sizes = [1, 384], strides = [1, 1]} : vector<1x512xf32> to vector<1x384xf32>
    %407 = arith.negf %406 : vector<1x384xf32>
    %408 = math.exp %407 : vector<1x384xf32>
    %cst_85 = arith.constant 1.000000e+00 : f32
    %409 = vector.broadcast %cst_85 : f32 to vector<1x384xf32>
    %410 = arith.addf %409, %408 : vector<1x384xf32>
    %411 = arith.divf %409, %410 : vector<1x384xf32>
    %412 = vector.extract_strided_slice %411 {offsets = [0, 0], sizes = [1, 128], strides = [1, 1]} : vector<1x384xf32> to vector<1x128xf32>
    %413 = vector.extract_strided_slice %411 {offsets = [0, 128], sizes = [1, 128], strides = [1, 1]} : vector<1x384xf32> to vector<1x128xf32>
    %414 = vector.extract_strided_slice %411 {offsets = [0, 256], sizes = [1, 128], strides = [1, 1]} : vector<1x384xf32> to vector<1x128xf32>
    %415 = vector.extract_strided_slice %405 {offsets = [0, 384], sizes = [1, 128], strides = [1, 1]} : vector<1x512xf32> to vector<1x128xf32>
    %416 = math.tanh %415 : vector<1x128xf32>
    %417 = arith.mulf %413, %400 : vector<1x128xf32>
    %418 = arith.mulf %412, %416 : vector<1x128xf32>
    %419 = arith.addf %417, %418 : vector<1x128xf32>
    %420 = math.tanh %419 : vector<1x128xf32>
    %421 = arith.mulf %414, %420 : vector<1x128xf32>
    %422 = vector.extract_strided_slice %341 {offsets = [4, 0], sizes = [1, 512], strides = [1, 1]} : vector<8x512xf32> to vector<1x512xf32>
    %cst_86 = arith.constant dense<0.000000e+00> : vector<1x512xf32>
    %423 = tpu.matmul %421, %336, %cst_86 {dimension_numbers = #tpu.dot_dimension_numbers<[1], [0], [0], [1], [0, 0, 1, 1], [], []>} : vector<1x128xf32>, vector<128x512xf32>, vector<1x512xf32> -> vector<1x512xf32>
    %424 = arith.addf %422, %423 : vector<1x512xf32>
    %425 = vector.extract_strided_slice %424 {offsets = [0, 0], sizes = [1, 384], strides = [1, 1]} : vector<1x512xf32> to vector<1x384xf32>
    %426 = arith.negf %425 : vector<1x384xf32>
    %427 = math.exp %426 : vector<1x384xf32>
    %cst_87 = arith.constant 1.000000e+00 : f32
    %428 = vector.broadcast %cst_87 : f32 to vector<1x384xf32>
    %429 = arith.addf %428, %427 : vector<1x384xf32>
    %430 = arith.divf %428, %429 : vector<1x384xf32>
    %431 = vector.extract_strided_slice %430 {offsets = [0, 0], sizes = [1, 128], strides = [1, 1]} : vector<1x384xf32> to vector<1x128xf32>
    %432 = vector.extract_strided_slice %430 {offsets = [0, 128], sizes = [1, 128], strides = [1, 1]} : vector<1x384xf32> to vector<1x128xf32>
    %433 = vector.extract_strided_slice %430 {offsets = [0, 256], sizes = [1, 128], strides = [1, 1]} : vector<1x384xf32> to vector<1x128xf32>
    %434 = vector.extract_strided_slice %424 {offsets = [0, 384], sizes = [1, 128], strides = [1, 1]} : vector<1x512xf32> to vector<1x128xf32>
    %435 = math.tanh %434 : vector<1x128xf32>
    %436 = arith.mulf %432, %419 : vector<1x128xf32>
    %437 = arith.mulf %431, %435 : vector<1x128xf32>
    %438 = arith.addf %436, %437 : vector<1x128xf32>
    %439 = math.tanh %438 : vector<1x128xf32>
    %440 = arith.mulf %433, %439 : vector<1x128xf32>
    %441 = vector.extract_strided_slice %341 {offsets = [5, 0], sizes = [1, 512], strides = [1, 1]} : vector<8x512xf32> to vector<1x512xf32>
    %cst_88 = arith.constant dense<0.000000e+00> : vector<1x512xf32>
    %442 = tpu.matmul %440, %336, %cst_88 {dimension_numbers = #tpu.dot_dimension_numbers<[1], [0], [0], [1], [0, 0, 1, 1], [], []>} : vector<1x128xf32>, vector<128x512xf32>, vector<1x512xf32> -> vector<1x512xf32>
    %443 = arith.addf %441, %442 : vector<1x512xf32>
    %444 = vector.extract_strided_slice %443 {offsets = [0, 0], sizes = [1, 384], strides = [1, 1]} : vector<1x512xf32> to vector<1x384xf32>
    %445 = arith.negf %444 : vector<1x384xf32>
    %446 = math.exp %445 : vector<1x384xf32>
    %cst_89 = arith.constant 1.000000e+00 : f32
    %447 = vector.broadcast %cst_89 : f32 to vector<1x384xf32>
    %448 = arith.addf %447, %446 : vector<1x384xf32>
    %449 = arith.divf %447, %448 : vector<1x384xf32>
    %450 = vector.extract_strided_slice %449 {offsets = [0, 0], sizes = [1, 128], strides = [1, 1]} : vector<1x384xf32> to vector<1x128xf32>
    %451 = vector.extract_strided_slice %449 {offsets = [0, 128], sizes = [1, 128], strides = [1, 1]} : vector<1x384xf32> to vector<1x128xf32>
    %452 = vector.extract_strided_slice %449 {offsets = [0, 256], sizes = [1, 128], strides = [1, 1]} : vector<1x384xf32> to vector<1x128xf32>
    %453 = vector.extract_strided_slice %443 {offsets = [0, 384], sizes = [1, 128], strides = [1, 1]} : vector<1x512xf32> to vector<1x128xf32>
    %454 = math.tanh %453 : vector<1x128xf32>
    %455 = arith.mulf %451, %438 : vector<1x128xf32>
    %456 = arith.mulf %450, %454 : vector<1x128xf32>
    %457 = arith.addf %455, %456 : vector<1x128xf32>
    %458 = math.tanh %457 : vector<1x128xf32>
    %459 = arith.mulf %452, %458 : vector<1x128xf32>
    %460 = vector.extract_strided_slice %341 {offsets = [6, 0], sizes = [1, 512], strides = [1, 1]} : vector<8x512xf32> to vector<1x512xf32>
    %cst_90 = arith.constant dense<0.000000e+00> : vector<1x512xf32>
    %461 = tpu.matmul %459, %336, %cst_90 {dimension_numbers = #tpu.dot_dimension_numbers<[1], [0], [0], [1], [0, 0, 1, 1], [], []>} : vector<1x128xf32>, vector<128x512xf32>, vector<1x512xf32> -> vector<1x512xf32>
    %462 = arith.addf %460, %461 : vector<1x512xf32>
    %463 = vector.extract_strided_slice %462 {offsets = [0, 0], sizes = [1, 384], strides = [1, 1]} : vector<1x512xf32> to vector<1x384xf32>
    %464 = arith.negf %463 : vector<1x384xf32>
    %465 = math.exp %464 : vector<1x384xf32>
    %cst_91 = arith.constant 1.000000e+00 : f32
    %466 = vector.broadcast %cst_91 : f32 to vector<1x384xf32>
    %467 = arith.addf %466, %465 : vector<1x384xf32>
    %468 = arith.divf %466, %467 : vector<1x384xf32>
    %469 = vector.extract_strided_slice %468 {offsets = [0, 0], sizes = [1, 128], strides = [1, 1]} : vector<1x384xf32> to vector<1x128xf32>
    %470 = vector.extract_strided_slice %468 {offsets = [0, 128], sizes = [1, 128], strides = [1, 1]} : vector<1x384xf32> to vector<1x128xf32>
    %471 = vector.extract_strided_slice %468 {offsets = [0, 256], sizes = [1, 128], strides = [1, 1]} : vector<1x384xf32> to vector<1x128xf32>
    %472 = vector.extract_strided_slice %462 {offsets = [0, 384], sizes = [1, 128], strides = [1, 1]} : vector<1x512xf32> to vector<1x128xf32>
    %473 = math.tanh %472 : vector<1x128xf32>
    %474 = arith.mulf %470, %457 : vector<1x128xf32>
    %475 = arith.mulf %469, %473 : vector<1x128xf32>
    %476 = arith.addf %474, %475 : vector<1x128xf32>
    %477 = math.tanh %476 : vector<1x128xf32>
    %478 = arith.mulf %471, %477 : vector<1x128xf32>
    %479 = vector.extract_strided_slice %341 {offsets = [7, 0], sizes = [1, 512], strides = [1, 1]} : vector<8x512xf32> to vector<1x512xf32>
    %cst_92 = arith.constant dense<0.000000e+00> : vector<1x512xf32>
    %480 = tpu.matmul %478, %336, %cst_92 {dimension_numbers = #tpu.dot_dimension_numbers<[1], [0], [0], [1], [0, 0, 1, 1], [], []>} : vector<1x128xf32>, vector<128x512xf32>, vector<1x512xf32> -> vector<1x512xf32>
    %481 = arith.addf %479, %480 : vector<1x512xf32>
    %482 = vector.extract_strided_slice %481 {offsets = [0, 0], sizes = [1, 384], strides = [1, 1]} : vector<1x512xf32> to vector<1x384xf32>
    %483 = arith.negf %482 : vector<1x384xf32>
    %484 = math.exp %483 : vector<1x384xf32>
    %cst_93 = arith.constant 1.000000e+00 : f32
    %485 = vector.broadcast %cst_93 : f32 to vector<1x384xf32>
    %486 = arith.addf %485, %484 : vector<1x384xf32>
    %487 = arith.divf %485, %486 : vector<1x384xf32>
    %488 = vector.extract_strided_slice %487 {offsets = [0, 0], sizes = [1, 128], strides = [1, 1]} : vector<1x384xf32> to vector<1x128xf32>
    %489 = vector.extract_strided_slice %487 {offsets = [0, 128], sizes = [1, 128], strides = [1, 1]} : vector<1x384xf32> to vector<1x128xf32>
    %490 = vector.extract_strided_slice %487 {offsets = [0, 256], sizes = [1, 128], strides = [1, 1]} : vector<1x384xf32> to vector<1x128xf32>
    %491 = vector.extract_strided_slice %481 {offsets = [0, 384], sizes = [1, 128], strides = [1, 1]} : vector<1x512xf32> to vector<1x128xf32>
    %492 = math.tanh %491 : vector<1x128xf32>
    %493 = arith.mulf %489, %476 : vector<1x128xf32>
    %494 = arith.mulf %488, %492 : vector<1x128xf32>
    %495 = arith.addf %493, %494 : vector<1x128xf32>
    %496 = math.tanh %495 : vector<1x128xf32>
    %497 = arith.mulf %490, %496 : vector<1x128xf32>
    %498 = tpu.concatenate %364, %383, %402, %421, %440, %459, %478, %497 in 0 : vector<1x128xf32>, vector<1x128xf32>, vector<1x128xf32>, vector<1x128xf32>, vector<1x128xf32>, vector<1x128xf32>, vector<1x128xf32>, vector<1x128xf32> -> vector<8x128xf32>
    %c0_94 = arith.constant 0 : index
    %c0_95 = arith.constant 0 : index
    %499 = vector.load %arg6[%c0_94, %c0_95] : memref<8x128xf32, #tpu.memory_space<vmem>>, vector<8x128xf32>
    tpu.vector_store %arg6[%c0_94, %c0_95], %498 {strides = array<i32>} : memref<8x128xf32, #tpu.memory_space<vmem>>, vector<8x128xf32>,
    %500 = vector.shape_cast %165 : vector<1x128xf32> to vector<1x1x128xf32>
    %501 = vector.shape_cast %331 : vector<1x128xf32> to vector<1x1x128xf32>
    %502 = vector.shape_cast %497 : vector<1x128xf32> to vector<1x1x128xf32>
    %503 = tpu.concatenate %500, %501, %502 in 0 : vector<1x1x128xf32>, vector<1x1x128xf32>, vector<1x1x128xf32> -> vector<3x1x128xf32>
    %c0_96 = arith.constant 0 : index
    %c0_97 = arith.constant 0 : index
    %c0_98 = arith.constant 0 : index
    %504 = vector.load %arg7[%c0_96, %c0_97, %c0_98] : memref<3x1x128xf32, #tpu.memory_space<vmem>>, vector<3x1x128xf32>
    tpu.vector_store %arg7[%c0_96, %c0_97, %c0_98], %503 {strides = array<i32>} : memref<3x1x128xf32, #tpu.memory_space<vmem>>, vector<3x1x128xf32>,
    %505 = vector.shape_cast %163 : vector<1x128xf32> to vector<1x1x128xf32>
    %506 = vector.shape_cast %329 : vector<1x128xf32> to vector<1x1x128xf32>
    %507 = vector.shape_cast %495 : vector<1x128xf32> to vector<1x1x128xf32>
    %508 = tpu.concatenate %505, %506, %507 in 0 : vector<1x1x128xf32>, vector<1x1x128xf32>, vector<1x1x128xf32> -> vector<3x1x128xf32>
    %c0_99 = arith.constant 0 : index
    %c0_100 = arith.constant 0 : index
    %c0_101 = arith.constant 0 : index
    %509 = vector.load %arg8[%c0_99, %c0_100, %c0_101] : memref<3x1x128xf32, #tpu.memory_space<vmem>>, vector<3x1x128xf32>
    tpu.vector_store %arg8[%c0_99, %c0_100, %c0_101], %508 {strides = array<i32>} : memref<3x1x128xf32, #tpu.memory_space<vmem>>, vector<3x1x128xf32>,
    return
  }
}

</mosaic_0001>

<llo_original>
// kernel: lstm_forward.1
$region0: #{lstm_forward.1}
  #allocation0 [shape = 'u32[]', space=smem, size = 0x4, offset = 0x4, fixed_abs, tag = 'smem constant byte address 0x4 - core index']
  #allocation1 [shape = 'u32[72,128]{1,0:T(1,128)}', space=vmem, size = 0x9000, scoped, tag = 'internal scratch']
  %s0 = inlined_call_operand.vmem [shape: f32[8,128], index: 0, kind: input, shape index: {}]
  %s1 = inlined_call_operand.vmem [shape: f32[3,1,128], index: 1, kind: input, shape index: {}]
  %s2 = inlined_call_operand.vmem [shape: f32[3,1,128], index: 2, kind: input, shape index: {}]
  %s3 = inlined_call_operand.hbm [shape: f32[3,128,512], index: 3, kind: input, shape index: {}]
  %s4 = inlined_call_operand.hbm [shape: f32[3,128,512], index: 4, kind: input, shape index: {}]
  %s5 = inlined_call_operand.vmem [shape: f32[3,1,512], index: 5, kind: input, shape index: {}]
  %s6 = inlined_call_operand.hbm [shape: f32[8,128], index: 6, kind: output, shape index: {0}]
  %s7 = inlined_call_operand.hbm [shape: f32[3,1,128], index: 7, kind: output, shape index: {1}]
  %s8 = inlined_call_operand.hbm [shape: f32[3,1,128], index: 8, kind: output, shape index: {2}]
  %9 = xla_tuple %s6, %s7, %s8
  %s10 = sld [smem:[#allocation0]]
  $region58: #{lstm_forward.1} parent=0
    _
  %s12 = ssub.s32 1, %s10
  %s13 = scalar_select 0, %s12, %s10
  $region1: #{lstm_forward.1} parent=0
    #allocation2 [shape = 'u8[786432]{0}', space=vmem, size = 0xc0000, scoped, tag = 'input window, operand 3, single buffered']
    #allocation3 [shape = 's32[1]{0}', space=sflag, size = 0x4, scoped, tag = 'scoped memory for lstm_forward.1']
    #allocation4 [shape = 's32[1]{0}', space=sflag, size = 0x4, scoped, tag = 'scoped memory for lstm_forward.1']
    #allocation5 [shape = 'u8[786432]{0}', space=vmem, size = 0xc0000, scoped, tag = 'input window, operand 4, single buffered']
    #allocation6 [shape = 's32[1]{0}', space=sflag, size = 0x4, scoped, tag = 'scoped memory for lstm_forward.1']
    #allocation7 [shape = 'u8[4096]{0}', space=vmem, size = 0x1000, scoped, tag = 'output window, operand 0, single buffered']
    #allocation8 [shape = 'u8[1536]{0}', space=vmem, size = 0x800, scoped, tag = 'output window, operand 1, single buffered']
    #allocation9 [shape = 's32[1]{0}', space=sflag, size = 0x4, scoped, tag = 'scoped memory for lstm_forward.1']
    #allocation10 [shape = 'u8[1536]{0}', space=vmem, size = 0x800, scoped, tag = 'output window, operand 2, single buffered']
    %14 = vsyncpa [#allocation3], 0
    %15 = vsyncpa [#allocation6], 0
    %16 = vsyncpa [#allocation4], 0
    %17 = vsyncpa [#allocation9], 0
    // Predicated region
    $region2: #{lstm_forward.1} parent=1 // pred_check
      _
    $region3: #{lstm_forward.1} parent=1 // pred_check_branch
      %19 = sbr.rel (0) target = $region5
    $region4: #{lstm_forward.1} parent=1 // pred_region
      _
    $region5: #{lstm_forward.1} parent=1 // pred_fallthru
      _
    // Predicated region
    $region6: #{lstm_forward.1} parent=1 // pred_check
      _
    $region7: #{lstm_forward.1} parent=1 // pred_check_branch
      %21 = sbr.rel (0) target = $region9
    $region8: #{lstm_forward.1} parent=1 // pred_region
      _
    $region9: #{lstm_forward.1} parent=1 // pred_fallthru
      _
    // Predicated region
    $region10: #{lstm_forward.1} parent=1 // pred_check
      _
    $region11: #{lstm_forward.1} parent=1 // pred_check_branch
      %23 = sbr.rel (0) target = $region13
    $region12: #{lstm_forward.1} parent=1 // pred_region
      _
    $region13: #{lstm_forward.1} parent=1 // pred_fallthru
      _
    // Predicated region
    $region14: #{lstm_forward.1} parent=1 // pred_check
      _
    $region15: #{lstm_forward.1} parent=1 // pred_check_branch
      %25 = sbr.rel (0) target = $region17
    $region16: #{lstm_forward.1} parent=1 // pred_region
      %27 = vsyncadd [#allocation3], 0
      %s28 = sshll.u32 %s3, 4
      %s29 = int_to_ptr.hbm [resolvable:$true] %s28
      %s30 = sshll.u32 [#allocation2], 4
      %s31 = int_to_ptr.vmem [resolvable:$true] %s30
      %36 = dma.hbm_to_vmem [thread:$0]  %s29, 24576, %s31, [#allocation3], 512, 512, 32
    $region17: #{lstm_forward.1} parent=1 // pred_fallthru
      _
    // Predicated region
    $region18: #{lstm_forward.1} parent=1 // pred_check
      _
    $region19: #{lstm_forward.1} parent=1 // pred_check_branch
      %38 = sbr.rel (0) target = $region21
    $region20: #{lstm_forward.1} parent=1 // pred_region
      %40 = vsyncadd [#allocation6], 0
      %s41 = sshll.u32 %s4, 4
      %s42 = int_to_ptr.hbm [resolvable:$true] %s41
      %s43 = sshll.u32 [#allocation5], 4
      %s44 = int_to_ptr.vmem [resolvable:$true] %s43
      %49 = dma.hbm_to_vmem [thread:$0]  %s42, 24576, %s44, [#allocation6], 512, 512, 32
    $region21: #{lstm_forward.1} parent=1 // pred_fallthru
      _
    // Predicated region
    $region22: #{lstm_forward.1} parent=1 // pred_check
      _
    $region23: #{lstm_forward.1} parent=1 // pred_check_branch
      %51 = sbr.rel (0) target = $region25
    $region24: #{lstm_forward.1} parent=1 // pred_region
      _
    $region25: #{lstm_forward.1} parent=1 // pred_fallthru
      _
    // Predicated region
    $region26: #{lstm_forward.1} parent=1 // pred_check
      _
    $region27: #{lstm_forward.1} parent=1 // pred_check_branch
      %53 = sbr.rel (0) target = $region29
    $region28: #{lstm_forward.1} parent=1 // pred_region
      %55 = dma.done [#allocation3], 24576
    $region29: #{lstm_forward.1} parent=1 // pred_fallthru
      _
    // Predicated region
    $region30: #{lstm_forward.1} parent=1 // pred_check
      _
    $region31: #{lstm_forward.1} parent=1 // pred_check_branch
      %57 = sbr.rel (0) target = $region33
    $region32: #{lstm_forward.1} parent=1 // pred_region
      %59 = dma.done [#allocation6], 24576
    $region33: #{lstm_forward.1} parent=1 // pred_fallthru
      _
    %v60 = vld [vmem:[%s0] sm:$0xff]
    %v61 = vld [vmem:[#allocation2] sm:$0xff]
    %v62 = vld [vmem:[#allocation2 + $0x8] sm:$0xff]
    %v63 = vld [vmem:[#allocation2 + $0x10] sm:$0xff]
    %v64 = vld [vmem:[#allocation2 + $0x18] sm:$0xff]
    %v65 = vld [vmem:[#allocation2 + $0x20] sm:$0xff]
    %v66 = vld [vmem:[#allocation2 + $0x28] sm:$0xff]
    %v67 = vld [vmem:[#allocation2 + $0x30] sm:$0xff]
    %v68 = vld [vmem:[#allocation2 + $0x38] sm:$0xff]
    %v69 = vld [vmem:[#allocation2 + $0x40] sm:$0xff]
    %v70 = vld [vmem:[#allocation2 + $0x48] sm:$0xff]
    %v71 = vld [vmem:[#allocation2 + $0x50] sm:$0xff]
    %v72 = vld [vmem:[#allocation2 + $0x58] sm:$0xff]
    %v73 = vld [vmem:[#allocation2 + $0x60] sm:$0xff]
    %v74 = vld [vmem:[#allocation2 + $0x68] sm:$0xff]
    %v75 = vld [vmem:[#allocation2 + $0x70] sm:$0xff]
    %v76 = vld [vmem:[#allocation2 + $0x78] sm:$0xff]
    %v77 = vld [vmem:[#allocation2 + $0x80] sm:$0xff]
    %v78 = vld [vmem:[#allocation2 + $0x88] sm:$0xff]
    %v79 = vld [vmem:[#allocation2 + $0x90] sm:$0xff]
    %v80 = vld [vmem:[#allocation2 + $0x98] sm:$0xff]
    %v81 = vld [vmem:[#allocation2 + $0xa0] sm:$0xff]
    %v82 = vld [vmem:[#allocation2 + $0xa8] sm:$0xff]
    %v83 = vld [vmem:[#allocation2 + $0xb0] sm:$0xff]
    %v84 = vld [vmem:[#allocation2 + $0xb8] sm:$0xff]
    %v85 = vld [vmem:[#allocation2 + $0xc0] sm:$0xff]
    %v86 = vld [vmem:[#allocation2 + $0xc8] sm:$0xff]
    %v87 = vld [vmem:[#allocation2 + $0xd0] sm:$0xff]
    %v88 = vld [vmem:[#allocation2 + $0xd8] sm:$0xff]
    %v89 = vld [vmem:[#allocation2 + $0xe0] sm:$0xff]
    %v90 = vld [vmem:[#allocation2 + $0xe8] sm:$0xff]
    %v91 = vld [vmem:[#allocation2 + $0xf0] sm:$0xff]
    %v92 = vld [vmem:[#allocation2 + $0xf8] sm:$0xff]
    %v93 = vld [vmem:[#allocation2 + $0x100] sm:$0xff]
    %v94 = vld [vmem:[#allocation2 + $0x108] sm:$0xff]
    %v95 = vld [vmem:[#allocation2 + $0x110] sm:$0xff]
    %v96 = vld [vmem:[#allocation2 + $0x118] sm:$0xff]
    %v97 = vld [vmem:[#allocation2 + $0x120] sm:$0xff]
    %v98 = vld [vmem:[#allocation2 + $0x128] sm:$0xff]
    %v99 = vld [vmem:[#allocation2 + $0x130] sm:$0xff]
    %v100 = vld [vmem:[#allocation2 + $0x138] sm:$0xff]
    %v101 = vld [vmem:[#allocation2 + $0x140] sm:$0xff]
    %v102 = vld [vmem:[#allocation2 + $0x148] sm:$0xff]
    %v103 = vld [vmem:[#allocation2 + $0x150] sm:$0xff]
    %v104 = vld [vmem:[#allocation2 + $0x158] sm:$0xff]
    %v105 = vld [vmem:[#allocation2 + $0x160] sm:$0xff]
    %v106 = vld [vmem:[#allocation2 + $0x168] sm:$0xff]
    %v107 = vld [vmem:[#allocation2 + $0x170] sm:$0xff]
    %v108 = vld [vmem:[#allocation2 + $0x178] sm:$0xff]
    %v109 = vld [vmem:[#allocation2 + $0x180] sm:$0xff]
    %v110 = vld [vmem:[#allocation2 + $0x188] sm:$0xff]
    %v111 = vld [vmem:[#allocation2 + $0x190] sm:$0xff]
    %v112 = vld [vmem:[#allocation2 + $0x198] sm:$0xff]
    %v113 = vld [vmem:[#allocation2 + $0x1a0] sm:$0xff]
    %v114 = vld [vmem:[#allocation2 + $0x1a8] sm:$0xff]
    %v115 = vld [vmem:[#allocation2 + $0x1b0] sm:$0xff]
    %v116 = vld [vmem:[#allocation2 + $0x1b8] sm:$0xff]
    %v117 = vld [vmem:[#allocation2 + $0x1c0] sm:$0xff]
    %v118 = vld [vmem:[#allocation2 + $0x1c8] sm:$0xff]
    %v119 = vld [vmem:[#allocation2 + $0x1d0] sm:$0xff]
    %v120 = vld [vmem:[#allocation2 + $0x1d8] sm:$0xff]
    %v121 = vld [vmem:[#allocation2 + $0x1e0] sm:$0xff]
    %v122 = vld [vmem:[#allocation2 + $0x1e8] sm:$0xff]
    %v123 = vld [vmem:[#allocation2 + $0x1f0] sm:$0xff]
    %v124 = vld [vmem:[#allocation2 + $0x1f8] sm:$0xff]
    %v125 = vld [vmem:[#allocation5] sm:$0xff]
    %v126 = vld [vmem:[#allocation5 + $0x8] sm:$0xff]
    %v127 = vld [vmem:[#allocation5 + $0x10] sm:$0xff]
    %v128 = vld [vmem:[#allocation5 + $0x18] sm:$0xff]
    %v129 = vld [vmem:[#allocation5 + $0x20] sm:$0xff]
    %v130 = vld [vmem:[#allocation5 + $0x28] sm:$0xff]
    %v131 = vld [vmem:[#allocation5 + $0x30] sm:$0xff]
    %v132 = vld [vmem:[#allocation5 + $0x38] sm:$0xff]
    %v133 = vld [vmem:[#allocation5 + $0x40] sm:$0xff]
    %v134 = vld [vmem:[#allocation5 + $0x48] sm:$0xff]
    %v135 = vld [vmem:[#allocation5 + $0x50] sm:$0xff]
    %v136 = vld [vmem:[#allocation5 + $0x58] sm:$0xff]
    %v137 = vld [vmem:[#allocation5 + $0x60] sm:$0xff]
    %v138 = vld [vmem:[#allocation5 + $0x68] sm:$0xff]
    %v139 = vld [vmem:[#allocation5 + $0x70] sm:$0xff]
    %v140 = vld [vmem:[#allocation5 + $0x78] sm:$0xff]
    %v141 = vld [vmem:[#allocation5 + $0x80] sm:$0xff]
    %v142 = vld [vmem:[#allocation5 + $0x88] sm:$0xff]
    %v143 = vld [vmem:[#allocation5 + $0x90] sm:$0xff]
    %v144 = vld [vmem:[#allocation5 + $0x98] sm:$0xff]
    %v145 = vld [vmem:[#allocation5 + $0xa0] sm:$0xff]
    %v146 = vld [vmem:[#allocation5 + $0xa8] sm:$0xff]
    %v147 = vld [vmem:[#allocation5 + $0xb0] sm:$0xff]
    %v148 = vld [vmem:[#allocation5 + $0xb8] sm:$0xff]
    %v149 = vld [vmem:[#allocation5 + $0xc0] sm:$0xff]
    %v150 = vld [vmem:[#allocation5 + $0xc8] sm:$0xff]
    %v151 = vld [vmem:[#allocation5 + $0xd0] sm:$0xff]
    %v152 = vld [vmem:[#allocation5 + $0xd8] sm:$0xff]
    %v153 = vld [vmem:[#allocation5 + $0xe0] sm:$0xff]
    %v154 = vld [vmem:[#allocation5 + $0xe8] sm:$0xff]
    %v155 = vld [vmem:[#allocation5 + $0xf0] sm:$0xff]
    %v156 = vld [vmem:[#allocation5 + $0xf8] sm:$0xff]
    %v157 = vld [vmem:[#allocation5 + $0x100] sm:$0xff]
    %v158 = vld [vmem:[#allocation5 + $0x108] sm:$0xff]
    %v159 = vld [vmem:[#allocation5 + $0x110] sm:$0xff]
    %v160 = vld [vmem:[#allocation5 + $0x118] sm:$0xff]
    %v161 = vld [vmem:[#allocation5 + $0x120] sm:$0xff]
    %v162 = vld [vmem:[#allocation5 + $0x128] sm:$0xff]
    %v163 = vld [vmem:[#allocation5 + $0x130] sm:$0xff]
    %v164 = vld [vmem:[#allocation5 + $0x138] sm:$0xff]
    %v165 = vld [vmem:[#allocation5 + $0x140] sm:$0xff]
    %v166 = vld [vmem:[#allocation5 + $0x148] sm:$0xff]
    %v167 = vld [vmem:[#allocation5 + $0x150] sm:$0xff]
    %v168 = vld [vmem:[#allocation5 + $0x158] sm:$0xff]
    %v169 = vld [vmem:[#allocation5 + $0x160] sm:$0xff]
    %v170 = vld [vmem:[#allocation5 + $0x168] sm:$0xff]
    %v171 = vld [vmem:[#allocation5 + $0x170] sm:$0xff]
    %v172 = vld [vmem:[#allocation5 + $0x178] sm:$0xff]
    %v173 = vld [vmem:[#allocation5 + $0x180] sm:$0xff]
    %v174 = vld [vmem:[#allocation5 + $0x188] sm:$0xff]
    %v175 = vld [vmem:[#allocation5 + $0x190] sm:$0xff]
    %v176 = vld [vmem:[#allocation5 + $0x198] sm:$0xff]
    %v177 = vld [vmem:[#allocation5 + $0x1a0] sm:$0xff]
    %v178 = vld [vmem:[#allocation5 + $0x1a8] sm:$0xff]
    %v179 = vld [vmem:[#allocation5 + $0x1b0] sm:$0xff]
    %v180 = vld [vmem:[#allocation5 + $0x1b8] sm:$0xff]
    %v181 = vld [vmem:[#allocation5 + $0x1c0] sm:$0xff]
    %v182 = vld [vmem:[#allocation5 + $0x1c8] sm:$0xff]
    %v183 = vld [vmem:[#allocation5 + $0x1d0] sm:$0xff]
    %v184 = vld [vmem:[#allocation5 + $0x1d8] sm:$0xff]
    %v185 = vld [vmem:[#allocation5 + $0x1e0] sm:$0xff]
    %v186 = vld [vmem:[#allocation5 + $0x1e8] sm:$0xff]
    %v187 = vld [vmem:[#allocation5 + $0x1f0] sm:$0xff]
    %v188 = vld [vmem:[#allocation5 + $0x1f8] sm:$0xff]
    %v189 = vld [vmem:[%s5] sm:$0xf]
    %v191 = vperm.slane %v189, 0
    %v192 = vperm.slane %v189, 1
    %v193 = vperm.slane %v189, 2
    %v194 = vperm.slane %v189, 3
    %199 = vmatpush.msra.mxu0 %v121
    %200 = vmatpush.msra.mxu0 %v117
    %201 = vmatpush.msra.mxu0 %v113
    %202 = vmatpush.msra.mxu0 %v109
    %203 = vmatpush.msra.mxu0 %v105
    %204 = vmatpush.msra.mxu0 %v101
    %205 = vmatpush.msra.mxu0 %v97
    %206 = vmatpush.msra.mxu0 %v93
    %207 = vmatpush.msra.mxu0 %v89
    %208 = vmatpush.msra.mxu0 %v85
    %209 = vmatpush.msra.mxu0 %v81
    %210 = vmatpush.msra.mxu0 %v77
    %211 = vmatpush.msra.mxu0 %v73
    %212 = vmatpush.msra.mxu0 %v69
    %213 = vmatpush.msra.mxu0 %v65
    %214 = vmatpush.msra.mxu0 %v61
    %215 = vmatmul.f32.gmra.mxu0 %v60
    %v216 = vpop.f32.mrf.mxu0
    %v217 = vadd.f32 %v191, %v216
    %218 = vdwg.mxu0
    %219 = vmatpush.msra.mxu0 %v122
    %220 = vmatpush.msra.mxu0 %v118
    %221 = vmatpush.msra.mxu0 %v114
    %222 = vmatpush.msra.mxu0 %v110
    %223 = vmatpush.msra.mxu0 %v106
    %224 = vmatpush.msra.mxu0 %v102
    %225 = vmatpush.msra.mxu0 %v98
    %226 = vmatpush.msra.mxu0 %v94
    %227 = vmatpush.msra.mxu0 %v90
    %228 = vmatpush.msra.mxu0 %v86
    %229 = vmatpush.msra.mxu0 %v82
    %230 = vmatpush.msra.mxu0 %v78
    %231 = vmatpush.msra.mxu0 %v74
    %232 = vmatpush.msra.mxu0 %v70
    %233 = vmatpush.msra.mxu0 %v66
    %234 = vmatpush.msra.mxu0 %v62
    %235 = vmatmul.f32.gmra.mxu0 %v60
    %v236 = vpop.f32.mrf.mxu0
    %v237 = vadd.f32 %v192, %v236
    %238 = vdwg.mxu0
    %239 = vmatpush.msra.mxu0 %v123
    %240 = vmatpush.msra.mxu0 %v119
    %241 = vmatpush.msra.mxu0 %v115
    %242 = vmatpush.msra.mxu0 %v111
    %243 = vmatpush.msra.mxu0 %v107
    %244 = vmatpush.msra.mxu0 %v103
    %245 = vmatpush.msra.mxu0 %v99
    %246 = vmatpush.msra.mxu0 %v95
    %247 = vmatpush.msra.mxu0 %v91
    %248 = vmatpush.msra.mxu0 %v87
    %249 = vmatpush.msra.mxu0 %v83
    %250 = vmatpush.msra.mxu0 %v79
    %251 = vmatpush.msra.mxu0 %v75
    %252 = vmatpush.msra.mxu0 %v71
    %253 = vmatpush.msra.mxu0 %v67
    %254 = vmatpush.msra.mxu0 %v63
    %255 = vmatmul.f32.gmra.mxu0 %v60
    %v256 = vpop.f32.mrf.mxu0
    %v257 = vadd.f32 %v193, %v256
    %258 = vdwg.mxu0
    %259 = vmatpush.msra.mxu0 %v124
    %260 = vmatpush.msra.mxu0 %v120
    %261 = vmatpush.msra.mxu0 %v116
    %262 = vmatpush.msra.mxu0 %v112
    %263 = vmatpush.msra.mxu0 %v108
    %264 = vmatpush.msra.mxu0 %v104
    %265 = vmatpush.msra.mxu0 %v100
    %266 = vmatpush.msra.mxu0 %v96
    %267 = vmatpush.msra.mxu0 %v92
    %268 = vmatpush.msra.mxu0 %v88
    %269 = vmatpush.msra.mxu0 %v84
    %270 = vmatpush.msra.mxu0 %v80
    %271 = vmatpush.msra.mxu0 %v76
    %272 = vmatpush.msra.mxu0 %v72
    %273 = vmatpush.msra.mxu0 %v68
    %274 = vmatpush.msra.mxu0 %v64
    %275 = vmatmul.f32.gmra.mxu0 %v60
    %v276 = vpop.f32.mrf.mxu0
    %v277 = vadd.f32 %v194, %v276
    %278 = vdwg.mxu0
    %v279 = vld [vmem:[%s1] sm:$0x1]
    %v280 = vld [vmem:[%s2] sm:$0x1]
    %281 = vmatpush.msra.mxu0 %v185
    %282 = vmatpush.msra.mxu0 %v181
    %283 = vmatpush.msra.mxu0 %v177
    %284 = vmatpush.msra.mxu0 %v173
    %285 = vmatpush.msra.mxu0 %v169
    %286 = vmatpush.msra.mxu0 %v165
    %287 = vmatpush.msra.mxu0 %v161
    %288 = vmatpush.msra.mxu0 %v157
    %289 = vmatpush.msra.mxu0 %v153
    %290 = vmatpush.msra.mxu0 %v149
    %291 = vmatpush.msra.mxu0 %v145
    %292 = vmatpush.msra.mxu0 %v141
    %293 = vmatpush.msra.mxu0 %v137
    %294 = vmatpush.msra.mxu0 %v133
    %295 = vmatpush.msra.mxu0 %v129
    %296 = vmatpush.msra.mxu0 %v125
    %297 = vmatmul.f32.gmra.mxu0 %v279
    %v298 = vpop.f32.mrf.mxu0
    %v299 = vadd.f32 0.0, %v298
    %300 = vdwg.mxu0
    %301 = vmatpush.msra.mxu0 %v186
    %302 = vmatpush.msra.mxu0 %v182
    %303 = vmatpush.msra.mxu0 %v178
    %304 = vmatpush.msra.mxu0 %v174
    %305 = vmatpush.msra.mxu0 %v170
    %306 = vmatpush.msra.mxu0 %v166
    %307 = vmatpush.msra.mxu0 %v162
    %308 = vmatpush.msra.mxu0 %v158
    %309 = vmatpush.msra.mxu0 %v154
    %310 = vmatpush.msra.mxu0 %v150
    %311 = vmatpush.msra.mxu0 %v146
    %312 = vmatpush.msra.mxu0 %v142
    %313 = vmatpush.msra.mxu0 %v138
    %314 = vmatpush.msra.mxu0 %v134
    %315 = vmatpush.msra.mxu0 %v130
    %316 = vmatpush.msra.mxu0 %v126
    %317 = vmatmul.f32.gmra.mxu0 %v279
    %v318 = vpop.f32.mrf.mxu0
    %v319 = vadd.f32 0.0, %v318
    %320 = vdwg.mxu0
    %321 = vmatpush.msra.mxu0 %v187
    %322 = vmatpush.msra.mxu0 %v183
    %323 = vmatpush.msra.mxu0 %v179
    %324 = vmatpush.msra.mxu0 %v175
    %325 = vmatpush.msra.mxu0 %v171
    %326 = vmatpush.msra.mxu0 %v167
    %327 = vmatpush.msra.mxu0 %v163
    %328 = vmatpush.msra.mxu0 %v159
    %329 = vmatpush.msra.mxu0 %v155
    %330 = vmatpush.msra.mxu0 %v151
    %331 = vmatpush.msra.mxu0 %v147
    %332 = vmatpush.msra.mxu0 %v143
    %333 = vmatpush.msra.mxu0 %v139
    %334 = vmatpush.msra.mxu0 %v135
    %335 = vmatpush.msra.mxu0 %v131
    %336 = vmatpush.msra.mxu0 %v127
    %337 = vmatmul.f32.gmra.mxu0 %v279
    %v338 = vpop.f32.mrf.mxu0
    %v339 = vadd.f32 0.0, %v338
    %340 = vdwg.mxu0
    %341 = vmatpush.msra.mxu0 %v188
    %342 = vmatpush.msra.mxu0 %v184
    %343 = vmatpush.msra.mxu0 %v180
    %344 = vmatpush.msra.mxu0 %v176
    %345 = vmatpush.msra.mxu0 %v172
    %346 = vmatpush.msra.mxu0 %v168
    %347 = vmatpush.msra.mxu0 %v164
    %348 = vmatpush.msra.mxu0 %v160
    %349 = vmatpush.msra.mxu0 %v156
    %350 = vmatpush.msra.mxu0 %v152
    %351 = vmatpush.msra.mxu0 %v148
    %352 = vmatpush.msra.mxu0 %v144
    %353 = vmatpush.msra.mxu0 %v140
    %354 = vmatpush.msra.mxu0 %v136
    %355 = vmatpush.msra.mxu0 %v132
    %356 = vmatpush.msra.mxu0 %v128
    %357 = vmatmul.f32.gmra.mxu0 %v279
    %v358 = vpop.f32.mrf.mxu0
    %v359 = vadd.f32 0.0, %v358
    %360 = vdwg.mxu0
    %v361 = vadd.f32 %v217, %v299
    %v362 = vadd.f32 %v237, %v319
    %v363 = vadd.f32 %v257, %v339
    %v364 = vadd.f32 %v277, %v359
    %v365 = vxor.u32 %v361, 2147483648
    %v366 = vxor.u32 %v362, 2147483648
    %v367 = vxor.u32 %v363, 2147483648
    %v368 = vmul.f32 %v365, 1.442695
    %v369 = vpow.pop %v368
    %v370 = vmul.f32 %v366, 1.442695
    %v371 = vpow.pop %v370
    %v372 = vmul.f32 %v367, 1.442695
    %v373 = vpow.pop %v372
    %v374 = vadd.f32 %v369, 1.0
    %v375 = vadd.f32 %v371, 1.0
    %v376 = vadd.f32 %v373, 1.0
    %v377 = vrcp.pop %v374
    %v378 = vmul.f32 %v374, %v377
    %v379 = vsub.f32 1.0, %v378
    %v380 = vmul.f32 %v377, %v379
    %v381 = vadd.f32 %v377, %v380
    %vm382 = vweird.f32 %v374
    %vm383 = vweird.f32 %v377
    %vm384 = vmor %vm382, %vm383
    %v385 = vsel %vm384, %v377, %v381
    %v386 = vand.u32 2147483647, %v374
    %vm387 = vcmp.eq.f32.partialorder %v386, 8.507059e+37
    %v388 = vand.u32 %v374, 2147483648
    %v389 = vor.u32 1.1754944e-38, %v388
    %v390 = vsel %vm387, %v389, %v385
    %v391 = vmul.f32 1.0, %v390
    %v392 = vrcp.pop %v375
    %v393 = vmul.f32 %v375, %v392
    %v394 = vsub.f32 1.0, %v393
    %v395 = vmul.f32 %v392, %v394
    %v396 = vadd.f32 %v392, %v395
    %vm397 = vweird.f32 %v375
    %vm398 = vweird.f32 %v392
    %vm399 = vmor %vm397, %vm398
    %v400 = vsel %vm399, %v392, %v396
    %v401 = vand.u32 2147483647, %v375
    %vm402 = vcmp.eq.f32.partialorder %v401, 8.507059e+37
    %v403 = vand.u32 %v375, 2147483648
    %v404 = vor.u32 1.1754944e-38, %v403
    %v405 = vsel %vm402, %v404, %v400
    %v406 = vmul.f32 1.0, %v405
    %v407 = vrcp.pop %v376
    %v408 = vmul.f32 %v376, %v407
    %v409 = vsub.f32 1.0, %v408
    %v410 = vmul.f32 %v407, %v409
    %v411 = vadd.f32 %v407, %v410
    %vm412 = vweird.f32 %v376
    %vm413 = vweird.f32 %v407
    %vm414 = vmor %vm412, %vm413
    %v415 = vsel %vm414, %v407, %v411
    %v416 = vand.u32 2147483647, %v376
    %vm417 = vcmp.eq.f32.partialorder %v416, 8.507059e+37
    %v418 = vand.u32 %v376, 2147483648
    %v419 = vor.u32 1.1754944e-38, %v418
    %v420 = vsel %vm417, %v419, %v415
    %v421 = vmul.f32 1.0, %v420
    %v422 = vtanh.pop %v364
    %v423 = vmul.f32 %v406, %v280
    %v424 = vmul.f32 %v391, %v422
    %v425 = vadd.f32 %v423, %v424
    %v426 = vtanh.pop %v425
    %v427 = vmul.f32 %v421, %v426
    %428 = vmatpush.msra.mxu0 %v185
    %429 = vmatpush.msra.mxu0 %v181
    %430 = vmatpush.msra.mxu0 %v177
    %431 = vmatpush.msra.mxu0 %v173
    %432 = vmatpush.msra.mxu0 %v169
    %433 = vmatpush.msra.mxu0 %v165
    %434 = vmatpush.msra.mxu0 %v161
    %435 = vmatpush.msra.mxu0 %v157
    %436 = vmatpush.msra.mxu0 %v153
    %437 = vmatpush.msra.mxu0 %v149
    %438 = vmatpush.msra.mxu0 %v145
    %439 = vmatpush.msra.mxu0 %v141
    %440 = vmatpush.msra.mxu0 %v137
    %441 = vmatpush.msra.mxu0 %v133
    %442 = vmatpush.msra.mxu0 %v129
    %443 = vmatpush.msra.mxu0 %v125
    %444 = vmatmul.f32.gmra.mxu0 %v427
    %v445 = vpop.f32.mrf.mxu0
    %v446 = vadd.f32 0.0, %v445
    %447 = vdwg.mxu0
    %448 = vmatpush.msra.mxu0 %v186
    %449 = vmatpush.msra.mxu0 %v182
    %450 = vmatpush.msra.mxu0 %v178
    %451 = vmatpush.msra.mxu0 %v174
    %452 = vmatpush.msra.mxu0 %v170
    %453 = vmatpush.msra.mxu0 %v166
    %454 = vmatpush.msra.mxu0 %v162
    %455 = vmatpush.msra.mxu0 %v158
    %456 = vmatpush.msra.mxu0 %v154
    %457 = vmatpush.msra.mxu0 %v150
    %458 = vmatpush.msra.mxu0 %v146
    %459 = vmatpush.msra.mxu0 %v142
    %460 = vmatpush.msra.mxu0 %v138
    %461 = vmatpush.msra.mxu0 %v134
    %462 = vmatpush.msra.mxu0 %v130
    %463 = vmatpush.msra.mxu0 %v126
    %464 = vmatmul.f32.gmra.mxu0 %v427
    %v465 = vpop.f32.mrf.mxu0
    %v466 = vadd.f32 0.0, %v465
    %467 = vdwg.mxu0
    %468 = vmatpush.msra.mxu0 %v187
    %469 = vmatpush.msra.mxu0 %v183
    %470 = vmatpush.msra.mxu0 %v179
    %471 = vmatpush.msra.mxu0 %v175
    %472 = vmatpush.msra.mxu0 %v171
    %473 = vmatpush.msra.mxu0 %v167
    %474 = vmatpush.msra.mxu0 %v163
    %475 = vmatpush.msra.mxu0 %v159
    %476 = vmatpush.msra.mxu0 %v155
    %477 = vmatpush.msra.mxu0 %v151
    %478 = vmatpush.msra.mxu0 %v147
    %479 = vmatpush.msra.mxu0 %v143
    %480 = vmatpush.msra.mxu0 %v139
    %481 = vmatpush.msra.mxu0 %v135
    %482 = vmatpush.msra.mxu0 %v131
    %483 = vmatpush.msra.mxu0 %v127
    %484 = vmatmul.f32.gmra.mxu0 %v427
    %v485 = vpop.f32.mrf.mxu0
    %v486 = vadd.f32 0.0, %v485
    %487 = vdwg.mxu0
    %488 = vmatpush.msra.mxu0 %v188
    %489 = vmatpush.msra.mxu0 %v184
    %490 = vmatpush.msra.mxu0 %v180
    %491 = vmatpush.msra.mxu0 %v176
    %492 = vmatpush.msra.mxu0 %v172
    %493 = vmatpush.msra.mxu0 %v168
    %494 = vmatpush.msra.mxu0 %v164
    %495 = vmatpush.msra.mxu0 %v160
    %496 = vmatpush.msra.mxu0 %v156
    %497 = vmatpush.msra.mxu0 %v152
    %498 = vmatpush.msra.mxu0 %v148
    %499 = vmatpush.msra.mxu0 %v144
    %500 = vmatpush.msra.mxu0 %v140
    %501 = vmatpush.msra.mxu0 %v136
    %502 = vmatpush.msra.mxu0 %v132
    %503 = vmatpush.msra.mxu0 %v128
    %504 = vmatmul.f32.gmra.mxu0 %v427
    %v505 = vpop.f32.mrf.mxu0
    %v506 = vadd.f32 0.0, %v505
    %507 = vdwg.mxu0
    %v512 = vrot.slane %v446, 7
    %v513 = vrot.slane %v466, 7
    %v514 = vrot.slane %v486, 7
    %v515 = vrot.slane %v506, 7
    %v520 = vadd.f32 %v217, %v512
    %v521 = vadd.f32 %v237, %v513
    %v522 = vadd.f32 %v257, %v514
    %v523 = vadd.f32 %v277, %v515
    %v524 = vxor.u32 %v520, 2147483648
    %v525 = vxor.u32 %v521, 2147483648
    %v526 = vxor.u32 %v522, 2147483648
    %v527 = vmul.f32 %v524, 1.442695
    %v528 = vpow.pop %v527
    %v529 = vmul.f32 %v525, 1.442695
    %v530 = vpow.pop %v529
    %v531 = vmul.f32 %v526, 1.442695
    %v532 = vpow.pop %v531
    %v533 = vadd.f32 %v528, 1.0
    %v534 = vadd.f32 %v530, 1.0
    %v535 = vadd.f32 %v532, 1.0
    %v536 = vrcp.pop %v533
    %v537 = vmul.f32 %v533, %v536
    %v538 = vsub.f32 1.0, %v537
    %v539 = vmul.f32 %v536, %v538
    %v540 = vadd.f32 %v536, %v539
    %vm541 = vweird.f32 %v533
    %vm542 = vweird.f32 %v536
    %vm543 = vmor %vm541, %vm542
    %v544 = vsel %vm543, %v536, %v540
    %v545 = vand.u32 2147483647, %v533
    %vm546 = vcmp.eq.f32.partialorder %v545, 8.507059e+37
    %v547 = vand.u32 %v533, 2147483648
    %v548 = vor.u32 1.1754944e-38, %v547
    %v549 = vsel %vm546, %v548, %v544
    %v550 = vmul.f32 1.0, %v549
    %v551 = vrcp.pop %v534
    %v552 = vmul.f32 %v534, %v551
    %v553 = vsub.f32 1.0, %v552
    %v554 = vmul.f32 %v551, %v553
    %v555 = vadd.f32 %v551, %v554
    %vm556 = vweird.f32 %v534
    %vm557 = vweird.f32 %v551
    %vm558 = vmor %vm556, %vm557
    %v559 = vsel %vm558, %v551, %v555
    %v560 = vand.u32 2147483647, %v534
    %vm561 = vcmp.eq.f32.partialorder %v560, 8.507059e+37
    %v562 = vand.u32 %v534, 2147483648
    %v563 = vor.u32 1.1754944e-38, %v562
    %v564 = vsel %vm561, %v563, %v559
    %v565 = vmul.f32 1.0, %v564
    %v566 = vrcp.pop %v535
    %v567 = vmul.f32 %v535, %v566
    %v568 = vsub.f32 1.0, %v567
    %v569 = vmul.f32 %v566, %v568
    %v570 = vadd.f32 %v566, %v569
    %vm571 = vweird.f32 %v535
    %vm572 = vweird.f32 %v566
    %vm573 = vmor %vm571, %vm572
    %v574 = vsel %vm573, %v566, %v570
    %v575 = vand.u32 2147483647, %v535
    %vm576 = vcmp.eq.f32.partialorder %v575, 8.507059e+37
    %v577 = vand.u32 %v535, 2147483648
    %v578 = vor.u32 1.1754944e-38, %v577
    %v579 = vsel %vm576, %v578, %v574
    %v580 = vmul.f32 1.0, %v579
    %v581 = vtanh.pop %v523
    %v583 = vrot.slane %v425, 7
    %v585 = vmul.f32 %v565, %v583
    %v586 = vmul.f32 %v550, %v581
    %v587 = vadd.f32 %v585, %v586
    %v588 = vtanh.pop %v587
    %v589 = vmul.f32 %v580, %v588
    %v591 = vrot.slane %v589, 1
    %593 = vmatpush.msra.mxu0 %v185
    %594 = vmatpush.msra.mxu0 %v181
    %595 = vmatpush.msra.mxu0 %v177
    %596 = vmatpush.msra.mxu0 %v173
    %597 = vmatpush.msra.mxu0 %v169
    %598 = vmatpush.msra.mxu0 %v165
    %599 = vmatpush.msra.mxu0 %v161
    %600 = vmatpush.msra.mxu0 %v157
    %601 = vmatpush.msra.mxu0 %v153
    %602 = vmatpush.msra.mxu0 %v149
    %603 = vmatpush.msra.mxu0 %v145
    %604 = vmatpush.msra.mxu0 %v141
    %605 = vmatpush.msra.mxu0 %v137
    %606 = vmatpush.msra.mxu0 %v133
    %607 = vmatpush.msra.mxu0 %v129
    %608 = vmatpush.msra.mxu0 %v125
    %609 = vmatmul.f32.gmra.mxu0 %v591
    %v610 = vpop.f32.mrf.mxu0
    %v611 = vadd.f32 0.0, %v610
    %612 = vdwg.mxu0
    %613 = vmatpush.msra.mxu0 %v186
    %614 = vmatpush.msra.mxu0 %v182
    %615 = vmatpush.msra.mxu0 %v178
    %616 = vmatpush.msra.mxu0 %v174
    %617 = vmatpush.msra.mxu0 %v170
    %618 = vmatpush.msra.mxu0 %v166
    %619 = vmatpush.msra.mxu0 %v162
    %620 = vmatpush.msra.mxu0 %v158
    %621 = vmatpush.msra.mxu0 %v154
    %622 = vmatpush.msra.mxu0 %v150
    %623 = vmatpush.msra.mxu0 %v146
    %624 = vmatpush.msra.mxu0 %v142
    %625 = vmatpush.msra.mxu0 %v138
    %626 = vmatpush.msra.mxu0 %v134
    %627 = vmatpush.msra.mxu0 %v130
    %628 = vmatpush.msra.mxu0 %v126
    %629 = vmatmul.f32.gmra.mxu0 %v591
    %v630 = vpop.f32.mrf.mxu0
    %v631 = vadd.f32 0.0, %v630
    %632 = vdwg.mxu0
    %633 = vmatpush.msra.mxu0 %v187
    %634 = vmatpush.msra.mxu0 %v183
    %635 = vmatpush.msra.mxu0 %v179
    %636 = vmatpush.msra.mxu0 %v175
    %637 = vmatpush.msra.mxu0 %v171
    %638 = vmatpush.msra.mxu0 %v167
    %639 = vmatpush.msra.mxu0 %v163
    %640 = vmatpush.msra.mxu0 %v159
    %641 = vmatpush.msra.mxu0 %v155
    %642 = vmatpush.msra.mxu0 %v151
    %643 = vmatpush.msra.mxu0 %v147
    %644 = vmatpush.msra.mxu0 %v143
    %645 = vmatpush.msra.mxu0 %v139
    %646 = vmatpush.msra.mxu0 %v135
    %647 = vmatpush.msra.mxu0 %v131
    %648 = vmatpush.msra.mxu0 %v127
    %649 = vmatmul.f32.gmra.mxu0 %v591
    %v650 = vpop.f32.mrf.mxu0
    %v651 = vadd.f32 0.0, %v650
    %652 = vdwg.mxu0
    %653 = vmatpush.msra.mxu0 %v188
    %654 = vmatpush.msra.mxu0 %v184
    %655 = vmatpush.msra.mxu0 %v180
    %656 = vmatpush.msra.mxu0 %v176
    %657 = vmatpush.msra.mxu0 %v172
    %658 = vmatpush.msra.mxu0 %v168
    %659 = vmatpush.msra.mxu0 %v164
    %660 = vmatpush.msra.mxu0 %v160
    %661 = vmatpush.msra.mxu0 %v156
    %662 = vmatpush.msra.mxu0 %v152
    %663 = vmatpush.msra.mxu0 %v148
    %664 = vmatpush.msra.mxu0 %v144
    %665 = vmatpush.msra.mxu0 %v140
    %666 = vmatpush.msra.mxu0 %v136
    %667 = vmatpush.msra.mxu0 %v132
    %668 = vmatpush.msra.mxu0 %v128
    %669 = vmatmul.f32.gmra.mxu0 %v591
    %v670 = vpop.f32.mrf.mxu0
    %v671 = vadd.f32 0.0, %v670
    %672 = vdwg.mxu0
    %v677 = vrot.slane %v611, 6
    %v678 = vrot.slane %v631, 6
    %v679 = vrot.slane %v651, 6
    %v680 = vrot.slane %v671, 6
    %v685 = vadd.f32 %v217, %v677
    %v686 = vadd.f32 %v237, %v678
    %v687 = vadd.f32 %v257, %v679
    %v688 = vadd.f32 %v277, %v680
    %v689 = vxor.u32 %v685, 2147483648
    %v690 = vxor.u32 %v686, 2147483648
    %v691 = vxor.u32 %v687, 2147483648
    %v692 = vmul.f32 %v689, 1.442695
    %v693 = vpow.pop %v692
    %v694 = vmul.f32 %v690, 1.442695
    %v695 = vpow.pop %v694
    %v696 = vmul.f32 %v691, 1.442695
    %v697 = vpow.pop %v696
    %v698 = vadd.f32 %v693, 1.0
    %v699 = vadd.f32 %v695, 1.0
    %v700 = vadd.f32 %v697, 1.0
    %v701 = vrcp.pop %v698
    %v702 = vmul.f32 %v698, %v701
    %v703 = vsub.f32 1.0, %v702
    %v704 = vmul.f32 %v701, %v703
    %v705 = vadd.f32 %v701, %v704
    %vm706 = vweird.f32 %v698
    %vm707 = vweird.f32 %v701
    %vm708 = vmor %vm706, %vm707
    %v709 = vsel %vm708, %v701, %v705
    %v710 = vand.u32 2147483647, %v698
    %vm711 = vcmp.eq.f32.partialorder %v710, 8.507059e+37
    %v712 = vand.u32 %v698, 2147483648
    %v713 = vor.u32 1.1754944e-38, %v712
    %v714 = vsel %vm711, %v713, %v709
    %v715 = vmul.f32 1.0, %v714
    %v716 = vrcp.pop %v699
    %v717 = vmul.f32 %v699, %v716
    %v718 = vsub.f32 1.0, %v717
    %v719 = vmul.f32 %v716, %v718
    %v720 = vadd.f32 %v716, %v719
    %vm721 = vweird.f32 %v699
    %vm722 = vweird.f32 %v716
    %vm723 = vmor %vm721, %vm722
    %v724 = vsel %vm723, %v716, %v720
    %v725 = vand.u32 2147483647, %v699
    %vm726 = vcmp.eq.f32.partialorder %v725, 8.507059e+37
    %v727 = vand.u32 %v699, 2147483648
    %v728 = vor.u32 1.1754944e-38, %v727
    %v729 = vsel %vm726, %v728, %v724
    %v730 = vmul.f32 1.0, %v729
    %v731 = vrcp.pop %v700
    %v732 = vmul.f32 %v700, %v731
    %v733 = vsub.f32 1.0, %v732
    %v734 = vmul.f32 %v731, %v733
    %v735 = vadd.f32 %v731, %v734
    %vm736 = vweird.f32 %v700
    %vm737 = vweird.f32 %v731
    %vm738 = vmor %vm736, %vm737
    %v739 = vsel %vm738, %v731, %v735
    %v740 = vand.u32 2147483647, %v700
    %vm741 = vcmp.eq.f32.partialorder %v740, 8.507059e+37
    %v742 = vand.u32 %v700, 2147483648
    %v743 = vor.u32 1.1754944e-38, %v742
    %v744 = vsel %vm741, %v743, %v739
    %v745 = vmul.f32 1.0, %v744
    %v746 = vtanh.pop %v688
    %v748 = vrot.slane %v587, 7
    %v750 = vmul.f32 %v730, %v748
    %v751 = vmul.f32 %v715, %v746
    %v752 = vadd.f32 %v750, %v751
    %v753 = vtanh.pop %v752
    %v754 = vmul.f32 %v745, %v753
    %v756 = vrot.slane %v754, 2
    %758 = vmatpush.msra.mxu0 %v185
    %759 = vmatpush.msra.mxu0 %v181
    %760 = vmatpush.msra.mxu0 %v177
    %761 = vmatpush.msra.mxu0 %v173
    %762 = vmatpush.msra.mxu0 %v169
    %763 = vmatpush.msra.mxu0 %v165
    %764 = vmatpush.msra.mxu0 %v161
    %765 = vmatpush.msra.mxu0 %v157
    %766 = vmatpush.msra.mxu0 %v153
    %767 = vmatpush.msra.mxu0 %v149
    %768 = vmatpush.msra.mxu0 %v145
    %769 = vmatpush.msra.mxu0 %v141
    %770 = vmatpush.msra.mxu0 %v137
    %771 = vmatpush.msra.mxu0 %v133
    %772 = vmatpush.msra.mxu0 %v129
    %773 = vmatpush.msra.mxu0 %v125
    %774 = vmatmul.f32.gmra.mxu0 %v756
    %v775 = vpop.f32.mrf.mxu0
    %v776 = vadd.f32 0.0, %v775
    %777 = vdwg.mxu0
    %778 = vmatpush.msra.mxu0 %v186
    %779 = vmatpush.msra.mxu0 %v182
    %780 = vmatpush.msra.mxu0 %v178
    %781 = vmatpush.msra.mxu0 %v174
    %782 = vmatpush.msra.mxu0 %v170
    %783 = vmatpush.msra.mxu0 %v166
    %784 = vmatpush.msra.mxu0 %v162
    %785 = vmatpush.msra.mxu0 %v158
    %786 = vmatpush.msra.mxu0 %v154
    %787 = vmatpush.msra.mxu0 %v150
    %788 = vmatpush.msra.mxu0 %v146
    %789 = vmatpush.msra.mxu0 %v142
    %790 = vmatpush.msra.mxu0 %v138
    %791 = vmatpush.msra.mxu0 %v134
    %792 = vmatpush.msra.mxu0 %v130
    %793 = vmatpush.msra.mxu0 %v126
    %794 = vmatmul.f32.gmra.mxu0 %v756
    %v795 = vpop.f32.mrf.mxu0
    %v796 = vadd.f32 0.0, %v795
    %797 = vdwg.mxu0
    %798 = vmatpush.msra.mxu0 %v187
    %799 = vmatpush.msra.mxu0 %v183
    %800 = vmatpush.msra.mxu0 %v179
    %801 = vmatpush.msra.mxu0 %v175
    %802 = vmatpush.msra.mxu0 %v171
    %803 = vmatpush.msra.mxu0 %v167
    %804 = vmatpush.msra.mxu0 %v163
    %805 = vmatpush.msra.mxu0 %v159
    %806 = vmatpush.msra.mxu0 %v155
    %807 = vmatpush.msra.mxu0 %v151
    %808 = vmatpush.msra.mxu0 %v147
    %809 = vmatpush.msra.mxu0 %v143
    %810 = vmatpush.msra.mxu0 %v139
    %811 = vmatpush.msra.mxu0 %v135
    %812 = vmatpush.msra.mxu0 %v131
    %813 = vmatpush.msra.mxu0 %v127
    %814 = vmatmul.f32.gmra.mxu0 %v756
    %v815 = vpop.f32.mrf.mxu0
    %v816 = vadd.f32 0.0, %v815
    %817 = vdwg.mxu0
    %818 = vmatpush.msra.mxu0 %v188
    %819 = vmatpush.msra.mxu0 %v184
    %820 = vmatpush.msra.mxu0 %v180
    %821 = vmatpush.msra.mxu0 %v176
    %822 = vmatpush.msra.mxu0 %v172
    %823 = vmatpush.msra.mxu0 %v168
    %824 = vmatpush.msra.mxu0 %v164
    %825 = vmatpush.msra.mxu0 %v160
    %826 = vmatpush.msra.mxu0 %v156
    %827 = vmatpush.msra.mxu0 %v152
    %828 = vmatpush.msra.mxu0 %v148
    %829 = vmatpush.msra.mxu0 %v144
    %830 = vmatpush.msra.mxu0 %v140
    %831 = vmatpush.msra.mxu0 %v136
    %832 = vmatpush.msra.mxu0 %v132
    %833 = vmatpush.msra.mxu0 %v128
    %834 = vmatmul.f32.gmra.mxu0 %v756
    %v835 = vpop.f32.mrf.mxu0
    %v836 = vadd.f32 0.0, %v835
    %837 = vdwg.mxu0
    %v842 = vrot.slane %v776, 5
    %v843 = vrot.slane %v796, 5
    %v844 = vrot.slane %v816, 5
    %v845 = vrot.slane %v836, 5
    %v850 = vadd.f32 %v217, %v842
    %v851 = vadd.f32 %v237, %v843
    %v852 = vadd.f32 %v257, %v844
    %v853 = vadd.f32 %v277, %v845
    %v854 = vxor.u32 %v850, 2147483648
    %v855 = vxor.u32 %v851, 2147483648
    %v856 = vxor.u32 %v852, 2147483648
    %v857 = vmul.f32 %v854, 1.442695
    %v858 = vpow.pop %v857
    %v859 = vmul.f32 %v855, 1.442695
    %v860 = vpow.pop %v859
    %v861 = vmul.f32 %v856, 1.442695
    %v862 = vpow.pop %v861
    %v863 = vadd.f32 %v858, 1.0
    %v864 = vadd.f32 %v860, 1.0
    %v865 = vadd.f32 %v862, 1.0
    %v866 = vrcp.pop %v863
    %v867 = vmul.f32 %v863, %v866
    %v868 = vsub.f32 1.0, %v867
    %v869 = vmul.f32 %v866, %v868
    %v870 = vadd.f32 %v866, %v869
    %vm871 = vweird.f32 %v863
    %vm872 = vweird.f32 %v866
    %vm873 = vmor %vm871, %vm872
    %v874 = vsel %vm873, %v866, %v870
    %v875 = vand.u32 2147483647, %v863
    %vm876 = vcmp.eq.f32.partialorder %v875, 8.507059e+37
    %v877 = vand.u32 %v863, 2147483648
    %v878 = vor.u32 1.1754944e-38, %v877
    %v879 = vsel %vm876, %v878, %v874
    %v880 = vmul.f32 1.0, %v879
    %v881 = vrcp.pop %v864
    %v882 = vmul.f32 %v864, %v881
    %v883 = vsub.f32 1.0, %v882
    %v884 = vmul.f32 %v881, %v883
    %v885 = vadd.f32 %v881, %v884
    %vm886 = vweird.f32 %v864
    %vm887 = vweird.f32 %v881
    %vm888 = vmor %vm886, %vm887
    %v889 = vsel %vm888, %v881, %v885
    %v890 = vand.u32 2147483647, %v864
    %vm891 = vcmp.eq.f32.partialorder %v890, 8.507059e+37
    %v892 = vand.u32 %v864, 2147483648
    %v893 = vor.u32 1.1754944e-38, %v892
    %v894 = vsel %vm891, %v893, %v889
    %v895 = vmul.f32 1.0, %v894
    %v896 = vrcp.pop %v865
    %v897 = vmul.f32 %v865, %v896
    %v898 = vsub.f32 1.0, %v897
    %v899 = vmul.f32 %v896, %v898
    %v900 = vadd.f32 %v896, %v899
    %vm901 = vweird.f32 %v865
    %vm902 = vweird.f32 %v896
    %vm903 = vmor %vm901, %vm902
    %v904 = vsel %vm903, %v896, %v900
    %v905 = vand.u32 2147483647, %v865
    %vm906 = vcmp.eq.f32.partialorder %v905, 8.507059e+37
    %v907 = vand.u32 %v865, 2147483648
    %v908 = vor.u32 1.1754944e-38, %v907
    %v909 = vsel %vm906, %v908, %v904
    %v910 = vmul.f32 1.0, %v909
    %v911 = vtanh.pop %v853
    %v913 = vrot.slane %v752, 7
    %v915 = vmul.f32 %v895, %v913
    %v916 = vmul.f32 %v880, %v911
    %v917 = vadd.f32 %v915, %v916
    %v918 = vtanh.pop %v917
    %v919 = vmul.f32 %v910, %v918
    %v921 = vrot.slane %v919, 3
    %923 = vmatpush.msra.mxu0 %v185
    %924 = vmatpush.msra.mxu0 %v181
    %925 = vmatpush.msra.mxu0 %v177
    %926 = vmatpush.msra.mxu0 %v173
    %927 = vmatpush.msra.mxu0 %v169
    %928 = vmatpush.msra.mxu0 %v165
    %929 = vmatpush.msra.mxu0 %v161
    %930 = vmatpush.msra.mxu0 %v157
    %931 = vmatpush.msra.mxu0 %v153
    %932 = vmatpush.msra.mxu0 %v149
    %933 = vmatpush.msra.mxu0 %v145
    %934 = vmatpush.msra.mxu0 %v141
    %935 = vmatpush.msra.mxu0 %v137
    %936 = vmatpush.msra.mxu0 %v133
    %937 = vmatpush.msra.mxu0 %v129
    %938 = vmatpush.msra.mxu0 %v125
    %939 = vmatmul.f32.gmra.mxu0 %v921
    %v940 = vpop.f32.mrf.mxu0
    %v941 = vadd.f32 0.0, %v940
    %942 = vdwg.mxu0
    %943 = vmatpush.msra.mxu0 %v186
    %944 = vmatpush.msra.mxu0 %v182
    %945 = vmatpush.msra.mxu0 %v178
    %946 = vmatpush.msra.mxu0 %v174
    %947 = vmatpush.msra.mxu0 %v170
    %948 = vmatpush.msra.mxu0 %v166
    %949 = vmatpush.msra.mxu0 %v162
    %950 = vmatpush.msra.mxu0 %v158
    %951 = vmatpush.msra.mxu0 %v154
    %952 = vmatpush.msra.mxu0 %v150
    %953 = vmatpush.msra.mxu0 %v146
    %954 = vmatpush.msra.mxu0 %v142
    %955 = vmatpush.msra.mxu0 %v138
    %956 = vmatpush.msra.mxu0 %v134
    %957 = vmatpush.msra.mxu0 %v130
    %958 = vmatpush.msra.mxu0 %v126
    %959 = vmatmul.f32.gmra.mxu0 %v921
    %v960 = vpop.f32.mrf.mxu0
    %v961 = vadd.f32 0.0, %v960
    %962 = vdwg.mxu0
    %963 = vmatpush.msra.mxu0 %v187
    %964 = vmatpush.msra.mxu0 %v183
    %965 = vmatpush.msra.mxu0 %v179
    %966 = vmatpush.msra.mxu0 %v175
    %967 = vmatpush.msra.mxu0 %v171
    %968 = vmatpush.msra.mxu0 %v167
    %969 = vmatpush.msra.mxu0 %v163
    %970 = vmatpush.msra.mxu0 %v159
    %971 = vmatpush.msra.mxu0 %v155
    %972 = vmatpush.msra.mxu0 %v151
    %973 = vmatpush.msra.mxu0 %v147
    %974 = vmatpush.msra.mxu0 %v143
    %975 = vmatpush.msra.mxu0 %v139
    %976 = vmatpush.msra.mxu0 %v135
    %977 = vmatpush.msra.mxu0 %v131
    %978 = vmatpush.msra.mxu0 %v127
    %979 = vmatmul.f32.gmra.mxu0 %v921
    %v980 = vpop.f32.mrf.mxu0
    %v981 = vadd.f32 0.0, %v980
    %982 = vdwg.mxu0
    %983 = vmatpush.msra.mxu0 %v188
    %984 = vmatpush.msra.mxu0 %v184
    %985 = vmatpush.msra.mxu0 %v180
    %986 = vmatpush.msra.mxu0 %v176
    %987 = vmatpush.msra.mxu0 %v172
    %988 = vmatpush.msra.mxu0 %v168
    %989 = vmatpush.msra.mxu0 %v164
    %990 = vmatpush.msra.mxu0 %v160
    %991 = vmatpush.msra.mxu0 %v156
    %992 = vmatpush.msra.mxu0 %v152
    %993 = vmatpush.msra.mxu0 %v148
    %994 = vmatpush.msra.mxu0 %v144
    %995 = vmatpush.msra.mxu0 %v140
    %996 = vmatpush.msra.mxu0 %v136
    %997 = vmatpush.msra.mxu0 %v132
    %998 = vmatpush.msra.mxu0 %v128
    %999 = vmatmul.f32.gmra.mxu0 %v921
    %v1000 = vpop.f32.mrf.mxu0
    %v1001 = vadd.f32 0.0, %v1000
    %1002 = vdwg.mxu0
    %v1007 = vrot.slane %v941, 4
    %v1008 = vrot.slane %v961, 4
    %v1009 = vrot.slane %v981, 4
    %v1010 = vrot.slane %v1001, 4
    %v1015 = vadd.f32 %v217, %v1007
    %v1016 = vadd.f32 %v237, %v1008
    %v1017 = vadd.f32 %v257, %v1009
    %v1018 = vadd.f32 %v277, %v1010
    %v1019 = vxor.u32 %v1015, 2147483648
    %v1020 = vxor.u32 %v1016, 2147483648
    %v1021 = vxor.u32 %v1017, 2147483648
    %v1022 = vmul.f32 %v1019, 1.442695
    %v1023 = vpow.pop %v1022
    %v1024 = vmul.f32 %v1020, 1.442695
    %v1025 = vpow.pop %v1024
    %v1026 = vmul.f32 %v1021, 1.442695
    %v1027 = vpow.pop %v1026
    %v1028 = vadd.f32 %v1023, 1.0
    %v1029 = vadd.f32 %v1025, 1.0
    %v1030 = vadd.f32 %v1027, 1.0
    %v1031 = vrcp.pop %v1028
    %v1032 = vmul.f32 %v1028, %v1031
    %v1033 = vsub.f32 1.0, %v1032
    %v1034 = vmul.f32 %v1031, %v1033
    %v1035 = vadd.f32 %v1031, %v1034
    %vm1036 = vweird.f32 %v1028
    %vm1037 = vweird.f32 %v1031
    %vm1038 = vmor %vm1036, %vm1037
    %v1039 = vsel %vm1038, %v1031, %v1035
    %v1040 = vand.u32 2147483647, %v1028
    %vm1041 = vcmp.eq.f32.partialorder %v1040, 8.507059e+37
    %v1042 = vand.u32 %v1028, 2147483648
    %v1043 = vor.u32 1.1754944e-38, %v1042
    %v1044 = vsel %vm1041, %v1043, %v1039
    %v1045 = vmul.f32 1.0, %v1044
    %v1046 = vrcp.pop %v1029
    %v1047 = vmul.f32 %v1029, %v1046
    %v1048 = vsub.f32 1.0, %v1047
    %v1049 = vmul.f32 %v1046, %v1048
    %v1050 = vadd.f32 %v1046, %v1049
    %vm1051 = vweird.f32 %v1029
    %vm1052 = vweird.f32 %v1046
    %vm1053 = vmor %vm1051, %vm1052
    %v1054 = vsel %vm1053, %v1046, %v1050
    %v1055 = vand.u32 2147483647, %v1029
    %vm1056 = vcmp.eq.f32.partialorder %v1055, 8.507059e+37
    %v1057 = vand.u32 %v1029, 2147483648
    %v1058 = vor.u32 1.1754944e-38, %v1057
    %v1059 = vsel %vm1056, %v1058, %v1054
    %v1060 = vmul.f32 1.0, %v1059
    %v1061 = vrcp.pop %v1030
    %v1062 = vmul.f32 %v1030, %v1061
    %v1063 = vsub.f32 1.0, %v1062
    %v1064 = vmul.f32 %v1061, %v1063
    %v1065 = vadd.f32 %v1061, %v1064
    %vm1066 = vweird.f32 %v1030
    %vm1067 = vweird.f32 %v1061
    %vm1068 = vmor %vm1066, %vm1067
    %v1069 = vsel %vm1068, %v1061, %v1065
    %v1070 = vand.u32 2147483647, %v1030
    %vm1071 = vcmp.eq.f32.partialorder %v1070, 8.507059e+37
    %v1072 = vand.u32 %v1030, 2147483648
    %v1073 = vor.u32 1.1754944e-38, %v1072
    %v1074 = vsel %vm1071, %v1073, %v1069
    %v1075 = vmul.f32 1.0, %v1074
    %v1076 = vtanh.pop %v1018
    %v1078 = vrot.slane %v917, 7
    %v1080 = vmul.f32 %v1060, %v1078
    %v1081 = vmul.f32 %v1045, %v1076
    %v1082 = vadd.f32 %v1080, %v1081
    %v1083 = vtanh.pop %v1082
    %v1084 = vmul.f32 %v1075, %v1083
    %v1086 = vrot.slane %v1084, 4
    %1088 = vmatpush.msra.mxu0 %v185
    %1089 = vmatpush.msra.mxu0 %v181
    %1090 = vmatpush.msra.mxu0 %v177
    %1091 = vmatpush.msra.mxu0 %v173
    %1092 = vmatpush.msra.mxu0 %v169
    %1093 = vmatpush.msra.mxu0 %v165
    %1094 = vmatpush.msra.mxu0 %v161
    %1095 = vmatpush.msra.mxu0 %v157
    %1096 = vmatpush.msra.mxu0 %v153
    %1097 = vmatpush.msra.mxu0 %v149
    %1098 = vmatpush.msra.mxu0 %v145
    %1099 = vmatpush.msra.mxu0 %v141
    %1100 = vmatpush.msra.mxu0 %v137
    %1101 = vmatpush.msra.mxu0 %v133
    %1102 = vmatpush.msra.mxu0 %v129
    %1103 = vmatpush.msra.mxu0 %v125
    %1104 = vmatmul.f32.gmra.mxu0 %v1086
    %v1105 = vpop.f32.mrf.mxu0
    %v1106 = vadd.f32 0.0, %v1105
    %1107 = vdwg.mxu0
    %1108 = vmatpush.msra.mxu0 %v186
    %1109 = vmatpush.msra.mxu0 %v182
    %1110 = vmatpush.msra.mxu0 %v178
    %1111 = vmatpush.msra.mxu0 %v174
    %1112 = vmatpush.msra.mxu0 %v170
    %1113 = vmatpush.msra.mxu0 %v166
    %1114 = vmatpush.msra.mxu0 %v162
    %1115 = vmatpush.msra.mxu0 %v158
    %1116 = vmatpush.msra.mxu0 %v154
    %1117 = vmatpush.msra.mxu0 %v150
    %1118 = vmatpush.msra.mxu0 %v146
    %1119 = vmatpush.msra.mxu0 %v142
    %1120 = vmatpush.msra.mxu0 %v138
    %1121 = vmatpush.msra.mxu0 %v134
    %1122 = vmatpush.msra.mxu0 %v130
    %1123 = vmatpush.msra.mxu0 %v126
    %1124 = vmatmul.f32.gmra.mxu0 %v1086
    %v1125 = vpop.f32.mrf.mxu0
    %v1126 = vadd.f32 0.0, %v1125
    %1127 = vdwg.mxu0
    %1128 = vmatpush.msra.mxu0 %v187
    %1129 = vmatpush.msra.mxu0 %v183
    %1130 = vmatpush.msra.mxu0 %v179
    %1131 = vmatpush.msra.mxu0 %v175
    %1132 = vmatpush.msra.mxu0 %v171
    %1133 = vmatpush.msra.mxu0 %v167
    %1134 = vmatpush.msra.mxu0 %v163
    %1135 = vmatpush.msra.mxu0 %v159
    %1136 = vmatpush.msra.mxu0 %v155
    %1137 = vmatpush.msra.mxu0 %v151
    %1138 = vmatpush.msra.mxu0 %v147
    %1139 = vmatpush.msra.mxu0 %v143
    %1140 = vmatpush.msra.mxu0 %v139
    %1141 = vmatpush.msra.mxu0 %v135
    %1142 = vmatpush.msra.mxu0 %v131
    %1143 = vmatpush.msra.mxu0 %v127
    %1144 = vmatmul.f32.gmra.mxu0 %v1086
    %v1145 = vpop.f32.mrf.mxu0
    %v1146 = vadd.f32 0.0, %v1145
    %1147 = vdwg.mxu0
    %1148 = vmatpush.msra.mxu0 %v188
    %1149 = vmatpush.msra.mxu0 %v184
    %1150 = vmatpush.msra.mxu0 %v180
    %1151 = vmatpush.msra.mxu0 %v176
    %1152 = vmatpush.msra.mxu0 %v172
    %1153 = vmatpush.msra.mxu0 %v168
    %1154 = vmatpush.msra.mxu0 %v164
    %1155 = vmatpush.msra.mxu0 %v160
    %1156 = vmatpush.msra.mxu0 %v156
    %1157 = vmatpush.msra.mxu0 %v152
    %1158 = vmatpush.msra.mxu0 %v148
    %1159 = vmatpush.msra.mxu0 %v144
    %1160 = vmatpush.msra.mxu0 %v140
    %1161 = vmatpush.msra.mxu0 %v136
    %1162 = vmatpush.msra.mxu0 %v132
    %1163 = vmatpush.msra.mxu0 %v128
    %1164 = vmatmul.f32.gmra.mxu0 %v1086
    %v1165 = vpop.f32.mrf.mxu0
    %v1166 = vadd.f32 0.0, %v1165
    %1167 = vdwg.mxu0
    %v1172 = vrot.slane %v1106, 3
    %v1173 = vrot.slane %v1126, 3
    %v1174 = vrot.slane %v1146, 3
    %v1175 = vrot.slane %v1166, 3
    %v1180 = vadd.f32 %v217, %v1172
    %v1181 = vadd.f32 %v237, %v1173
    %v1182 = vadd.f32 %v257, %v1174
    %v1183 = vadd.f32 %v277, %v1175
    %v1184 = vxor.u32 %v1180, 2147483648
    %v1185 = vxor.u32 %v1181, 2147483648
    %v1186 = vxor.u32 %v1182, 2147483648
    %v1187 = vmul.f32 %v1184, 1.442695
    %v1188 = vpow.pop %v1187
    %v1189 = vmul.f32 %v1185, 1.442695
    %v1190 = vpow.pop %v1189
    %v1191 = vmul.f32 %v1186, 1.442695
    %v1192 = vpow.pop %v1191
    %v1193 = vadd.f32 %v1188, 1.0
    %v1194 = vadd.f32 %v1190, 1.0
    %v1195 = vadd.f32 %v1192, 1.0
    %v1196 = vrcp.pop %v1193
    %v1197 = vmul.f32 %v1193, %v1196
    %v1198 = vsub.f32 1.0, %v1197
    %v1199 = vmul.f32 %v1196, %v1198
    %v1200 = vadd.f32 %v1196, %v1199
    %vm1201 = vweird.f32 %v1193
    %vm1202 = vweird.f32 %v1196
    %vm1203 = vmor %vm1201, %vm1202
    %v1204 = vsel %vm1203, %v1196, %v1200
    %v1205 = vand.u32 2147483647, %v1193
    %vm1206 = vcmp.eq.f32.partialorder %v1205, 8.507059e+37
    %v1207 = vand.u32 %v1193, 2147483648
    %v1208 = vor.u32 1.1754944e-38, %v1207
    %v1209 = vsel %vm1206, %v1208, %v1204
    %v1210 = vmul.f32 1.0, %v1209
    %v1211 = vrcp.pop %v1194
    %v1212 = vmul.f32 %v1194, %v1211
    %v1213 = vsub.f32 1.0, %v1212
    %v1214 = vmul.f32 %v1211, %v1213
    %v1215 = vadd.f32 %v1211, %v1214
    %vm1216 = vweird.f32 %v1194
    %vm1217 = vweird.f32 %v1211
    %vm1218 = vmor %vm1216, %vm1217
    %v1219 = vsel %vm1218, %v1211, %v1215
    %v1220 = vand.u32 2147483647, %v1194
    %vm1221 = vcmp.eq.f32.partialorder %v1220, 8.507059e+37
    %v1222 = vand.u32 %v1194, 2147483648
    %v1223 = vor.u32 1.1754944e-38, %v1222
    %v1224 = vsel %vm1221, %v1223, %v1219
    %v1225 = vmul.f32 1.0, %v1224
    %v1226 = vrcp.pop %v1195
    %v1227 = vmul.f32 %v1195, %v1226
    %v1228 = vsub.f32 1.0, %v1227
    %v1229 = vmul.f32 %v1226, %v1228
    %v1230 = vadd.f32 %v1226, %v1229
    %vm1231 = vweird.f32 %v1195
    %vm1232 = vweird.f32 %v1226
    %vm1233 = vmor %vm1231, %vm1232
    %v1234 = vsel %vm1233, %v1226, %v1230
    %v1235 = vand.u32 2147483647, %v1195
    %vm1236 = vcmp.eq.f32.partialorder %v1235, 8.507059e+37
    %v1237 = vand.u32 %v1195, 2147483648
    %v1238 = vor.u32 1.1754944e-38, %v1237
    %v1239 = vsel %vm1236, %v1238, %v1234
    %v1240 = vmul.f32 1.0, %v1239
    %v1241 = vtanh.pop %v1183
    %v1243 = vrot.slane %v1082, 7
    %v1245 = vmul.f32 %v1225, %v1243
    %v1246 = vmul.f32 %v1210, %v1241
    %v1247 = vadd.f32 %v1245, %v1246
    %v1248 = vtanh.pop %v1247
    %v1249 = vmul.f32 %v1240, %v1248
    %v1251 = vrot.slane %v1249, 5
    %1253 = vmatpush.msra.mxu0 %v185
    %1254 = vmatpush.msra.mxu0 %v181
    %1255 = vmatpush.msra.mxu0 %v177
    %1256 = vmatpush.msra.mxu0 %v173
    %1257 = vmatpush.msra.mxu0 %v169
    %1258 = vmatpush.msra.mxu0 %v165
    %1259 = vmatpush.msra.mxu0 %v161
    %1260 = vmatpush.msra.mxu0 %v157
    %1261 = vmatpush.msra.mxu0 %v153
    %1262 = vmatpush.msra.mxu0 %v149
    %1263 = vmatpush.msra.mxu0 %v145
    %1264 = vmatpush.msra.mxu0 %v141
    %1265 = vmatpush.msra.mxu0 %v137
    %1266 = vmatpush.msra.mxu0 %v133
    %1267 = vmatpush.msra.mxu0 %v129
    %1268 = vmatpush.msra.mxu0 %v125
    %1269 = vmatmul.f32.gmra.mxu0 %v1251
    %v1270 = vpop.f32.mrf.mxu0
    %v1271 = vadd.f32 0.0, %v1270
    %1272 = vdwg.mxu0
    %1273 = vmatpush.msra.mxu0 %v186
    %1274 = vmatpush.msra.mxu0 %v182
    %1275 = vmatpush.msra.mxu0 %v178
    %1276 = vmatpush.msra.mxu0 %v174
    %1277 = vmatpush.msra.mxu0 %v170
    %1278 = vmatpush.msra.mxu0 %v166
    %1279 = vmatpush.msra.mxu0 %v162
    %1280 = vmatpush.msra.mxu0 %v158
    %1281 = vmatpush.msra.mxu0 %v154
    %1282 = vmatpush.msra.mxu0 %v150
    %1283 = vmatpush.msra.mxu0 %v146
    %1284 = vmatpush.msra.mxu0 %v142
    %1285 = vmatpush.msra.mxu0 %v138
    %1286 = vmatpush.msra.mxu0 %v134
    %1287 = vmatpush.msra.mxu0 %v130
    %1288 = vmatpush.msra.mxu0 %v126
    %1289 = vmatmul.f32.gmra.mxu0 %v1251
    %v1290 = vpop.f32.mrf.mxu0
    %v1291 = vadd.f32 0.0, %v1290
    %1292 = vdwg.mxu0
    %1293 = vmatpush.msra.mxu0 %v187
    %1294 = vmatpush.msra.mxu0 %v183
    %1295 = vmatpush.msra.mxu0 %v179
    %1296 = vmatpush.msra.mxu0 %v175
    %1297 = vmatpush.msra.mxu0 %v171
    %1298 = vmatpush.msra.mxu0 %v167
    %1299 = vmatpush.msra.mxu0 %v163
    %1300 = vmatpush.msra.mxu0 %v159
    %1301 = vmatpush.msra.mxu0 %v155
    %1302 = vmatpush.msra.mxu0 %v151
    %1303 = vmatpush.msra.mxu0 %v147
    %1304 = vmatpush.msra.mxu0 %v143
    %1305 = vmatpush.msra.mxu0 %v139
    %1306 = vmatpush.msra.mxu0 %v135
    %1307 = vmatpush.msra.mxu0 %v131
    %1308 = vmatpush.msra.mxu0 %v127
    %1309 = vmatmul.f32.gmra.mxu0 %v1251
    %v1310 = vpop.f32.mrf.mxu0
    %v1311 = vadd.f32 0.0, %v1310
    %1312 = vdwg.mxu0
    %1313 = vmatpush.msra.mxu0 %v188
    %1314 = vmatpush.msra.mxu0 %v184
    %1315 = vmatpush.msra.mxu0 %v180
    %1316 = vmatpush.msra.mxu0 %v176
    %1317 = vmatpush.msra.mxu0 %v172
    %1318 = vmatpush.msra.mxu0 %v168
    %1319 = vmatpush.msra.mxu0 %v164
    %1320 = vmatpush.msra.mxu0 %v160
    %1321 = vmatpush.msra.mxu0 %v156
    %1322 = vmatpush.msra.mxu0 %v152
    %1323 = vmatpush.msra.mxu0 %v148
    %1324 = vmatpush.msra.mxu0 %v144
    %1325 = vmatpush.msra.mxu0 %v140
    %1326 = vmatpush.msra.mxu0 %v136
    %1327 = vmatpush.msra.mxu0 %v132
    %1328 = vmatpush.msra.mxu0 %v128
    %1329 = vmatmul.f32.gmra.mxu0 %v1251
    %v1330 = vpop.f32.mrf.mxu0
    %v1331 = vadd.f32 0.0, %v1330
    %1332 = vdwg.mxu0
    %v1337 = vrot.slane %v1271, 2
    %v1338 = vrot.slane %v1291, 2
    %v1339 = vrot.slane %v1311, 2
    %v1340 = vrot.slane %v1331, 2
    %v1345 = vadd.f32 %v217, %v1337
    %v1346 = vadd.f32 %v237, %v1338
    %v1347 = vadd.f32 %v257, %v1339
    %v1348 = vadd.f32 %v277, %v1340
    %v1349 = vxor.u32 %v1345, 2147483648
    %v1350 = vxor.u32 %v1346, 2147483648
    %v1351 = vxor.u32 %v1347, 2147483648
    %v1352 = vmul.f32 %v1349, 1.442695
    %v1353 = vpow.pop %v1352
    %v1354 = vmul.f32 %v1350, 1.442695
    %v1355 = vpow.pop %v1354
    %v1356 = vmul.f32 %v1351, 1.442695
    %v1357 = vpow.pop %v1356
    %v1358 = vadd.f32 %v1353, 1.0
    %v1359 = vadd.f32 %v1355, 1.0
    %v1360 = vadd.f32 %v1357, 1.0
    %v1361 = vrcp.pop %v1358
    %v1362 = vmul.f32 %v1358, %v1361
    %v1363 = vsub.f32 1.0, %v1362
    %v1364 = vmul.f32 %v1361, %v1363
    %v1365 = vadd.f32 %v1361, %v1364
    %vm1366 = vweird.f32 %v1358
    %vm1367 = vweird.f32 %v1361
    %vm1368 = vmor %vm1366, %vm1367
    %v1369 = vsel %vm1368, %v1361, %v1365
    %v1370 = vand.u32 2147483647, %v1358
    %vm1371 = vcmp.eq.f32.partialorder %v1370, 8.507059e+37
    %v1372 = vand.u32 %v1358, 2147483648
    %v1373 = vor.u32 1.1754944e-38, %v1372
    %v1374 = vsel %vm1371, %v1373, %v1369
    %v1375 = vmul.f32 1.0, %v1374
    %v1376 = vrcp.pop %v1359
    %v1377 = vmul.f32 %v1359, %v1376
    %v1378 = vsub.f32 1.0, %v1377
    %v1379 = vmul.f32 %v1376, %v1378
    %v1380 = vadd.f32 %v1376, %v1379
    %vm1381 = vweird.f32 %v1359
    %vm1382 = vweird.f32 %v1376
    %vm1383 = vmor %vm1381, %vm1382
    %v1384 = vsel %vm1383, %v1376, %v1380
    %v1385 = vand.u32 2147483647, %v1359
    %vm1386 = vcmp.eq.f32.partialorder %v1385, 8.507059e+37
    %v1387 = vand.u32 %v1359, 2147483648
    %v1388 = vor.u32 1.1754944e-38, %v1387
    %v1389 = vsel %vm1386, %v1388, %v1384
    %v1390 = vmul.f32 1.0, %v1389
    %v1391 = vrcp.pop %v1360
    %v1392 = vmul.f32 %v1360, %v1391
    %v1393 = vsub.f32 1.0, %v1392
    %v1394 = vmul.f32 %v1391, %v1393
    %v1395 = vadd.f32 %v1391, %v1394
    %vm1396 = vweird.f32 %v1360
    %vm1397 = vweird.f32 %v1391
    %vm1398 = vmor %vm1396, %vm1397
    %v1399 = vsel %vm1398, %v1391, %v1395
    %v1400 = vand.u32 2147483647, %v1360
    %vm1401 = vcmp.eq.f32.partialorder %v1400, 8.507059e+37
    %v1402 = vand.u32 %v1360, 2147483648
    %v1403 = vor.u32 1.1754944e-38, %v1402
    %v1404 = vsel %vm1401, %v1403, %v1399
    %v1405 = vmul.f32 1.0, %v1404
    %v1406 = vtanh.pop %v1348
    %v1408 = vrot.slane %v1247, 7
    %v1410 = vmul.f32 %v1390, %v1408
    %v1411 = vmul.f32 %v1375, %v1406
    %v1412 = vadd.f32 %v1410, %v1411
    %v1413 = vtanh.pop %v1412
    %v1414 = vmul.f32 %v1405, %v1413
    %v1416 = vrot.slane %v1414, 6
    %1418 = vmatpush.msra.mxu0 %v185
    %1419 = vmatpush.msra.mxu0 %v181
    %1420 = vmatpush.msra.mxu0 %v177
    %1421 = vmatpush.msra.mxu0 %v173
    %1422 = vmatpush.msra.mxu0 %v169
    %1423 = vmatpush.msra.mxu0 %v165
    %1424 = vmatpush.msra.mxu0 %v161
    %1425 = vmatpush.msra.mxu0 %v157
    %1426 = vmatpush.msra.mxu0 %v153
    %1427 = vmatpush.msra.mxu0 %v149
    %1428 = vmatpush.msra.mxu0 %v145
    %1429 = vmatpush.msra.mxu0 %v141
    %1430 = vmatpush.msra.mxu0 %v137
    %1431 = vmatpush.msra.mxu0 %v133
    %1432 = vmatpush.msra.mxu0 %v129
    %1433 = vmatpush.msra.mxu0 %v125
    %1434 = vmatmul.f32.gmra.mxu0 %v1416
    %v1435 = vpop.f32.mrf.mxu0
    %v1436 = vadd.f32 0.0, %v1435
    %1437 = vdwg.mxu0
    %1438 = vmatpush.msra.mxu0 %v186
    %1439 = vmatpush.msra.mxu0 %v182
    %1440 = vmatpush.msra.mxu0 %v178
    %1441 = vmatpush.msra.mxu0 %v174
    %1442 = vmatpush.msra.mxu0 %v170
    %1443 = vmatpush.msra.mxu0 %v166
    %1444 = vmatpush.msra.mxu0 %v162
    %1445 = vmatpush.msra.mxu0 %v158
    %1446 = vmatpush.msra.mxu0 %v154
    %1447 = vmatpush.msra.mxu0 %v150
    %1448 = vmatpush.msra.mxu0 %v146
    %1449 = vmatpush.msra.mxu0 %v142
    %1450 = vmatpush.msra.mxu0 %v138
    %1451 = vmatpush.msra.mxu0 %v134
    %1452 = vmatpush.msra.mxu0 %v130
    %1453 = vmatpush.msra.mxu0 %v126
    %1454 = vmatmul.f32.gmra.mxu0 %v1416
    %v1455 = vpop.f32.mrf.mxu0
    %v1456 = vadd.f32 0.0, %v1455
    %1457 = vdwg.mxu0
    %1458 = vmatpush.msra.mxu0 %v187
    %1459 = vmatpush.msra.mxu0 %v183
    %1460 = vmatpush.msra.mxu0 %v179
    %1461 = vmatpush.msra.mxu0 %v175
    %1462 = vmatpush.msra.mxu0 %v171
    %1463 = vmatpush.msra.mxu0 %v167
    %1464 = vmatpush.msra.mxu0 %v163
    %1465 = vmatpush.msra.mxu0 %v159
    %1466 = vmatpush.msra.mxu0 %v155
    %1467 = vmatpush.msra.mxu0 %v151
    %1468 = vmatpush.msra.mxu0 %v147
    %1469 = vmatpush.msra.mxu0 %v143
    %1470 = vmatpush.msra.mxu0 %v139
    %1471 = vmatpush.msra.mxu0 %v135
    %1472 = vmatpush.msra.mxu0 %v131
    %1473 = vmatpush.msra.mxu0 %v127
    %1474 = vmatmul.f32.gmra.mxu0 %v1416
    %v1475 = vpop.f32.mrf.mxu0
    %v1476 = vadd.f32 0.0, %v1475
    %1477 = vdwg.mxu0
    %1478 = vmatpush.msra.mxu0 %v188
    %1479 = vmatpush.msra.mxu0 %v184
    %1480 = vmatpush.msra.mxu0 %v180
    %1481 = vmatpush.msra.mxu0 %v176
    %1482 = vmatpush.msra.mxu0 %v172
    %1483 = vmatpush.msra.mxu0 %v168
    %1484 = vmatpush.msra.mxu0 %v164
    %1485 = vmatpush.msra.mxu0 %v160
    %1486 = vmatpush.msra.mxu0 %v156
    %1487 = vmatpush.msra.mxu0 %v152
    %1488 = vmatpush.msra.mxu0 %v148
    %1489 = vmatpush.msra.mxu0 %v144
    %1490 = vmatpush.msra.mxu0 %v140
    %1491 = vmatpush.msra.mxu0 %v136
    %1492 = vmatpush.msra.mxu0 %v132
    %1493 = vmatpush.msra.mxu0 %v128
    %1494 = vmatmul.f32.gmra.mxu0 %v1416
    %v1495 = vpop.f32.mrf.mxu0
    %v1496 = vadd.f32 0.0, %v1495
    %1497 = vdwg.mxu0
    %v1502 = vrot.slane %v1436, 1
    %v1503 = vrot.slane %v1456, 1
    %v1504 = vrot.slane %v1476, 1
    %v1505 = vrot.slane %v1496, 1
    %v1510 = vadd.f32 %v217, %v1502
    %v1511 = vadd.f32 %v237, %v1503
    %v1512 = vadd.f32 %v257, %v1504
    %v1513 = vadd.f32 %v277, %v1505
    %v1514 = vxor.u32 %v1510, 2147483648
    %v1515 = vxor.u32 %v1511, 2147483648
    %v1516 = vxor.u32 %v1512, 2147483648
    %v1517 = vmul.f32 %v1514, 1.442695
    %v1518 = vpow.pop %v1517
    %v1519 = vmul.f32 %v1515, 1.442695
    %v1520 = vpow.pop %v1519
    %v1521 = vmul.f32 %v1516, 1.442695
    %v1522 = vpow.pop %v1521
    %v1523 = vadd.f32 %v1518, 1.0
    %v1524 = vadd.f32 %v1520, 1.0
    %v1525 = vadd.f32 %v1522, 1.0
    %v1526 = vrcp.pop %v1523
    %v1527 = vmul.f32 %v1523, %v1526
    %v1528 = vsub.f32 1.0, %v1527
    %v1529 = vmul.f32 %v1526, %v1528
    %v1530 = vadd.f32 %v1526, %v1529
    %vm1531 = vweird.f32 %v1523
    %vm1532 = vweird.f32 %v1526
    %vm1533 = vmor %vm1531, %vm1532
    %v1534 = vsel %vm1533, %v1526, %v1530
    %v1535 = vand.u32 2147483647, %v1523
    %vm1536 = vcmp.eq.f32.partialorder %v1535, 8.507059e+37
    %v1537 = vand.u32 %v1523, 2147483648
    %v1538 = vor.u32 1.1754944e-38, %v1537
    %v1539 = vsel %vm1536, %v1538, %v1534
    %v1540 = vmul.f32 1.0, %v1539
    %v1541 = vrcp.pop %v1524
    %v1542 = vmul.f32 %v1524, %v1541
    %v1543 = vsub.f32 1.0, %v1542
    %v1544 = vmul.f32 %v1541, %v1543
    %v1545 = vadd.f32 %v1541, %v1544
    %vm1546 = vweird.f32 %v1524
    %vm1547 = vweird.f32 %v1541
    %vm1548 = vmor %vm1546, %vm1547
    %v1549 = vsel %vm1548, %v1541, %v1545
    %v1550 = vand.u32 2147483647, %v1524
    %vm1551 = vcmp.eq.f32.partialorder %v1550, 8.507059e+37
    %v1552 = vand.u32 %v1524, 2147483648
    %v1553 = vor.u32 1.1754944e-38, %v1552
    %v1554 = vsel %vm1551, %v1553, %v1549
    %v1555 = vmul.f32 1.0, %v1554
    %v1556 = vrcp.pop %v1525
    %v1557 = vmul.f32 %v1525, %v1556
    %v1558 = vsub.f32 1.0, %v1557
    %v1559 = vmul.f32 %v1556, %v1558
    %v1560 = vadd.f32 %v1556, %v1559
    %vm1561 = vweird.f32 %v1525
    %vm1562 = vweird.f32 %v1556
    %vm1563 = vmor %vm1561, %vm1562
    %v1564 = vsel %vm1563, %v1556, %v1560
    %v1565 = vand.u32 2147483647, %v1525
    %vm1566 = vcmp.eq.f32.partialorder %v1565, 8.507059e+37
    %v1567 = vand.u32 %v1525, 2147483648
    %v1568 = vor.u32 1.1754944e-38, %v1567
    %v1569 = vsel %vm1566, %v1568, %v1564
    %v1570 = vmul.f32 1.0, %v1569
    %v1571 = vtanh.pop %v1513
    %v1573 = vrot.slane %v1412, 7
    %v1575 = vmul.f32 %v1555, %v1573
    %v1576 = vmul.f32 %v1540, %v1571
    %v1577 = vadd.f32 %v1575, %v1576
    %v1578 = vtanh.pop %v1577
    %v1579 = vmul.f32 %v1570, %v1578
    %vm1580 = vcmask 1040384
    %v1581 = vsel %vm1580, %v427, %v589
    %vm1582 = vcmask 1041408
    %v1583 = vsel %vm1582, %v1581, %v754
    %vm1584 = vcmask 1042432
    %v1585 = vsel %vm1584, %v1583, %v919
    %vm1586 = vcmask 1043456
    %v1587 = vsel %vm1586, %v1585, %v1084
    %vm1588 = vcmask 1044480
    %v1589 = vsel %vm1588, %v1587, %v1249
    %vm1590 = vcmask 1045504
    %v1591 = vsel %vm1590, %v1589, %v1414
    %vm1592 = vcmask 1046528
    %v1593 = vsel %vm1592, %v1591, %v1579
    %s1594 = scalar_lea.vmem [#allocation2], 512
    %v1595 = vld [vmem:[%s1594] sm:$0xff]
    %v1596 = vld [vmem:[%s1594 + $0x8] sm:$0xff]
    %v1597 = vld [vmem:[%s1594 + $0x10] sm:$0xff]
    %v1598 = vld [vmem:[%s1594 + $0x18] sm:$0xff]
    %v1599 = vld [vmem:[%s1594 + $0x20] sm:$0xff]
    %v1600 = vld [vmem:[%s1594 + $0x28] sm:$0xff]
    %v1601 = vld [vmem:[%s1594 + $0x30] sm:$0xff]
    %v1602 = vld [vmem:[%s1594 + $0x38] sm:$0xff]
    %v1603 = vld [vmem:[%s1594 + $0x40] sm:$0xff]
    %v1604 = vld [vmem:[%s1594 + $0x48] sm:$0xff]
    %v1605 = vld [vmem:[%s1594 + $0x50] sm:$0xff]
    %v1606 = vld [vmem:[%s1594 + $0x58] sm:$0xff]
    %v1607 = vld [vmem:[%s1594 + $0x60] sm:$0xff]
    %v1608 = vld [vmem:[%s1594 + $0x68] sm:$0xff]
    %v1609 = vld [vmem:[%s1594 + $0x70] sm:$0xff]
    %v1610 = vld [vmem:[%s1594 + $0x78] sm:$0xff]
    %v1611 = vld [vmem:[%s1594 + $0x80] sm:$0xff]
    %v1612 = vld [vmem:[%s1594 + $0x88] sm:$0xff]
    %v1613 = vld [vmem:[%s1594 + $0x90] sm:$0xff]
    %v1614 = vld [vmem:[%s1594 + $0x98] sm:$0xff]
    %v1615 = vld [vmem:[%s1594 + $0xa0] sm:$0xff]
    %v1616 = vld [vmem:[%s1594 + $0xa8] sm:$0xff]
    %v1617 = vld [vmem:[%s1594 + $0xb0] sm:$0xff]
    %v1618 = vld [vmem:[%s1594 + $0xb8] sm:$0xff]
    %v1619 = vld [vmem:[%s1594 + $0xc0] sm:$0xff]
    %v1620 = vld [vmem:[%s1594 + $0xc8] sm:$0xff]
    %v1621 = vld [vmem:[%s1594 + $0xd0] sm:$0xff]
    %v1622 = vld [vmem:[%s1594 + $0xd8] sm:$0xff]
    %v1623 = vld [vmem:[%s1594 + $0xe0] sm:$0xff]
    %v1624 = vld [vmem:[%s1594 + $0xe8] sm:$0xff]
    %v1625 = vld [vmem:[%s1594 + $0xf0] sm:$0xff]
    %v1626 = vld [vmem:[%s1594 + $0xf8] sm:$0xff]
    %v1627 = vld [vmem:[%s1594 + $0x100] sm:$0xff]
    %v1628 = vld [vmem:[%s1594 + $0x108] sm:$0xff]
    %v1629 = vld [vmem:[%s1594 + $0x110] sm:$0xff]
    %v1630 = vld [vmem:[%s1594 + $0x118] sm:$0xff]
    %v1631 = vld [vmem:[%s1594 + $0x120] sm:$0xff]
    %v1632 = vld [vmem:[%s1594 + $0x128] sm:$0xff]
    %v1633 = vld [vmem:[%s1594 + $0x130] sm:$0xff]
    %v1634 = vld [vmem:[%s1594 + $0x138] sm:$0xff]
    %v1635 = vld [vmem:[%s1594 + $0x140] sm:$0xff]
    %v1636 = vld [vmem:[%s1594 + $0x148] sm:$0xff]
    %v1637 = vld [vmem:[%s1594 + $0x150] sm:$0xff]
    %v1638 = vld [vmem:[%s1594 + $0x158] sm:$0xff]
    %v1639 = vld [vmem:[%s1594 + $0x160] sm:$0xff]
    %v1640 = vld [vmem:[%s1594 + $0x168] sm:$0xff]
    %v1641 = vld [vmem:[%s1594 + $0x170] sm:$0xff]
    %v1642 = vld [vmem:[%s1594 + $0x178] sm:$0xff]
    %v1643 = vld [vmem:[%s1594 + $0x180] sm:$0xff]
    %v1644 = vld [vmem:[%s1594 + $0x188] sm:$0xff]
    %v1645 = vld [vmem:[%s1594 + $0x190] sm:$0xff]
    %v1646 = vld [vmem:[%s1594 + $0x198] sm:$0xff]
    %v1647 = vld [vmem:[%s1594 + $0x1a0] sm:$0xff]
    %v1648 = vld [vmem:[%s1594 + $0x1a8] sm:$0xff]
    %v1649 = vld [vmem:[%s1594 + $0x1b0] sm:$0xff]
    %v1650 = vld [vmem:[%s1594 + $0x1b8] sm:$0xff]
    %v1651 = vld [vmem:[%s1594 + $0x1c0] sm:$0xff]
    %v1652 = vld [vmem:[%s1594 + $0x1c8] sm:$0xff]
    %v1653 = vld [vmem:[%s1594 + $0x1d0] sm:$0xff]
    %v1654 = vld [vmem:[%s1594 + $0x1d8] sm:$0xff]
    %v1655 = vld [vmem:[%s1594 + $0x1e0] sm:$0xff]
    %v1656 = vld [vmem:[%s1594 + $0x1e8] sm:$0xff]
    %v1657 = vld [vmem:[%s1594 + $0x1f0] sm:$0xff]
    %v1658 = vld [vmem:[%s1594 + $0x1f8] sm:$0xff]
    %s1659 = scalar_lea.vmem [#allocation5], 512
    %v1660 = vld [vmem:[%s1659] sm:$0xff]
    %v1661 = vld [vmem:[%s1659 + $0x8] sm:$0xff]
    %v1662 = vld [vmem:[%s1659 + $0x10] sm:$0xff]
    %v1663 = vld [vmem:[%s1659 + $0x18] sm:$0xff]
    %v1664 = vld [vmem:[%s1659 + $0x20] sm:$0xff]
    %v1665 = vld [vmem:[%s1659 + $0x28] sm:$0xff]
    %v1666 = vld [vmem:[%s1659 + $0x30] sm:$0xff]
    %v1667 = vld [vmem:[%s1659 + $0x38] sm:$0xff]
    %v1668 = vld [vmem:[%s1659 + $0x40] sm:$0xff]
    %v1669 = vld [vmem:[%s1659 + $0x48] sm:$0xff]
    %v1670 = vld [vmem:[%s1659 + $0x50] sm:$0xff]
    %v1671 = vld [vmem:[%s1659 + $0x58] sm:$0xff]
    %v1672 = vld [vmem:[%s1659 + $0x60] sm:$0xff]
    %v1673 = vld [vmem:[%s1659 + $0x68] sm:$0xff]
    %v1674 = vld [vmem:[%s1659 + $0x70] sm:$0xff]
    %v1675 = vld [vmem:[%s1659 + $0x78] sm:$0xff]
    %v1676 = vld [vmem:[%s1659 + $0x80] sm:$0xff]
    %v1677 = vld [vmem:[%s1659 + $0x88] sm:$0xff]
    %v1678 = vld [vmem:[%s1659 + $0x90] sm:$0xff]
    %v1679 = vld [vmem:[%s1659 + $0x98] sm:$0xff]
    %v1680 = vld [vmem:[%s1659 + $0xa0] sm:$0xff]
    %v1681 = vld [vmem:[%s1659 + $0xa8] sm:$0xff]
    %v1682 = vld [vmem:[%s1659 + $0xb0] sm:$0xff]
    %v1683 = vld [vmem:[%s1659 + $0xb8] sm:$0xff]
    %v1684 = vld [vmem:[%s1659 + $0xc0] sm:$0xff]
    %v1685 = vld [vmem:[%s1659 + $0xc8] sm:$0xff]
    %v1686 = vld [vmem:[%s1659 + $0xd0] sm:$0xff]
    %v1687 = vld [vmem:[%s1659 + $0xd8] sm:$0xff]
    %v1688 = vld [vmem:[%s1659 + $0xe0] sm:$0xff]
    %v1689 = vld [vmem:[%s1659 + $0xe8] sm:$0xff]
    %v1690 = vld [vmem:[%s1659 + $0xf0] sm:$0xff]
    %v1691 = vld [vmem:[%s1659 + $0xf8] sm:$0xff]
    %v1692 = vld [vmem:[%s1659 + $0x100] sm:$0xff]
    %v1693 = vld [vmem:[%s1659 + $0x108] sm:$0xff]
    %v1694 = vld [vmem:[%s1659 + $0x110] sm:$0xff]
    %v1695 = vld [vmem:[%s1659 + $0x118] sm:$0xff]
    %v1696 = vld [vmem:[%s1659 + $0x120] sm:$0xff]
    %v1697 = vld [vmem:[%s1659 + $0x128] sm:$0xff]
    %v1698 = vld [vmem:[%s1659 + $0x130] sm:$0xff]
    %v1699 = vld [vmem:[%s1659 + $0x138] sm:$0xff]
    %v1700 = vld [vmem:[%s1659 + $0x140] sm:$0xff]
    %v1701 = vld [vmem:[%s1659 + $0x148] sm:$0xff]
    %v1702 = vld [vmem:[%s1659 + $0x150] sm:$0xff]
    %v1703 = vld [vmem:[%s1659 + $0x158] sm:$0xff]
    %v1704 = vld [vmem:[%s1659 + $0x160] sm:$0xff]
    %v1705 = vld [vmem:[%s1659 + $0x168] sm:$0xff]
    %v1706 = vld [vmem:[%s1659 + $0x170] sm:$0xff]
    %v1707 = vld [vmem:[%s1659 + $0x178] sm:$0xff]
    %v1708 = vld [vmem:[%s1659 + $0x180] sm:$0xff]
    %v1709 = vld [vmem:[%s1659 + $0x188] sm:$0xff]
    %v1710 = vld [vmem:[%s1659 + $0x190] sm:$0xff]
    %v1711 = vld [vmem:[%s1659 + $0x198] sm:$0xff]
    %v1712 = vld [vmem:[%s1659 + $0x1a0] sm:$0xff]
    %v1713 = vld [vmem:[%s1659 + $0x1a8] sm:$0xff]
    %v1714 = vld [vmem:[%s1659 + $0x1b0] sm:$0xff]
    %v1715 = vld [vmem:[%s1659 + $0x1b8] sm:$0xff]
    %v1716 = vld [vmem:[%s1659 + $0x1c0] sm:$0xff]
    %v1717 = vld [vmem:[%s1659 + $0x1c8] sm:$0xff]
    %v1718 = vld [vmem:[%s1659 + $0x1d0] sm:$0xff]
    %v1719 = vld [vmem:[%s1659 + $0x1d8] sm:$0xff]
    %v1720 = vld [vmem:[%s1659 + $0x1e0] sm:$0xff]
    %v1721 = vld [vmem:[%s1659 + $0x1e8] sm:$0xff]
    %v1722 = vld [vmem:[%s1659 + $0x1f0] sm:$0xff]
    %v1723 = vld [vmem:[%s1659 + $0x1f8] sm:$0xff]
    %s1724 = scalar_lea.vmem %s5, 4
    %v1725 = vld [vmem:[%s1724] sm:$0xf]
    %v1727 = vperm.slane %v1725, 0
    %v1728 = vperm.slane %v1725, 1
    %v1729 = vperm.slane %v1725, 2
    %v1730 = vperm.slane %v1725, 3
    %1735 = vmatpush.msra.mxu0 %v1655
    %1736 = vmatpush.msra.mxu0 %v1651
    %1737 = vmatpush.msra.mxu0 %v1647
    %1738 = vmatpush.msra.mxu0 %v1643
    %1739 = vmatpush.msra.mxu0 %v1639
    %1740 = vmatpush.msra.mxu0 %v1635
    %1741 = vmatpush.msra.mxu0 %v1631
    %1742 = vmatpush.msra.mxu0 %v1627
    %1743 = vmatpush.msra.mxu0 %v1623
    %1744 = vmatpush.msra.mxu0 %v1619
    %1745 = vmatpush.msra.mxu0 %v1615
    %1746 = vmatpush.msra.mxu0 %v1611
    %1747 = vmatpush.msra.mxu0 %v1607
    %1748 = vmatpush.msra.mxu0 %v1603
    %1749 = vmatpush.msra.mxu0 %v1599
    %1750 = vmatpush.msra.mxu0 %v1595
    %1751 = vmatmul.f32.gmra.mxu0 %v1593
    %v1752 = vpop.f32.mrf.mxu0
    %v1753 = vadd.f32 %v1727, %v1752
    %1754 = vdwg.mxu0
    %1755 = vmatpush.msra.mxu0 %v1656
    %1756 = vmatpush.msra.mxu0 %v1652
    %1757 = vmatpush.msra.mxu0 %v1648
    %1758 = vmatpush.msra.mxu0 %v1644
    %1759 = vmatpush.msra.mxu0 %v1640
    %1760 = vmatpush.msra.mxu0 %v1636
    %1761 = vmatpush.msra.mxu0 %v1632
    %1762 = vmatpush.msra.mxu0 %v1628
    %1763 = vmatpush.msra.mxu0 %v1624
    %1764 = vmatpush.msra.mxu0 %v1620
    %1765 = vmatpush.msra.mxu0 %v1616
    %1766 = vmatpush.msra.mxu0 %v1612
    %1767 = vmatpush.msra.mxu0 %v1608
    %1768 = vmatpush.msra.mxu0 %v1604
    %1769 = vmatpush.msra.mxu0 %v1600
    %1770 = vmatpush.msra.mxu0 %v1596
    %1771 = vmatmul.f32.gmra.mxu0 %v1593
    %v1772 = vpop.f32.mrf.mxu0
    %v1773 = vadd.f32 %v1728, %v1772
    %1774 = vdwg.mxu0
    %1775 = vmatpush.msra.mxu0 %v1657
    %1776 = vmatpush.msra.mxu0 %v1653
    %1777 = vmatpush.msra.mxu0 %v1649
    %1778 = vmatpush.msra.mxu0 %v1645
    %1779 = vmatpush.msra.mxu0 %v1641
    %1780 = vmatpush.msra.mxu0 %v1637
    %1781 = vmatpush.msra.mxu0 %v1633
    %1782 = vmatpush.msra.mxu0 %v1629
    %1783 = vmatpush.msra.mxu0 %v1625
    %1784 = vmatpush.msra.mxu0 %v1621
    %1785 = vmatpush.msra.mxu0 %v1617
    %1786 = vmatpush.msra.mxu0 %v1613
    %1787 = vmatpush.msra.mxu0 %v1609
    %1788 = vmatpush.msra.mxu0 %v1605
    %1789 = vmatpush.msra.mxu0 %v1601
    %1790 = vmatpush.msra.mxu0 %v1597
    %1791 = vmatmul.f32.gmra.mxu0 %v1593
    %v1792 = vpop.f32.mrf.mxu0
    %v1793 = vadd.f32 %v1729, %v1792
    %1794 = vdwg.mxu0
    %1795 = vmatpush.msra.mxu0 %v1658
    %1796 = vmatpush.msra.mxu0 %v1654
    %1797 = vmatpush.msra.mxu0 %v1650
    %1798 = vmatpush.msra.mxu0 %v1646
    %1799 = vmatpush.msra.mxu0 %v1642
    %1800 = vmatpush.msra.mxu0 %v1638
    %1801 = vmatpush.msra.mxu0 %v1634
    %1802 = vmatpush.msra.mxu0 %v1630
    %1803 = vmatpush.msra.mxu0 %v1626
    %1804 = vmatpush.msra.mxu0 %v1622
    %1805 = vmatpush.msra.mxu0 %v1618
    %1806 = vmatpush.msra.mxu0 %v1614
    %1807 = vmatpush.msra.mxu0 %v1610
    %1808 = vmatpush.msra.mxu0 %v1606
    %1809 = vmatpush.msra.mxu0 %v1602
    %1810 = vmatpush.msra.mxu0 %v1598
    %1811 = vmatmul.f32.gmra.mxu0 %v1593
    %v1812 = vpop.f32.mrf.mxu0
    %v1813 = vadd.f32 %v1730, %v1812
    %1814 = vdwg.mxu0
    %s1815 = scalar_lea.vmem %s1, 1
    %v1816 = vld [vmem:[%s1815] sm:$0x1]
    %s1817 = scalar_lea.vmem %s2, 1
    %v1818 = vld [vmem:[%s1817] sm:$0x1]
    %1819 = vmatpush.msra.mxu0 %v1720
    %1820 = vmatpush.msra.mxu0 %v1716
    %1821 = vmatpush.msra.mxu0 %v1712
    %1822 = vmatpush.msra.mxu0 %v1708
    %1823 = vmatpush.msra.mxu0 %v1704
    %1824 = vmatpush.msra.mxu0 %v1700
    %1825 = vmatpush.msra.mxu0 %v1696
    %1826 = vmatpush.msra.mxu0 %v1692
    %1827 = vmatpush.msra.mxu0 %v1688
    %1828 = vmatpush.msra.mxu0 %v1684
    %1829 = vmatpush.msra.mxu0 %v1680
    %1830 = vmatpush.msra.mxu0 %v1676
    %1831 = vmatpush.msra.mxu0 %v1672
    %1832 = vmatpush.msra.mxu0 %v1668
    %1833 = vmatpush.msra.mxu0 %v1664
    %1834 = vmatpush.msra.mxu0 %v1660
    %1835 = vmatmul.f32.gmra.mxu0 %v1816
    %v1836 = vpop.f32.mrf.mxu0
    %v1837 = vadd.f32 0.0, %v1836
    %1838 = vdwg.mxu0
    %1839 = vmatpush.msra.mxu0 %v1721
    %1840 = vmatpush.msra.mxu0 %v1717
    %1841 = vmatpush.msra.mxu0 %v1713
    %1842 = vmatpush.msra.mxu0 %v1709
    %1843 = vmatpush.msra.mxu0 %v1705
    %1844 = vmatpush.msra.mxu0 %v1701
    %1845 = vmatpush.msra.mxu0 %v1697
    %1846 = vmatpush.msra.mxu0 %v1693
    %1847 = vmatpush.msra.mxu0 %v1689
    %1848 = vmatpush.msra.mxu0 %v1685
    %1849 = vmatpush.msra.mxu0 %v1681
    %1850 = vmatpush.msra.mxu0 %v1677
    %1851 = vmatpush.msra.mxu0 %v1673
    %1852 = vmatpush.msra.mxu0 %v1669
    %1853 = vmatpush.msra.mxu0 %v1665
    %1854 = vmatpush.msra.mxu0 %v1661
    %1855 = vmatmul.f32.gmra.mxu0 %v1816
    %v1856 = vpop.f32.mrf.mxu0
    %v1857 = vadd.f32 0.0, %v1856
    %1858 = vdwg.mxu0
    %1859 = vmatpush.msra.mxu0 %v1722
    %1860 = vmatpush.msra.mxu0 %v1718
    %1861 = vmatpush.msra.mxu0 %v1714
    %1862 = vmatpush.msra.mxu0 %v1710
    %1863 = vmatpush.msra.mxu0 %v1706
    %1864 = vmatpush.msra.mxu0 %v1702
    %1865 = vmatpush.msra.mxu0 %v1698
    %1866 = vmatpush.msra.mxu0 %v1694
    %1867 = vmatpush.msra.mxu0 %v1690
    %1868 = vmatpush.msra.mxu0 %v1686
    %1869 = vmatpush.msra.mxu0 %v1682
    %1870 = vmatpush.msra.mxu0 %v1678
    %1871 = vmatpush.msra.mxu0 %v1674
    %1872 = vmatpush.msra.mxu0 %v1670
    %1873 = vmatpush.msra.mxu0 %v1666
    %1874 = vmatpush.msra.mxu0 %v1662
    %1875 = vmatmul.f32.gmra.mxu0 %v1816
    %v1876 = vpop.f32.mrf.mxu0
    %v1877 = vadd.f32 0.0, %v1876
    %1878 = vdwg.mxu0
    %1879 = vmatpush.msra.mxu0 %v1723
    %1880 = vmatpush.msra.mxu0 %v1719
    %1881 = vmatpush.msra.mxu0 %v1715
    %1882 = vmatpush.msra.mxu0 %v1711
    %1883 = vmatpush.msra.mxu0 %v1707
    %1884 = vmatpush.msra.mxu0 %v1703
    %1885 = vmatpush.msra.mxu0 %v1699
    %1886 = vmatpush.msra.mxu0 %v1695
    %1887 = vmatpush.msra.mxu0 %v1691
    %1888 = vmatpush.msra.mxu0 %v1687
    %1889 = vmatpush.msra.mxu0 %v1683
    %1890 = vmatpush.msra.mxu0 %v1679
    %1891 = vmatpush.msra.mxu0 %v1675
    %1892 = vmatpush.msra.mxu0 %v1671
    %1893 = vmatpush.msra.mxu0 %v1667
    %1894 = vmatpush.msra.mxu0 %v1663
    %1895 = vmatmul.f32.gmra.mxu0 %v1816
    %v1896 = vpop.f32.mrf.mxu0
    %v1897 = vadd.f32 0.0, %v1896
    %1898 = vdwg.mxu0
    %v1899 = vadd.f32 %v1753, %v1837
    %v1900 = vadd.f32 %v1773, %v1857
    %v1901 = vadd.f32 %v1793, %v1877
    %v1902 = vadd.f32 %v1813, %v1897
    %v1903 = vxor.u32 %v1899, 2147483648
    %v1904 = vxor.u32 %v1900, 2147483648
    %v1905 = vxor.u32 %v1901, 2147483648
    %v1906 = vmul.f32 %v1903, 1.442695
    %v1907 = vpow.pop %v1906
    %v1908 = vmul.f32 %v1904, 1.442695
    %v1909 = vpow.pop %v1908
    %v1910 = vmul.f32 %v1905, 1.442695
    %v1911 = vpow.pop %v1910
    %v1912 = vadd.f32 %v1907, 1.0
    %v1913 = vadd.f32 %v1909, 1.0
    %v1914 = vadd.f32 %v1911, 1.0
    %v1915 = vrcp.pop %v1912
    %v1916 = vmul.f32 %v1912, %v1915
    %v1917 = vsub.f32 1.0, %v1916
    %v1918 = vmul.f32 %v1915, %v1917
    %v1919 = vadd.f32 %v1915, %v1918
    %vm1920 = vweird.f32 %v1912
    %vm1921 = vweird.f32 %v1915
    %vm1922 = vmor %vm1920, %vm1921
    %v1923 = vsel %vm1922, %v1915, %v1919
    %v1924 = vand.u32 2147483647, %v1912
    %vm1925 = vcmp.eq.f32.partialorder %v1924, 8.507059e+37
    %v1926 = vand.u32 %v1912, 2147483648
    %v1927 = vor.u32 1.1754944e-38, %v1926
    %v1928 = vsel %vm1925, %v1927, %v1923
    %v1929 = vmul.f32 1.0, %v1928
    %v1930 = vrcp.pop %v1913
    %v1931 = vmul.f32 %v1913, %v1930
    %v1932 = vsub.f32 1.0, %v1931
    %v1933 = vmul.f32 %v1930, %v1932
    %v1934 = vadd.f32 %v1930, %v1933
    %vm1935 = vweird.f32 %v1913
    %vm1936 = vweird.f32 %v1930
    %vm1937 = vmor %vm1935, %vm1936
    %v1938 = vsel %vm1937, %v1930, %v1934
    %v1939 = vand.u32 2147483647, %v1913
    %vm1940 = vcmp.eq.f32.partialorder %v1939, 8.507059e+37
    %v1941 = vand.u32 %v1913, 2147483648
    %v1942 = vor.u32 1.1754944e-38, %v1941
    %v1943 = vsel %vm1940, %v1942, %v1938
    %v1944 = vmul.f32 1.0, %v1943
    %v1945 = vrcp.pop %v1914
    %v1946 = vmul.f32 %v1914, %v1945
    %v1947 = vsub.f32 1.0, %v1946
    %v1948 = vmul.f32 %v1945, %v1947
    %v1949 = vadd.f32 %v1945, %v1948
    %vm1950 = vweird.f32 %v1914
    %vm1951 = vweird.f32 %v1945
    %vm1952 = vmor %vm1950, %vm1951
    %v1953 = vsel %vm1952, %v1945, %v1949
    %v1954 = vand.u32 2147483647, %v1914
    %vm1955 = vcmp.eq.f32.partialorder %v1954, 8.507059e+37
    %v1956 = vand.u32 %v1914, 2147483648
    %v1957 = vor.u32 1.1754944e-38, %v1956
    %v1958 = vsel %vm1955, %v1957, %v1953
    %v1959 = vmul.f32 1.0, %v1958
    %v1960 = vtanh.pop %v1902
    %v1961 = vmul.f32 %v1944, %v1818
    %v1962 = vmul.f32 %v1929, %v1960
    %v1963 = vadd.f32 %v1961, %v1962
    %v1964 = vtanh.pop %v1963
    %v1965 = vmul.f32 %v1959, %v1964
    %1966 = vmatpush.msra.mxu0 %v1720
    %1967 = vmatpush.msra.mxu0 %v1716
    %1968 = vmatpush.msra.mxu0 %v1712
    %1969 = vmatpush.msra.mxu0 %v1708
    %1970 = vmatpush.msra.mxu0 %v1704
    %1971 = vmatpush.msra.mxu0 %v1700
    %1972 = vmatpush.msra.mxu0 %v1696
    %1973 = vmatpush.msra.mxu0 %v1692
    %1974 = vmatpush.msra.mxu0 %v1688
    %1975 = vmatpush.msra.mxu0 %v1684
    %1976 = vmatpush.msra.mxu0 %v1680
    %1977 = vmatpush.msra.mxu0 %v1676
    %1978 = vmatpush.msra.mxu0 %v1672
    %1979 = vmatpush.msra.mxu0 %v1668
    %1980 = vmatpush.msra.mxu0 %v1664
    %1981 = vmatpush.msra.mxu0 %v1660
    %1982 = vmatmul.f32.gmra.mxu0 %v1965
    %v1983 = vpop.f32.mrf.mxu0
    %v1984 = vadd.f32 0.0, %v1983
    %1985 = vdwg.mxu0
    %1986 = vmatpush.msra.mxu0 %v1721
    %1987 = vmatpush.msra.mxu0 %v1717
    %1988 = vmatpush.msra.mxu0 %v1713
    %1989 = vmatpush.msra.mxu0 %v1709
    %1990 = vmatpush.msra.mxu0 %v1705
    %1991 = vmatpush.msra.mxu0 %v1701
    %1992 = vmatpush.msra.mxu0 %v1697
    %1993 = vmatpush.msra.mxu0 %v1693
    %1994 = vmatpush.msra.mxu0 %v1689
    %1995 = vmatpush.msra.mxu0 %v1685
    %1996 = vmatpush.msra.mxu0 %v1681
    %1997 = vmatpush.msra.mxu0 %v1677
    %1998 = vmatpush.msra.mxu0 %v1673
    %1999 = vmatpush.msra.mxu0 %v1669
    %2000 = vmatpush.msra.mxu0 %v1665
    %2001 = vmatpush.msra.mxu0 %v1661
    %2002 = vmatmul.f32.gmra.mxu0 %v1965
    %v2003 = vpop.f32.mrf.mxu0
    %v2004 = vadd.f32 0.0, %v2003
    %2005 = vdwg.mxu0
    %2006 = vmatpush.msra.mxu0 %v1722
    %2007 = vmatpush.msra.mxu0 %v1718
    %2008 = vmatpush.msra.mxu0 %v1714
    %2009 = vmatpush.msra.mxu0 %v1710
    %2010 = vmatpush.msra.mxu0 %v1706
    %2011 = vmatpush.msra.mxu0 %v1702
    %2012 = vmatpush.msra.mxu0 %v1698
    %2013 = vmatpush.msra.mxu0 %v1694
    %2014 = vmatpush.msra.mxu0 %v1690
    %2015 = vmatpush.msra.mxu0 %v1686
    %2016 = vmatpush.msra.mxu0 %v1682
    %2017 = vmatpush.msra.mxu0 %v1678
    %2018 = vmatpush.msra.mxu0 %v1674
    %2019 = vmatpush.msra.mxu0 %v1670
    %2020 = vmatpush.msra.mxu0 %v1666
    %2021 = vmatpush.msra.mxu0 %v1662
    %2022 = vmatmul.f32.gmra.mxu0 %v1965
    %v2023 = vpop.f32.mrf.mxu0
    %v2024 = vadd.f32 0.0, %v2023
    %2025 = vdwg.mxu0
    %2026 = vmatpush.msra.mxu0 %v1723
    %2027 = vmatpush.msra.mxu0 %v1719
    %2028 = vmatpush.msra.mxu0 %v1715
    %2029 = vmatpush.msra.mxu0 %v1711
    %2030 = vmatpush.msra.mxu0 %v1707
    %2031 = vmatpush.msra.mxu0 %v1703
    %2032 = vmatpush.msra.mxu0 %v1699
    %2033 = vmatpush.msra.mxu0 %v1695
    %2034 = vmatpush.msra.mxu0 %v1691
    %2035 = vmatpush.msra.mxu0 %v1687
    %2036 = vmatpush.msra.mxu0 %v1683
    %2037 = vmatpush.msra.mxu0 %v1679
    %2038 = vmatpush.msra.mxu0 %v1675
    %2039 = vmatpush.msra.mxu0 %v1671
    %2040 = vmatpush.msra.mxu0 %v1667
    %2041 = vmatpush.msra.mxu0 %v1663
    %2042 = vmatmul.f32.gmra.mxu0 %v1965
    %v2043 = vpop.f32.mrf.mxu0
    %v2044 = vadd.f32 0.0, %v2043
    %2045 = vdwg.mxu0
    %v2050 = vrot.slane %v1984, 7
    %v2051 = vrot.slane %v2004, 7
    %v2052 = vrot.slane %v2024, 7
    %v2053 = vrot.slane %v2044, 7
    %v2058 = vadd.f32 %v1753, %v2050
    %v2059 = vadd.f32 %v1773, %v2051
    %v2060 = vadd.f32 %v1793, %v2052
    %v2061 = vadd.f32 %v1813, %v2053
    %v2062 = vxor.u32 %v2058, 2147483648
    %v2063 = vxor.u32 %v2059, 2147483648
    %v2064 = vxor.u32 %v2060, 2147483648
    %v2065 = vmul.f32 %v2062, 1.442695
    %v2066 = vpow.pop %v2065
    %v2067 = vmul.f32 %v2063, 1.442695
    %v2068 = vpow.pop %v2067
    %v2069 = vmul.f32 %v2064, 1.442695
    %v2070 = vpow.pop %v2069
    %v2071 = vadd.f32 %v2066, 1.0
    %v2072 = vadd.f32 %v2068, 1.0
    %v2073 = vadd.f32 %v2070, 1.0
    %v2074 = vrcp.pop %v2071
    %v2075 = vmul.f32 %v2071, %v2074
    %v2076 = vsub.f32 1.0, %v2075
    %v2077 = vmul.f32 %v2074, %v2076
    %v2078 = vadd.f32 %v2074, %v2077
    %vm2079 = vweird.f32 %v2071
    %vm2080 = vweird.f32 %v2074
    %vm2081 = vmor %vm2079, %vm2080
    %v2082 = vsel %vm2081, %v2074, %v2078
    %v2083 = vand.u32 2147483647, %v2071
    %vm2084 = vcmp.eq.f32.partialorder %v2083, 8.507059e+37
    %v2085 = vand.u32 %v2071, 2147483648
    %v2086 = vor.u32 1.1754944e-38, %v2085
    %v2087 = vsel %vm2084, %v2086, %v2082
    %v2088 = vmul.f32 1.0, %v2087
    %v2089 = vrcp.pop %v2072
    %v2090 = vmul.f32 %v2072, %v2089
    %v2091 = vsub.f32 1.0, %v2090
    %v2092 = vmul.f32 %v2089, %v2091
    %v2093 = vadd.f32 %v2089, %v2092
    %vm2094 = vweird.f32 %v2072
    %vm2095 = vweird.f32 %v2089
    %vm2096 = vmor %vm2094, %vm2095
    %v2097 = vsel %vm2096, %v2089, %v2093
    %v2098 = vand.u32 2147483647, %v2072
    %vm2099 = vcmp.eq.f32.partialorder %v2098, 8.507059e+37
    %v2100 = vand.u32 %v2072, 2147483648
    %v2101 = vor.u32 1.1754944e-38, %v2100
    %v2102 = vsel %vm2099, %v2101, %v2097
    %v2103 = vmul.f32 1.0, %v2102
    %v2104 = vrcp.pop %v2073
    %v2105 = vmul.f32 %v2073, %v2104
    %v2106 = vsub.f32 1.0, %v2105
    %v2107 = vmul.f32 %v2104, %v2106
    %v2108 = vadd.f32 %v2104, %v2107
    %vm2109 = vweird.f32 %v2073
    %vm2110 = vweird.f32 %v2104
    %vm2111 = vmor %vm2109, %vm2110
    %v2112 = vsel %vm2111, %v2104, %v2108
    %v2113 = vand.u32 2147483647, %v2073
    %vm2114 = vcmp.eq.f32.partialorder %v2113, 8.507059e+37
    %v2115 = vand.u32 %v2073, 2147483648
    %v2116 = vor.u32 1.1754944e-38, %v2115
    %v2117 = vsel %vm2114, %v2116, %v2112
    %v2118 = vmul.f32 1.0, %v2117
    %v2119 = vtanh.pop %v2061
    %v2121 = vrot.slane %v1963, 7
    %v2123 = vmul.f32 %v2103, %v2121
    %v2124 = vmul.f32 %v2088, %v2119
    %v2125 = vadd.f32 %v2123, %v2124
    %v2126 = vtanh.pop %v2125
    %v2127 = vmul.f32 %v2118, %v2126
    %v2129 = vrot.slane %v2127, 1
    %2131 = vmatpush.msra.mxu0 %v1720
    %2132 = vmatpush.msra.mxu0 %v1716
    %2133 = vmatpush.msra.mxu0 %v1712
    %2134 = vmatpush.msra.mxu0 %v1708
    %2135 = vmatpush.msra.mxu0 %v1704
    %2136 = vmatpush.msra.mxu0 %v1700
    %2137 = vmatpush.msra.mxu0 %v1696
    %2138 = vmatpush.msra.mxu0 %v1692
    %2139 = vmatpush.msra.mxu0 %v1688
    %2140 = vmatpush.msra.mxu0 %v1684
    %2141 = vmatpush.msra.mxu0 %v1680
    %2142 = vmatpush.msra.mxu0 %v1676
    %2143 = vmatpush.msra.mxu0 %v1672
    %2144 = vmatpush.msra.mxu0 %v1668
    %2145 = vmatpush.msra.mxu0 %v1664
    %2146 = vmatpush.msra.mxu0 %v1660
    %2147 = vmatmul.f32.gmra.mxu0 %v2129
    %v2148 = vpop.f32.mrf.mxu0
    %v2149 = vadd.f32 0.0, %v2148
    %2150 = vdwg.mxu0
    %2151 = vmatpush.msra.mxu0 %v1721
    %2152 = vmatpush.msra.mxu0 %v1717
    %2153 = vmatpush.msra.mxu0 %v1713
    %2154 = vmatpush.msra.mxu0 %v1709
    %2155 = vmatpush.msra.mxu0 %v1705
    %2156 = vmatpush.msra.mxu0 %v1701
    %2157 = vmatpush.msra.mxu0 %v1697
    %2158 = vmatpush.msra.mxu0 %v1693
    %2159 = vmatpush.msra.mxu0 %v1689
    %2160 = vmatpush.msra.mxu0 %v1685
    %2161 = vmatpush.msra.mxu0 %v1681
    %2162 = vmatpush.msra.mxu0 %v1677
    %2163 = vmatpush.msra.mxu0 %v1673
    %2164 = vmatpush.msra.mxu0 %v1669
    %2165 = vmatpush.msra.mxu0 %v1665
    %2166 = vmatpush.msra.mxu0 %v1661
    %2167 = vmatmul.f32.gmra.mxu0 %v2129
    %v2168 = vpop.f32.mrf.mxu0
    %v2169 = vadd.f32 0.0, %v2168
    %2170 = vdwg.mxu0
    %2171 = vmatpush.msra.mxu0 %v1722
    %2172 = vmatpush.msra.mxu0 %v1718
    %2173 = vmatpush.msra.mxu0 %v1714
    %2174 = vmatpush.msra.mxu0 %v1710
    %2175 = vmatpush.msra.mxu0 %v1706
    %2176 = vmatpush.msra.mxu0 %v1702
    %2177 = vmatpush.msra.mxu0 %v1698
    %2178 = vmatpush.msra.mxu0 %v1694
    %2179 = vmatpush.msra.mxu0 %v1690
    %2180 = vmatpush.msra.mxu0 %v1686
    %2181 = vmatpush.msra.mxu0 %v1682
    %2182 = vmatpush.msra.mxu0 %v1678
    %2183 = vmatpush.msra.mxu0 %v1674
    %2184 = vmatpush.msra.mxu0 %v1670
    %2185 = vmatpush.msra.mxu0 %v1666
    %2186 = vmatpush.msra.mxu0 %v1662
    %2187 = vmatmul.f32.gmra.mxu0 %v2129
    %v2188 = vpop.f32.mrf.mxu0
    %v2189 = vadd.f32 0.0, %v2188
    %2190 = vdwg.mxu0
    %2191 = vmatpush.msra.mxu0 %v1723
    %2192 = vmatpush.msra.mxu0 %v1719
    %2193 = vmatpush.msra.mxu0 %v1715
    %2194 = vmatpush.msra.mxu0 %v1711
    %2195 = vmatpush.msra.mxu0 %v1707
    %2196 = vmatpush.msra.mxu0 %v1703
    %2197 = vmatpush.msra.mxu0 %v1699
    %2198 = vmatpush.msra.mxu0 %v1695
    %2199 = vmatpush.msra.mxu0 %v1691
    %2200 = vmatpush.msra.mxu0 %v1687
    %2201 = vmatpush.msra.mxu0 %v1683
    %2202 = vmatpush.msra.mxu0 %v1679
    %2203 = vmatpush.msra.mxu0 %v1675
    %2204 = vmatpush.msra.mxu0 %v1671
    %2205 = vmatpush.msra.mxu0 %v1667
    %2206 = vmatpush.msra.mxu0 %v1663
    %2207 = vmatmul.f32.gmra.mxu0 %v2129
    %v2208 = vpop.f32.mrf.mxu0
    %v2209 = vadd.f32 0.0, %v2208
    %2210 = vdwg.mxu0
    %v2215 = vrot.slane %v2149, 6
    %v2216 = vrot.slane %v2169, 6
    %v2217 = vrot.slane %v2189, 6
    %v2218 = vrot.slane %v2209, 6
    %v2223 = vadd.f32 %v1753, %v2215
    %v2224 = vadd.f32 %v1773, %v2216
    %v2225 = vadd.f32 %v1793, %v2217
    %v2226 = vadd.f32 %v1813, %v2218
    %v2227 = vxor.u32 %v2223, 2147483648
    %v2228 = vxor.u32 %v2224, 2147483648
    %v2229 = vxor.u32 %v2225, 2147483648
    %v2230 = vmul.f32 %v2227, 1.442695
    %v2231 = vpow.pop %v2230
    %v2232 = vmul.f32 %v2228, 1.442695
    %v2233 = vpow.pop %v2232
    %v2234 = vmul.f32 %v2229, 1.442695
    %v2235 = vpow.pop %v2234
    %v2236 = vadd.f32 %v2231, 1.0
    %v2237 = vadd.f32 %v2233, 1.0
    %v2238 = vadd.f32 %v2235, 1.0
    %v2239 = vrcp.pop %v2236
    %v2240 = vmul.f32 %v2236, %v2239
    %v2241 = vsub.f32 1.0, %v2240
    %v2242 = vmul.f32 %v2239, %v2241
    %v2243 = vadd.f32 %v2239, %v2242
    %vm2244 = vweird.f32 %v2236
    %vm2245 = vweird.f32 %v2239
    %vm2246 = vmor %vm2244, %vm2245
    %v2247 = vsel %vm2246, %v2239, %v2243
    %v2248 = vand.u32 2147483647, %v2236
    %vm2249 = vcmp.eq.f32.partialorder %v2248, 8.507059e+37
    %v2250 = vand.u32 %v2236, 2147483648
    %v2251 = vor.u32 1.1754944e-38, %v2250
    %v2252 = vsel %vm2249, %v2251, %v2247
    %v2253 = vmul.f32 1.0, %v2252
    %v2254 = vrcp.pop %v2237
    %v2255 = vmul.f32 %v2237, %v2254
    %v2256 = vsub.f32 1.0, %v2255
    %v2257 = vmul.f32 %v2254, %v2256
    %v2258 = vadd.f32 %v2254, %v2257
    %vm2259 = vweird.f32 %v2237
    %vm2260 = vweird.f32 %v2254
    %vm2261 = vmor %vm2259, %vm2260
    %v2262 = vsel %vm2261, %v2254, %v2258
    %v2263 = vand.u32 2147483647, %v2237
    %vm2264 = vcmp.eq.f32.partialorder %v2263, 8.507059e+37
    %v2265 = vand.u32 %v2237, 2147483648
    %v2266 = vor.u32 1.1754944e-38, %v2265
    %v2267 = vsel %vm2264, %v2266, %v2262
    %v2268 = vmul.f32 1.0, %v2267
    %v2269 = vrcp.pop %v2238
    %v2270 = vmul.f32 %v2238, %v2269
    %v2271 = vsub.f32 1.0, %v2270
    %v2272 = vmul.f32 %v2269, %v2271
    %v2273 = vadd.f32 %v2269, %v2272
    %vm2274 = vweird.f32 %v2238
    %vm2275 = vweird.f32 %v2269
    %vm2276 = vmor %vm2274, %vm2275
    %v2277 = vsel %vm2276, %v2269, %v2273
    %v2278 = vand.u32 2147483647, %v2238
    %vm2279 = vcmp.eq.f32.partialorder %v2278, 8.507059e+37
    %v2280 = vand.u32 %v2238, 2147483648
    %v2281 = vor.u32 1.1754944e-38, %v2280
    %v2282 = vsel %vm2279, %v2281, %v2277
    %v2283 = vmul.f32 1.0, %v2282
    %v2284 = vtanh.pop %v2226
    %v2286 = vrot.slane %v2125, 7
    %v2288 = vmul.f32 %v2268, %v2286
    %v2289 = vmul.f32 %v2253, %v2284
    %v2290 = vadd.f32 %v2288, %v2289
    %v2291 = vtanh.pop %v2290
    %v2292 = vmul.f32 %v2283, %v2291
    %v2294 = vrot.slane %v2292, 2
    %2296 = vmatpush.msra.mxu0 %v1720
    %2297 = vmatpush.msra.mxu0 %v1716
    %2298 = vmatpush.msra.mxu0 %v1712
    %2299 = vmatpush.msra.mxu0 %v1708
    %2300 = vmatpush.msra.mxu0 %v1704
    %2301 = vmatpush.msra.mxu0 %v1700
    %2302 = vmatpush.msra.mxu0 %v1696
    %2303 = vmatpush.msra.mxu0 %v1692
    %2304 = vmatpush.msra.mxu0 %v1688
    %2305 = vmatpush.msra.mxu0 %v1684
    %2306 = vmatpush.msra.mxu0 %v1680
    %2307 = vmatpush.msra.mxu0 %v1676
    %2308 = vmatpush.msra.mxu0 %v1672
    %2309 = vmatpush.msra.mxu0 %v1668
    %2310 = vmatpush.msra.mxu0 %v1664
    %2311 = vmatpush.msra.mxu0 %v1660
    %2312 = vmatmul.f32.gmra.mxu0 %v2294
    %v2313 = vpop.f32.mrf.mxu0
    %v2314 = vadd.f32 0.0, %v2313
    %2315 = vdwg.mxu0
    %2316 = vmatpush.msra.mxu0 %v1721
    %2317 = vmatpush.msra.mxu0 %v1717
    %2318 = vmatpush.msra.mxu0 %v1713
    %2319 = vmatpush.msra.mxu0 %v1709
    %2320 = vmatpush.msra.mxu0 %v1705
    %2321 = vmatpush.msra.mxu0 %v1701
    %2322 = vmatpush.msra.mxu0 %v1697
    %2323 = vmatpush.msra.mxu0 %v1693
    %2324 = vmatpush.msra.mxu0 %v1689
    %2325 = vmatpush.msra.mxu0 %v1685
    %2326 = vmatpush.msra.mxu0 %v1681
    %2327 = vmatpush.msra.mxu0 %v1677
    %2328 = vmatpush.msra.mxu0 %v1673
    %2329 = vmatpush.msra.mxu0 %v1669
    %2330 = vmatpush.msra.mxu0 %v1665
    %2331 = vmatpush.msra.mxu0 %v1661
    %2332 = vmatmul.f32.gmra.mxu0 %v2294
    %v2333 = vpop.f32.mrf.mxu0
    %v2334 = vadd.f32 0.0, %v2333
    %2335 = vdwg.mxu0
    %2336 = vmatpush.msra.mxu0 %v1722
    %2337 = vmatpush.msra.mxu0 %v1718
    %2338 = vmatpush.msra.mxu0 %v1714
    %2339 = vmatpush.msra.mxu0 %v1710
    %2340 = vmatpush.msra.mxu0 %v1706
    %2341 = vmatpush.msra.mxu0 %v1702
    %2342 = vmatpush.msra.mxu0 %v1698
    %2343 = vmatpush.msra.mxu0 %v1694
    %2344 = vmatpush.msra.mxu0 %v1690
    %2345 = vmatpush.msra.mxu0 %v1686
    %2346 = vmatpush.msra.mxu0 %v1682
    %2347 = vmatpush.msra.mxu0 %v1678
    %2348 = vmatpush.msra.mxu0 %v1674
    %2349 = vmatpush.msra.mxu0 %v1670
    %2350 = vmatpush.msra.mxu0 %v1666
    %2351 = vmatpush.msra.mxu0 %v1662
    %2352 = vmatmul.f32.gmra.mxu0 %v2294
    %v2353 = vpop.f32.mrf.mxu0
    %v2354 = vadd.f32 0.0, %v2353
    %2355 = vdwg.mxu0
    %2356 = vmatpush.msra.mxu0 %v1723
    %2357 = vmatpush.msra.mxu0 %v1719
    %2358 = vmatpush.msra.mxu0 %v1715
    %2359 = vmatpush.msra.mxu0 %v1711
    %2360 = vmatpush.msra.mxu0 %v1707
    %2361 = vmatpush.msra.mxu0 %v1703
    %2362 = vmatpush.msra.mxu0 %v1699
    %2363 = vmatpush.msra.mxu0 %v1695
    %2364 = vmatpush.msra.mxu0 %v1691
    %2365 = vmatpush.msra.mxu0 %v1687
    %2366 = vmatpush.msra.mxu0 %v1683
    %2367 = vmatpush.msra.mxu0 %v1679
    %2368 = vmatpush.msra.mxu0 %v1675
    %2369 = vmatpush.msra.mxu0 %v1671
    %2370 = vmatpush.msra.mxu0 %v1667
    %2371 = vmatpush.msra.mxu0 %v1663
    %2372 = vmatmul.f32.gmra.mxu0 %v2294
    %v2373 = vpop.f32.mrf.mxu0
    %v2374 = vadd.f32 0.0, %v2373
    %2375 = vdwg.mxu0
    %v2380 = vrot.slane %v2314, 5
    %v2381 = vrot.slane %v2334, 5
    %v2382 = vrot.slane %v2354, 5
    %v2383 = vrot.slane %v2374, 5
    %v2388 = vadd.f32 %v1753, %v2380
    %v2389 = vadd.f32 %v1773, %v2381
    %v2390 = vadd.f32 %v1793, %v2382
    %v2391 = vadd.f32 %v1813, %v2383
    %v2392 = vxor.u32 %v2388, 2147483648
    %v2393 = vxor.u32 %v2389, 2147483648
    %v2394 = vxor.u32 %v2390, 2147483648
    %v2395 = vmul.f32 %v2392, 1.442695
    %v2396 = vpow.pop %v2395
    %v2397 = vmul.f32 %v2393, 1.442695
    %v2398 = vpow.pop %v2397
    %v2399 = vmul.f32 %v2394, 1.442695
    %v2400 = vpow.pop %v2399
    %v2401 = vadd.f32 %v2396, 1.0
    %v2402 = vadd.f32 %v2398, 1.0
    %v2403 = vadd.f32 %v2400, 1.0
    %v2404 = vrcp.pop %v2401
    %v2405 = vmul.f32 %v2401, %v2404
    %v2406 = vsub.f32 1.0, %v2405
    %v2407 = vmul.f32 %v2404, %v2406
    %v2408 = vadd.f32 %v2404, %v2407
    %vm2409 = vweird.f32 %v2401
    %vm2410 = vweird.f32 %v2404
    %vm2411 = vmor %vm2409, %vm2410
    %v2412 = vsel %vm2411, %v2404, %v2408
    %v2413 = vand.u32 2147483647, %v2401
    %vm2414 = vcmp.eq.f32.partialorder %v2413, 8.507059e+37
    %v2415 = vand.u32 %v2401, 2147483648
    %v2416 = vor.u32 1.1754944e-38, %v2415
    %v2417 = vsel %vm2414, %v2416, %v2412
    %v2418 = vmul.f32 1.0, %v2417
    %v2419 = vrcp.pop %v2402
    %v2420 = vmul.f32 %v2402, %v2419
    %v2421 = vsub.f32 1.0, %v2420
    %v2422 = vmul.f32 %v2419, %v2421
    %v2423 = vadd.f32 %v2419, %v2422
    %vm2424 = vweird.f32 %v2402
    %vm2425 = vweird.f32 %v2419
    %vm2426 = vmor %vm2424, %vm2425
    %v2427 = vsel %vm2426, %v2419, %v2423
    %v2428 = vand.u32 2147483647, %v2402
    %vm2429 = vcmp.eq.f32.partialorder %v2428, 8.507059e+37
    %v2430 = vand.u32 %v2402, 2147483648
    %v2431 = vor.u32 1.1754944e-38, %v2430
    %v2432 = vsel %vm2429, %v2431, %v2427
    %v2433 = vmul.f32 1.0, %v2432
    %v2434 = vrcp.pop %v2403
    %v2435 = vmul.f32 %v2403, %v2434
    %v2436 = vsub.f32 1.0, %v2435
    %v2437 = vmul.f32 %v2434, %v2436
    %v2438 = vadd.f32 %v2434, %v2437
    %vm2439 = vweird.f32 %v2403
    %vm2440 = vweird.f32 %v2434
    %vm2441 = vmor %vm2439, %vm2440
    %v2442 = vsel %vm2441, %v2434, %v2438
    %v2443 = vand.u32 2147483647, %v2403
    %vm2444 = vcmp.eq.f32.partialorder %v2443, 8.507059e+37
    %v2445 = vand.u32 %v2403, 2147483648
    %v2446 = vor.u32 1.1754944e-38, %v2445
    %v2447 = vsel %vm2444, %v2446, %v2442
    %v2448 = vmul.f32 1.0, %v2447
    %v2449 = vtanh.pop %v2391
    %v2451 = vrot.slane %v2290, 7
    %v2453 = vmul.f32 %v2433, %v2451
    %v2454 = vmul.f32 %v2418, %v2449
    %v2455 = vadd.f32 %v2453, %v2454
    %v2456 = vtanh.pop %v2455
    %v2457 = vmul.f32 %v2448, %v2456
    %v2459 = vrot.slane %v2457, 3
    %2461 = vmatpush.msra.mxu0 %v1720
    %2462 = vmatpush.msra.mxu0 %v1716
    %2463 = vmatpush.msra.mxu0 %v1712
    %2464 = vmatpush.msra.mxu0 %v1708
    %2465 = vmatpush.msra.mxu0 %v1704
    %2466 = vmatpush.msra.mxu0 %v1700
    %2467 = vmatpush.msra.mxu0 %v1696
    %2468 = vmatpush.msra.mxu0 %v1692
    %2469 = vmatpush.msra.mxu0 %v1688
    %2470 = vmatpush.msra.mxu0 %v1684
    %2471 = vmatpush.msra.mxu0 %v1680
    %2472 = vmatpush.msra.mxu0 %v1676
    %2473 = vmatpush.msra.mxu0 %v1672
    %2474 = vmatpush.msra.mxu0 %v1668
    %2475 = vmatpush.msra.mxu0 %v1664
    %2476 = vmatpush.msra.mxu0 %v1660
    %2477 = vmatmul.f32.gmra.mxu0 %v2459
    %v2478 = vpop.f32.mrf.mxu0
    %v2479 = vadd.f32 0.0, %v2478
    %2480 = vdwg.mxu0
    %2481 = vmatpush.msra.mxu0 %v1721
    %2482 = vmatpush.msra.mxu0 %v1717
    %2483 = vmatpush.msra.mxu0 %v1713
    %2484 = vmatpush.msra.mxu0 %v1709
    %2485 = vmatpush.msra.mxu0 %v1705
    %2486 = vmatpush.msra.mxu0 %v1701
    %2487 = vmatpush.msra.mxu0 %v1697
    %2488 = vmatpush.msra.mxu0 %v1693
    %2489 = vmatpush.msra.mxu0 %v1689
    %2490 = vmatpush.msra.mxu0 %v1685
    %2491 = vmatpush.msra.mxu0 %v1681
    %2492 = vmatpush.msra.mxu0 %v1677
    %2493 = vmatpush.msra.mxu0 %v1673
    %2494 = vmatpush.msra.mxu0 %v1669
    %2495 = vmatpush.msra.mxu0 %v1665
    %2496 = vmatpush.msra.mxu0 %v1661
    %2497 = vmatmul.f32.gmra.mxu0 %v2459
    %v2498 = vpop.f32.mrf.mxu0
    %v2499 = vadd.f32 0.0, %v2498
    %2500 = vdwg.mxu0
    %2501 = vmatpush.msra.mxu0 %v1722
    %2502 = vmatpush.msra.mxu0 %v1718
    %2503 = vmatpush.msra.mxu0 %v1714
    %2504 = vmatpush.msra.mxu0 %v1710
    %2505 = vmatpush.msra.mxu0 %v1706
    %2506 = vmatpush.msra.mxu0 %v1702
    %2507 = vmatpush.msra.mxu0 %v1698
    %2508 = vmatpush.msra.mxu0 %v1694
    %2509 = vmatpush.msra.mxu0 %v1690
    %2510 = vmatpush.msra.mxu0 %v1686
    %2511 = vmatpush.msra.mxu0 %v1682
    %2512 = vmatpush.msra.mxu0 %v1678
    %2513 = vmatpush.msra.mxu0 %v1674
    %2514 = vmatpush.msra.mxu0 %v1670
    %2515 = vmatpush.msra.mxu0 %v1666
    %2516 = vmatpush.msra.mxu0 %v1662
    %2517 = vmatmul.f32.gmra.mxu0 %v2459
    %v2518 = vpop.f32.mrf.mxu0
    %v2519 = vadd.f32 0.0, %v2518
    %2520 = vdwg.mxu0
    %2521 = vmatpush.msra.mxu0 %v1723
    %2522 = vmatpush.msra.mxu0 %v1719
    %2523 = vmatpush.msra.mxu0 %v1715
    %2524 = vmatpush.msra.mxu0 %v1711
    %2525 = vmatpush.msra.mxu0 %v1707
    %2526 = vmatpush.msra.mxu0 %v1703
    %2527 = vmatpush.msra.mxu0 %v1699
    %2528 = vmatpush.msra.mxu0 %v1695
    %2529 = vmatpush.msra.mxu0 %v1691
    %2530 = vmatpush.msra.mxu0 %v1687
    %2531 = vmatpush.msra.mxu0 %v1683
    %2532 = vmatpush.msra.mxu0 %v1679
    %2533 = vmatpush.msra.mxu0 %v1675
    %2534 = vmatpush.msra.mxu0 %v1671
    %2535 = vmatpush.msra.mxu0 %v1667
    %2536 = vmatpush.msra.mxu0 %v1663
    %2537 = vmatmul.f32.gmra.mxu0 %v2459
    %v2538 = vpop.f32.mrf.mxu0
    %v2539 = vadd.f32 0.0, %v2538
    %2540 = vdwg.mxu0
    %v2545 = vrot.slane %v2479, 4
    %v2546 = vrot.slane %v2499, 4
    %v2547 = vrot.slane %v2519, 4
    %v2548 = vrot.slane %v2539, 4
    %v2553 = vadd.f32 %v1753, %v2545
    %v2554 = vadd.f32 %v1773, %v2546
    %v2555 = vadd.f32 %v1793, %v2547
    %v2556 = vadd.f32 %v1813, %v2548
    %v2557 = vxor.u32 %v2553, 2147483648
    %v2558 = vxor.u32 %v2554, 2147483648
    %v2559 = vxor.u32 %v2555, 2147483648
    %v2560 = vmul.f32 %v2557, 1.442695
    %v2561 = vpow.pop %v2560
    %v2562 = vmul.f32 %v2558, 1.442695
    %v2563 = vpow.pop %v2562
    %v2564 = vmul.f32 %v2559, 1.442695
    %v2565 = vpow.pop %v2564
    %v2566 = vadd.f32 %v2561, 1.0
    %v2567 = vadd.f32 %v2563, 1.0
    %v2568 = vadd.f32 %v2565, 1.0
    %v2569 = vrcp.pop %v2566
    %v2570 = vmul.f32 %v2566, %v2569
    %v2571 = vsub.f32 1.0, %v2570
    %v2572 = vmul.f32 %v2569, %v2571
    %v2573 = vadd.f32 %v2569, %v2572
    %vm2574 = vweird.f32 %v2566
    %vm2575 = vweird.f32 %v2569
    %vm2576 = vmor %vm2574, %vm2575
    %v2577 = vsel %vm2576, %v2569, %v2573
    %v2578 = vand.u32 2147483647, %v2566
    %vm2579 = vcmp.eq.f32.partialorder %v2578, 8.507059e+37
    %v2580 = vand.u32 %v2566, 2147483648
    %v2581 = vor.u32 1.1754944e-38, %v2580
    %v2582 = vsel %vm2579, %v2581, %v2577
    %v2583 = vmul.f32 1.0, %v2582
    %v2584 = vrcp.pop %v2567
    %v2585 = vmul.f32 %v2567, %v2584
    %v2586 = vsub.f32 1.0, %v2585
    %v2587 = vmul.f32 %v2584, %v2586
    %v2588 = vadd.f32 %v2584, %v2587
    %vm2589 = vweird.f32 %v2567
    %vm2590 = vweird.f32 %v2584
    %vm2591 = vmor %vm2589, %vm2590
    %v2592 = vsel %vm2591, %v2584, %v2588
    %v2593 = vand.u32 2147483647, %v2567
    %vm2594 = vcmp.eq.f32.partialorder %v2593, 8.507059e+37
    %v2595 = vand.u32 %v2567, 2147483648
    %v2596 = vor.u32 1.1754944e-38, %v2595
    %v2597 = vsel %vm2594, %v2596, %v2592
    %v2598 = vmul.f32 1.0, %v2597
    %v2599 = vrcp.pop %v2568
    %v2600 = vmul.f32 %v2568, %v2599
    %v2601 = vsub.f32 1.0, %v2600
    %v2602 = vmul.f32 %v2599, %v2601
    %v2603 = vadd.f32 %v2599, %v2602
    %vm2604 = vweird.f32 %v2568
    %vm2605 = vweird.f32 %v2599
    %vm2606 = vmor %vm2604, %vm2605
    %v2607 = vsel %vm2606, %v2599, %v2603
    %v2608 = vand.u32 2147483647, %v2568
    %vm2609 = vcmp.eq.f32.partialorder %v2608, 8.507059e+37
    %v2610 = vand.u32 %v2568, 2147483648
    %v2611 = vor.u32 1.1754944e-38, %v2610
    %v2612 = vsel %vm2609, %v2611, %v2607
    %v2613 = vmul.f32 1.0, %v2612
    %v2614 = vtanh.pop %v2556
    %v2616 = vrot.slane %v2455, 7
    %v2618 = vmul.f32 %v2598, %v2616
    %v2619 = vmul.f32 %v2583, %v2614
    %v2620 = vadd.f32 %v2618, %v2619
    %v2621 = vtanh.pop %v2620
    %v2622 = vmul.f32 %v2613, %v2621
    %v2624 = vrot.slane %v2622, 4
    %2626 = vmatpush.msra.mxu0 %v1720
    %2627 = vmatpush.msra.mxu0 %v1716
    %2628 = vmatpush.msra.mxu0 %v1712
    %2629 = vmatpush.msra.mxu0 %v1708
    %2630 = vmatpush.msra.mxu0 %v1704
    %2631 = vmatpush.msra.mxu0 %v1700
    %2632 = vmatpush.msra.mxu0 %v1696
    %2633 = vmatpush.msra.mxu0 %v1692
    %2634 = vmatpush.msra.mxu0 %v1688
    %2635 = vmatpush.msra.mxu0 %v1684
    %2636 = vmatpush.msra.mxu0 %v1680
    %2637 = vmatpush.msra.mxu0 %v1676
    %2638 = vmatpush.msra.mxu0 %v1672
    %2639 = vmatpush.msra.mxu0 %v1668
    %2640 = vmatpush.msra.mxu0 %v1664
    %2641 = vmatpush.msra.mxu0 %v1660
    %2642 = vmatmul.f32.gmra.mxu0 %v2624
    %v2643 = vpop.f32.mrf.mxu0
    %v2644 = vadd.f32 0.0, %v2643
    %2645 = vdwg.mxu0
    %2646 = vmatpush.msra.mxu0 %v1721
    %2647 = vmatpush.msra.mxu0 %v1717
    %2648 = vmatpush.msra.mxu0 %v1713
    %2649 = vmatpush.msra.mxu0 %v1709
    %2650 = vmatpush.msra.mxu0 %v1705
    %2651 = vmatpush.msra.mxu0 %v1701
    %2652 = vmatpush.msra.mxu0 %v1697
    %2653 = vmatpush.msra.mxu0 %v1693
    %2654 = vmatpush.msra.mxu0 %v1689
    %2655 = vmatpush.msra.mxu0 %v1685
    %2656 = vmatpush.msra.mxu0 %v1681
    %2657 = vmatpush.msra.mxu0 %v1677
    %2658 = vmatpush.msra.mxu0 %v1673
    %2659 = vmatpush.msra.mxu0 %v1669
    %2660 = vmatpush.msra.mxu0 %v1665
    %2661 = vmatpush.msra.mxu0 %v1661
    %2662 = vmatmul.f32.gmra.mxu0 %v2624
    %v2663 = vpop.f32.mrf.mxu0
    %v2664 = vadd.f32 0.0, %v2663
    %2665 = vdwg.mxu0
    %2666 = vmatpush.msra.mxu0 %v1722
    %2667 = vmatpush.msra.mxu0 %v1718
    %2668 = vmatpush.msra.mxu0 %v1714
    %2669 = vmatpush.msra.mxu0 %v1710
    %2670 = vmatpush.msra.mxu0 %v1706
    %2671 = vmatpush.msra.mxu0 %v1702
    %2672 = vmatpush.msra.mxu0 %v1698
    %2673 = vmatpush.msra.mxu0 %v1694
    %2674 = vmatpush.msra.mxu0 %v1690
    %2675 = vmatpush.msra.mxu0 %v1686
    %2676 = vmatpush.msra.mxu0 %v1682
    %2677 = vmatpush.msra.mxu0 %v1678
    %2678 = vmatpush.msra.mxu0 %v1674
    %2679 = vmatpush.msra.mxu0 %v1670
    %2680 = vmatpush.msra.mxu0 %v1666
    %2681 = vmatpush.msra.mxu0 %v1662
    %2682 = vmatmul.f32.gmra.mxu0 %v2624
    %v2683 = vpop.f32.mrf.mxu0
    %v2684 = vadd.f32 0.0, %v2683
    %2685 = vdwg.mxu0
    %2686 = vmatpush.msra.mxu0 %v1723
    %2687 = vmatpush.msra.mxu0 %v1719
    %2688 = vmatpush.msra.mxu0 %v1715
    %2689 = vmatpush.msra.mxu0 %v1711
    %2690 = vmatpush.msra.mxu0 %v1707
    %2691 = vmatpush.msra.mxu0 %v1703
    %2692 = vmatpush.msra.mxu0 %v1699
    %2693 = vmatpush.msra.mxu0 %v1695
    %2694 = vmatpush.msra.mxu0 %v1691
    %2695 = vmatpush.msra.mxu0 %v1687
    %2696 = vmatpush.msra.mxu0 %v1683
    %2697 = vmatpush.msra.mxu0 %v1679
    %2698 = vmatpush.msra.mxu0 %v1675
    %2699 = vmatpush.msra.mxu0 %v1671
    %2700 = vmatpush.msra.mxu0 %v1667
    %2701 = vmatpush.msra.mxu0 %v1663
    %2702 = vmatmul.f32.gmra.mxu0 %v2624
    %v2703 = vpop.f32.mrf.mxu0
    %v2704 = vadd.f32 0.0, %v2703
    %2705 = vdwg.mxu0
    %v2710 = vrot.slane %v2644, 3
    %v2711 = vrot.slane %v2664, 3
    %v2712 = vrot.slane %v2684, 3
    %v2713 = vrot.slane %v2704, 3
    %v2718 = vadd.f32 %v1753, %v2710
    %v2719 = vadd.f32 %v1773, %v2711
    %v2720 = vadd.f32 %v1793, %v2712
    %v2721 = vadd.f32 %v1813, %v2713
    %v2722 = vxor.u32 %v2718, 2147483648
    %v2723 = vxor.u32 %v2719, 2147483648
    %v2724 = vxor.u32 %v2720, 2147483648
    %v2725 = vmul.f32 %v2722, 1.442695
    %v2726 = vpow.pop %v2725
    %v2727 = vmul.f32 %v2723, 1.442695
    %v2728 = vpow.pop %v2727
    %v2729 = vmul.f32 %v2724, 1.442695
    %v2730 = vpow.pop %v2729
    %v2731 = vadd.f32 %v2726, 1.0
    %v2732 = vadd.f32 %v2728, 1.0
    %v2733 = vadd.f32 %v2730, 1.0
    %v2734 = vrcp.pop %v2731
    %v2735 = vmul.f32 %v2731, %v2734
    %v2736 = vsub.f32 1.0, %v2735
    %v2737 = vmul.f32 %v2734, %v2736
    %v2738 = vadd.f32 %v2734, %v2737
    %vm2739 = vweird.f32 %v2731
    %vm2740 = vweird.f32 %v2734
    %vm2741 = vmor %vm2739, %vm2740
    %v2742 = vsel %vm2741, %v2734, %v2738
    %v2743 = vand.u32 2147483647, %v2731
    %vm2744 = vcmp.eq.f32.partialorder %v2743, 8.507059e+37
    %v2745 = vand.u32 %v2731, 2147483648
    %v2746 = vor.u32 1.1754944e-38, %v2745
    %v2747 = vsel %vm2744, %v2746, %v2742
    %v2748 = vmul.f32 1.0, %v2747
    %v2749 = vrcp.pop %v2732
    %v2750 = vmul.f32 %v2732, %v2749
    %v2751 = vsub.f32 1.0, %v2750
    %v2752 = vmul.f32 %v2749, %v2751
    %v2753 = vadd.f32 %v2749, %v2752
    %vm2754 = vweird.f32 %v2732
    %vm2755 = vweird.f32 %v2749
    %vm2756 = vmor %vm2754, %vm2755
    %v2757 = vsel %vm2756, %v2749, %v2753
    %v2758 = vand.u32 2147483647, %v2732
    %vm2759 = vcmp.eq.f32.partialorder %v2758, 8.507059e+37
    %v2760 = vand.u32 %v2732, 2147483648
    %v2761 = vor.u32 1.1754944e-38, %v2760
    %v2762 = vsel %vm2759, %v2761, %v2757
    %v2763 = vmul.f32 1.0, %v2762
    %v2764 = vrcp.pop %v2733
    %v2765 = vmul.f32 %v2733, %v2764
    %v2766 = vsub.f32 1.0, %v2765
    %v2767 = vmul.f32 %v2764, %v2766
    %v2768 = vadd.f32 %v2764, %v2767
    %vm2769 = vweird.f32 %v2733
    %vm2770 = vweird.f32 %v2764
    %vm2771 = vmor %vm2769, %vm2770
    %v2772 = vsel %vm2771, %v2764, %v2768
    %v2773 = vand.u32 2147483647, %v2733
    %vm2774 = vcmp.eq.f32.partialorder %v2773, 8.507059e+37
    %v2775 = vand.u32 %v2733, 2147483648
    %v2776 = vor.u32 1.1754944e-38, %v2775
    %v2777 = vsel %vm2774, %v2776, %v2772
    %v2778 = vmul.f32 1.0, %v2777
    %v2779 = vtanh.pop %v2721
    %v2781 = vrot.slane %v2620, 7
    %v2783 = vmul.f32 %v2763, %v2781
    %v2784 = vmul.f32 %v2748, %v2779
    %v2785 = vadd.f32 %v2783, %v2784
    %v2786 = vtanh.pop %v2785
    %v2787 = vmul.f32 %v2778, %v2786
    %v2789 = vrot.slane %v2787, 5
    %2791 = vmatpush.msra.mxu0 %v1720
    %2792 = vmatpush.msra.mxu0 %v1716
    %2793 = vmatpush.msra.mxu0 %v1712
    %2794 = vmatpush.msra.mxu0 %v1708
    %2795 = vmatpush.msra.mxu0 %v1704
    %2796 = vmatpush.msra.mxu0 %v1700
    %2797 = vmatpush.msra.mxu0 %v1696
    %2798 = vmatpush.msra.mxu0 %v1692
    %2799 = vmatpush.msra.mxu0 %v1688
    %2800 = vmatpush.msra.mxu0 %v1684
    %2801 = vmatpush.msra.mxu0 %v1680
    %2802 = vmatpush.msra.mxu0 %v1676
    %2803 = vmatpush.msra.mxu0 %v1672
    %2804 = vmatpush.msra.mxu0 %v1668
    %2805 = vmatpush.msra.mxu0 %v1664
    %2806 = vmatpush.msra.mxu0 %v1660
    %2807 = vmatmul.f32.gmra.mxu0 %v2789
    %v2808 = vpop.f32.mrf.mxu0
    %v2809 = vadd.f32 0.0, %v2808
    %2810 = vdwg.mxu0
    %2811 = vmatpush.msra.mxu0 %v1721
    %2812 = vmatpush.msra.mxu0 %v1717
    %2813 = vmatpush.msra.mxu0 %v1713
    %2814 = vmatpush.msra.mxu0 %v1709
    %2815 = vmatpush.msra.mxu0 %v1705
    %2816 = vmatpush.msra.mxu0 %v1701
    %2817 = vmatpush.msra.mxu0 %v1697
    %2818 = vmatpush.msra.mxu0 %v1693
    %2819 = vmatpush.msra.mxu0 %v1689
    %2820 = vmatpush.msra.mxu0 %v1685
    %2821 = vmatpush.msra.mxu0 %v1681
    %2822 = vmatpush.msra.mxu0 %v1677
    %2823 = vmatpush.msra.mxu0 %v1673
    %2824 = vmatpush.msra.mxu0 %v1669
    %2825 = vmatpush.msra.mxu0 %v1665
    %2826 = vmatpush.msra.mxu0 %v1661
    %2827 = vmatmul.f32.gmra.mxu0 %v2789
    %v2828 = vpop.f32.mrf.mxu0
    %v2829 = vadd.f32 0.0, %v2828
    %2830 = vdwg.mxu0
    %2831 = vmatpush.msra.mxu0 %v1722
    %2832 = vmatpush.msra.mxu0 %v1718
    %2833 = vmatpush.msra.mxu0 %v1714
    %2834 = vmatpush.msra.mxu0 %v1710
    %2835 = vmatpush.msra.mxu0 %v1706
    %2836 = vmatpush.msra.mxu0 %v1702
    %2837 = vmatpush.msra.mxu0 %v1698
    %2838 = vmatpush.msra.mxu0 %v1694
    %2839 = vmatpush.msra.mxu0 %v1690
    %2840 = vmatpush.msra.mxu0 %v1686
    %2841 = vmatpush.msra.mxu0 %v1682
    %2842 = vmatpush.msra.mxu0 %v1678
    %2843 = vmatpush.msra.mxu0 %v1674
    %2844 = vmatpush.msra.mxu0 %v1670
    %2845 = vmatpush.msra.mxu0 %v1666
    %2846 = vmatpush.msra.mxu0 %v1662
    %2847 = vmatmul.f32.gmra.mxu0 %v2789
    %v2848 = vpop.f32.mrf.mxu0
    %v2849 = vadd.f32 0.0, %v2848
    %2850 = vdwg.mxu0
    %2851 = vmatpush.msra.mxu0 %v1723
    %2852 = vmatpush.msra.mxu0 %v1719
    %2853 = vmatpush.msra.mxu0 %v1715
    %2854 = vmatpush.msra.mxu0 %v1711
    %2855 = vmatpush.msra.mxu0 %v1707
    %2856 = vmatpush.msra.mxu0 %v1703
    %2857 = vmatpush.msra.mxu0 %v1699
    %2858 = vmatpush.msra.mxu0 %v1695
    %2859 = vmatpush.msra.mxu0 %v1691
    %2860 = vmatpush.msra.mxu0 %v1687
    %2861 = vmatpush.msra.mxu0 %v1683
    %2862 = vmatpush.msra.mxu0 %v1679
    %2863 = vmatpush.msra.mxu0 %v1675
    %2864 = vmatpush.msra.mxu0 %v1671
    %2865 = vmatpush.msra.mxu0 %v1667
    %2866 = vmatpush.msra.mxu0 %v1663
    %2867 = vmatmul.f32.gmra.mxu0 %v2789
    %v2868 = vpop.f32.mrf.mxu0
    %v2869 = vadd.f32 0.0, %v2868
    %2870 = vdwg.mxu0
    %v2875 = vrot.slane %v2809, 2
    %v2876 = vrot.slane %v2829, 2
    %v2877 = vrot.slane %v2849, 2
    %v2878 = vrot.slane %v2869, 2
    %v2883 = vadd.f32 %v1753, %v2875
    %v2884 = vadd.f32 %v1773, %v2876
    %v2885 = vadd.f32 %v1793, %v2877
    %v2886 = vadd.f32 %v1813, %v2878
    %v2887 = vxor.u32 %v2883, 2147483648
    %v2888 = vxor.u32 %v2884, 2147483648
    %v2889 = vxor.u32 %v2885, 2147483648
    %v2890 = vmul.f32 %v2887, 1.442695
    %v2891 = vpow.pop %v2890
    %v2892 = vmul.f32 %v2888, 1.442695
    %v2893 = vpow.pop %v2892
    %v2894 = vmul.f32 %v2889, 1.442695
    %v2895 = vpow.pop %v2894
    %v2896 = vadd.f32 %v2891, 1.0
    %v2897 = vadd.f32 %v2893, 1.0
    %v2898 = vadd.f32 %v2895, 1.0
    %v2899 = vrcp.pop %v2896
    %v2900 = vmul.f32 %v2896, %v2899
    %v2901 = vsub.f32 1.0, %v2900
    %v2902 = vmul.f32 %v2899, %v2901
    %v2903 = vadd.f32 %v2899, %v2902
    %vm2904 = vweird.f32 %v2896
    %vm2905 = vweird.f32 %v2899
    %vm2906 = vmor %vm2904, %vm2905
    %v2907 = vsel %vm2906, %v2899, %v2903
    %v2908 = vand.u32 2147483647, %v2896
    %vm2909 = vcmp.eq.f32.partialorder %v2908, 8.507059e+37
    %v2910 = vand.u32 %v2896, 2147483648
    %v2911 = vor.u32 1.1754944e-38, %v2910
    %v2912 = vsel %vm2909, %v2911, %v2907
    %v2913 = vmul.f32 1.0, %v2912
    %v2914 = vrcp.pop %v2897
    %v2915 = vmul.f32 %v2897, %v2914
    %v2916 = vsub.f32 1.0, %v2915
    %v2917 = vmul.f32 %v2914, %v2916
    %v2918 = vadd.f32 %v2914, %v2917
    %vm2919 = vweird.f32 %v2897
    %vm2920 = vweird.f32 %v2914
    %vm2921 = vmor %vm2919, %vm2920
    %v2922 = vsel %vm2921, %v2914, %v2918
    %v2923 = vand.u32 2147483647, %v2897
    %vm2924 = vcmp.eq.f32.partialorder %v2923, 8.507059e+37
    %v2925 = vand.u32 %v2897, 2147483648
    %v2926 = vor.u32 1.1754944e-38, %v2925
    %v2927 = vsel %vm2924, %v2926, %v2922
    %v2928 = vmul.f32 1.0, %v2927
    %v2929 = vrcp.pop %v2898
    %v2930 = vmul.f32 %v2898, %v2929
    %v2931 = vsub.f32 1.0, %v2930
    %v2932 = vmul.f32 %v2929, %v2931
    %v2933 = vadd.f32 %v2929, %v2932
    %vm2934 = vweird.f32 %v2898
    %vm2935 = vweird.f32 %v2929
    %vm2936 = vmor %vm2934, %vm2935
    %v2937 = vsel %vm2936, %v2929, %v2933
    %v2938 = vand.u32 2147483647, %v2898
    %vm2939 = vcmp.eq.f32.partialorder %v2938, 8.507059e+37
    %v2940 = vand.u32 %v2898, 2147483648
    %v2941 = vor.u32 1.1754944e-38, %v2940
    %v2942 = vsel %vm2939, %v2941, %v2937
    %v2943 = vmul.f32 1.0, %v2942
    %v2944 = vtanh.pop %v2886
    %v2946 = vrot.slane %v2785, 7
    %v2948 = vmul.f32 %v2928, %v2946
    %v2949 = vmul.f32 %v2913, %v2944
    %v2950 = vadd.f32 %v2948, %v2949
    %v2951 = vtanh.pop %v2950
    %v2952 = vmul.f32 %v2943, %v2951
    %v2954 = vrot.slane %v2952, 6
    %2956 = vmatpush.msra.mxu0 %v1720
    %2957 = vmatpush.msra.mxu0 %v1716
    %2958 = vmatpush.msra.mxu0 %v1712
    %2959 = vmatpush.msra.mxu0 %v1708
    %2960 = vmatpush.msra.mxu0 %v1704
    %2961 = vmatpush.msra.mxu0 %v1700
    %2962 = vmatpush.msra.mxu0 %v1696
    %2963 = vmatpush.msra.mxu0 %v1692
    %2964 = vmatpush.msra.mxu0 %v1688
    %2965 = vmatpush.msra.mxu0 %v1684
    %2966 = vmatpush.msra.mxu0 %v1680
    %2967 = vmatpush.msra.mxu0 %v1676
    %2968 = vmatpush.msra.mxu0 %v1672
    %2969 = vmatpush.msra.mxu0 %v1668
    %2970 = vmatpush.msra.mxu0 %v1664
    %2971 = vmatpush.msra.mxu0 %v1660
    %2972 = vmatmul.f32.gmra.mxu0 %v2954
    %v2973 = vpop.f32.mrf.mxu0
    %v2974 = vadd.f32 0.0, %v2973
    %2975 = vdwg.mxu0
    %2976 = vmatpush.msra.mxu0 %v1721
    %2977 = vmatpush.msra.mxu0 %v1717
    %2978 = vmatpush.msra.mxu0 %v1713
    %2979 = vmatpush.msra.mxu0 %v1709
    %2980 = vmatpush.msra.mxu0 %v1705
    %2981 = vmatpush.msra.mxu0 %v1701
    %2982 = vmatpush.msra.mxu0 %v1697
    %2983 = vmatpush.msra.mxu0 %v1693
    %2984 = vmatpush.msra.mxu0 %v1689
    %2985 = vmatpush.msra.mxu0 %v1685
    %2986 = vmatpush.msra.mxu0 %v1681
    %2987 = vmatpush.msra.mxu0 %v1677
    %2988 = vmatpush.msra.mxu0 %v1673
    %2989 = vmatpush.msra.mxu0 %v1669
    %2990 = vmatpush.msra.mxu0 %v1665
    %2991 = vmatpush.msra.mxu0 %v1661
    %2992 = vmatmul.f32.gmra.mxu0 %v2954
    %v2993 = vpop.f32.mrf.mxu0
    %v2994 = vadd.f32 0.0, %v2993
    %2995 = vdwg.mxu0
    %2996 = vmatpush.msra.mxu0 %v1722
    %2997 = vmatpush.msra.mxu0 %v1718
    %2998 = vmatpush.msra.mxu0 %v1714
    %2999 = vmatpush.msra.mxu0 %v1710
    %3000 = vmatpush.msra.mxu0 %v1706
    %3001 = vmatpush.msra.mxu0 %v1702
    %3002 = vmatpush.msra.mxu0 %v1698
    %3003 = vmatpush.msra.mxu0 %v1694
    %3004 = vmatpush.msra.mxu0 %v1690
    %3005 = vmatpush.msra.mxu0 %v1686
    %3006 = vmatpush.msra.mxu0 %v1682
    %3007 = vmatpush.msra.mxu0 %v1678
    %3008 = vmatpush.msra.mxu0 %v1674
    %3009 = vmatpush.msra.mxu0 %v1670
    %3010 = vmatpush.msra.mxu0 %v1666
    %3011 = vmatpush.msra.mxu0 %v1662
    %3012 = vmatmul.f32.gmra.mxu0 %v2954
    %v3013 = vpop.f32.mrf.mxu0
    %v3014 = vadd.f32 0.0, %v3013
    %3015 = vdwg.mxu0
    %3016 = vmatpush.msra.mxu0 %v1723
    %3017 = vmatpush.msra.mxu0 %v1719
    %3018 = vmatpush.msra.mxu0 %v1715
    %3019 = vmatpush.msra.mxu0 %v1711
    %3020 = vmatpush.msra.mxu0 %v1707
    %3021 = vmatpush.msra.mxu0 %v1703
    %3022 = vmatpush.msra.mxu0 %v1699
    %3023 = vmatpush.msra.mxu0 %v1695
    %3024 = vmatpush.msra.mxu0 %v1691
    %3025 = vmatpush.msra.mxu0 %v1687
    %3026 = vmatpush.msra.mxu0 %v1683
    %3027 = vmatpush.msra.mxu0 %v1679
    %3028 = vmatpush.msra.mxu0 %v1675
    %3029 = vmatpush.msra.mxu0 %v1671
    %3030 = vmatpush.msra.mxu0 %v1667
    %3031 = vmatpush.msra.mxu0 %v1663
    %3032 = vmatmul.f32.gmra.mxu0 %v2954
    %v3033 = vpop.f32.mrf.mxu0
    %v3034 = vadd.f32 0.0, %v3033
    %3035 = vdwg.mxu0
    %v3040 = vrot.slane %v2974, 1
    %v3041 = vrot.slane %v2994, 1
    %v3042 = vrot.slane %v3014, 1
    %v3043 = vrot.slane %v3034, 1
    %v3048 = vadd.f32 %v1753, %v3040
    %v3049 = vadd.f32 %v1773, %v3041
    %v3050 = vadd.f32 %v1793, %v3042
    %v3051 = vadd.f32 %v1813, %v3043
    %v3052 = vxor.u32 %v3048, 2147483648
    %v3053 = vxor.u32 %v3049, 2147483648
    %v3054 = vxor.u32 %v3050, 2147483648
    %v3055 = vmul.f32 %v3052, 1.442695
    %v3056 = vpow.pop %v3055
    %v3057 = vmul.f32 %v3053, 1.442695
    %v3058 = vpow.pop %v3057
    %v3059 = vmul.f32 %v3054, 1.442695
    %v3060 = vpow.pop %v3059
    %v3061 = vadd.f32 %v3056, 1.0
    %v3062 = vadd.f32 %v3058, 1.0
    %v3063 = vadd.f32 %v3060, 1.0
    %v3064 = vrcp.pop %v3061
    %v3065 = vmul.f32 %v3061, %v3064
    %v3066 = vsub.f32 1.0, %v3065
    %v3067 = vmul.f32 %v3064, %v3066
    %v3068 = vadd.f32 %v3064, %v3067
    %vm3069 = vweird.f32 %v3061
    %vm3070 = vweird.f32 %v3064
    %vm3071 = vmor %vm3069, %vm3070
    %v3072 = vsel %vm3071, %v3064, %v3068
    %v3073 = vand.u32 2147483647, %v3061
    %vm3074 = vcmp.eq.f32.partialorder %v3073, 8.507059e+37
    %v3075 = vand.u32 %v3061, 2147483648
    %v3076 = vor.u32 1.1754944e-38, %v3075
    %v3077 = vsel %vm3074, %v3076, %v3072
    %v3078 = vmul.f32 1.0, %v3077
    %v3079 = vrcp.pop %v3062
    %v3080 = vmul.f32 %v3062, %v3079
    %v3081 = vsub.f32 1.0, %v3080
    %v3082 = vmul.f32 %v3079, %v3081
    %v3083 = vadd.f32 %v3079, %v3082
    %vm3084 = vweird.f32 %v3062
    %vm3085 = vweird.f32 %v3079
    %vm3086 = vmor %vm3084, %vm3085
    %v3087 = vsel %vm3086, %v3079, %v3083
    %v3088 = vand.u32 2147483647, %v3062
    %vm3089 = vcmp.eq.f32.partialorder %v3088, 8.507059e+37
    %v3090 = vand.u32 %v3062, 2147483648
    %v3091 = vor.u32 1.1754944e-38, %v3090
    %v3092 = vsel %vm3089, %v3091, %v3087
    %v3093 = vmul.f32 1.0, %v3092
    %v3094 = vrcp.pop %v3063
    %v3095 = vmul.f32 %v3063, %v3094
    %v3096 = vsub.f32 1.0, %v3095
    %v3097 = vmul.f32 %v3094, %v3096
    %v3098 = vadd.f32 %v3094, %v3097
    %vm3099 = vweird.f32 %v3063
    %vm3100 = vweird.f32 %v3094
    %vm3101 = vmor %vm3099, %vm3100
    %v3102 = vsel %vm3101, %v3094, %v3098
    %v3103 = vand.u32 2147483647, %v3063
    %vm3104 = vcmp.eq.f32.partialorder %v3103, 8.507059e+37
    %v3105 = vand.u32 %v3063, 2147483648
    %v3106 = vor.u32 1.1754944e-38, %v3105
    %v3107 = vsel %vm3104, %v3106, %v3102
    %v3108 = vmul.f32 1.0, %v3107
    %v3109 = vtanh.pop %v3051
    %v3111 = vrot.slane %v2950, 7
    %v3113 = vmul.f32 %v3093, %v3111
    %v3114 = vmul.f32 %v3078, %v3109
    %v3115 = vadd.f32 %v3113, %v3114
    %v3116 = vtanh.pop %v3115
    %v3117 = vmul.f32 %v3108, %v3116
    %v3118 = vsel %vm1580, %v1965, %v2127
    %v3119 = vsel %vm1582, %v3118, %v2292
    %v3120 = vsel %vm1584, %v3119, %v2457
    %v3121 = vsel %vm1586, %v3120, %v2622
    %v3122 = vsel %vm1588, %v3121, %v2787
    %v3123 = vsel %vm1590, %v3122, %v2952
    %v3124 = vsel %vm1592, %v3123, %v3117
    %s3125 = scalar_lea.vmem [#allocation2], 1024
    %v3126 = vld [vmem:[%s3125] sm:$0xff]
    %v3127 = vld [vmem:[%s3125 + $0x8] sm:$0xff]
    %v3128 = vld [vmem:[%s3125 + $0x10] sm:$0xff]
    %v3129 = vld [vmem:[%s3125 + $0x18] sm:$0xff]
    %v3130 = vld [vmem:[%s3125 + $0x20] sm:$0xff]
    %v3131 = vld [vmem:[%s3125 + $0x28] sm:$0xff]
    %v3132 = vld [vmem:[%s3125 + $0x30] sm:$0xff]
    %v3133 = vld [vmem:[%s3125 + $0x38] sm:$0xff]
    %v3134 = vld [vmem:[%s3125 + $0x40] sm:$0xff]
    %v3135 = vld [vmem:[%s3125 + $0x48] sm:$0xff]
    %v3136 = vld [vmem:[%s3125 + $0x50] sm:$0xff]
    %v3137 = vld [vmem:[%s3125 + $0x58] sm:$0xff]
    %v3138 = vld [vmem:[%s3125 + $0x60] sm:$0xff]
    %v3139 = vld [vmem:[%s3125 + $0x68] sm:$0xff]
    %v3140 = vld [vmem:[%s3125 + $0x70] sm:$0xff]
    %v3141 = vld [vmem:[%s3125 + $0x78] sm:$0xff]
    %v3142 = vld [vmem:[%s3125 + $0x80] sm:$0xff]
    %v3143 = vld [vmem:[%s3125 + $0x88] sm:$0xff]
    %v3144 = vld [vmem:[%s3125 + $0x90] sm:$0xff]
    %v3145 = vld [vmem:[%s3125 + $0x98] sm:$0xff]
    %v3146 = vld [vmem:[%s3125 + $0xa0] sm:$0xff]
    %v3147 = vld [vmem:[%s3125 + $0xa8] sm:$0xff]
    %v3148 = vld [vmem:[%s3125 + $0xb0] sm:$0xff]
    %v3149 = vld [vmem:[%s3125 + $0xb8] sm:$0xff]
    %v3150 = vld [vmem:[%s3125 + $0xc0] sm:$0xff]
    %v3151 = vld [vmem:[%s3125 + $0xc8] sm:$0xff]
    %v3152 = vld [vmem:[%s3125 + $0xd0] sm:$0xff]
    %v3153 = vld [vmem:[%s3125 + $0xd8] sm:$0xff]
    %v3154 = vld [vmem:[%s3125 + $0xe0] sm:$0xff]
    %v3155 = vld [vmem:[%s3125 + $0xe8] sm:$0xff]
    %v3156 = vld [vmem:[%s3125 + $0xf0] sm:$0xff]
    %v3157 = vld [vmem:[%s3125 + $0xf8] sm:$0xff]
    %v3158 = vld [vmem:[%s3125 + $0x100] sm:$0xff]
    %v3159 = vld [vmem:[%s3125 + $0x108] sm:$0xff]
    %v3160 = vld [vmem:[%s3125 + $0x110] sm:$0xff]
    %v3161 = vld [vmem:[%s3125 + $0x118] sm:$0xff]
    %v3162 = vld [vmem:[%s3125 + $0x120] sm:$0xff]
    %v3163 = vld [vmem:[%s3125 + $0x128] sm:$0xff]
    %v3164 = vld [vmem:[%s3125 + $0x130] sm:$0xff]
    %v3165 = vld [vmem:[%s3125 + $0x138] sm:$0xff]
    %v3166 = vld [vmem:[%s3125 + $0x140] sm:$0xff]
    %v3167 = vld [vmem:[%s3125 + $0x148] sm:$0xff]
    %v3168 = vld [vmem:[%s3125 + $0x150] sm:$0xff]
    %v3169 = vld [vmem:[%s3125 + $0x158] sm:$0xff]
    %v3170 = vld [vmem:[%s3125 + $0x160] sm:$0xff]
    %v3171 = vld [vmem:[%s3125 + $0x168] sm:$0xff]
    %v3172 = vld [vmem:[%s3125 + $0x170] sm:$0xff]
    %v3173 = vld [vmem:[%s3125 + $0x178] sm:$0xff]
    %v3174 = vld [vmem:[%s3125 + $0x180] sm:$0xff]
    %v3175 = vld [vmem:[%s3125 + $0x188] sm:$0xff]
    %v3176 = vld [vmem:[%s3125 + $0x190] sm:$0xff]
    %v3177 = vld [vmem:[%s3125 + $0x198] sm:$0xff]
    %v3178 = vld [vmem:[%s3125 + $0x1a0] sm:$0xff]
    %v3179 = vld [vmem:[%s3125 + $0x1a8] sm:$0xff]
    %v3180 = vld [vmem:[%s3125 + $0x1b0] sm:$0xff]
    %v3181 = vld [vmem:[%s3125 + $0x1b8] sm:$0xff]
    %v3182 = vld [vmem:[%s3125 + $0x1c0] sm:$0xff]
    %v3183 = vld [vmem:[%s3125 + $0x1c8] sm:$0xff]
    %v3184 = vld [vmem:[%s3125 + $0x1d0] sm:$0xff]
    %v3185 = vld [vmem:[%s3125 + $0x1d8] sm:$0xff]
    %v3186 = vld [vmem:[%s3125 + $0x1e0] sm:$0xff]
    %v3187 = vld [vmem:[%s3125 + $0x1e8] sm:$0xff]
    %v3188 = vld [vmem:[%s3125 + $0x1f0] sm:$0xff]
    %v3189 = vld [vmem:[%s3125 + $0x1f8] sm:$0xff]
    %s3190 = scalar_lea.vmem [#allocation5], 1024
    %v3191 = vld [vmem:[%s3190] sm:$0xff]
    %v3192 = vld [vmem:[%s3190 + $0x8] sm:$0xff]
    %v3193 = vld [vmem:[%s3190 + $0x10] sm:$0xff]
    %v3194 = vld [vmem:[%s3190 + $0x18] sm:$0xff]
    %v3195 = vld [vmem:[%s3190 + $0x20] sm:$0xff]
    %v3196 = vld [vmem:[%s3190 + $0x28] sm:$0xff]
    %v3197 = vld [vmem:[%s3190 + $0x30] sm:$0xff]
    %v3198 = vld [vmem:[%s3190 + $0x38] sm:$0xff]
    %v3199 = vld [vmem:[%s3190 + $0x40] sm:$0xff]
    %v3200 = vld [vmem:[%s3190 + $0x48] sm:$0xff]
    %v3201 = vld [vmem:[%s3190 + $0x50] sm:$0xff]
    %v3202 = vld [vmem:[%s3190 + $0x58] sm:$0xff]
    %v3203 = vld [vmem:[%s3190 + $0x60] sm:$0xff]
    %v3204 = vld [vmem:[%s3190 + $0x68] sm:$0xff]
    %v3205 = vld [vmem:[%s3190 + $0x70] sm:$0xff]
    %v3206 = vld [vmem:[%s3190 + $0x78] sm:$0xff]
    %v3207 = vld [vmem:[%s3190 + $0x80] sm:$0xff]
    %v3208 = vld [vmem:[%s3190 + $0x88] sm:$0xff]
    %v3209 = vld [vmem:[%s3190 + $0x90] sm:$0xff]
    %v3210 = vld [vmem:[%s3190 + $0x98] sm:$0xff]
    %v3211 = vld [vmem:[%s3190 + $0xa0] sm:$0xff]
    %v3212 = vld [vmem:[%s3190 + $0xa8] sm:$0xff]
    %v3213 = vld [vmem:[%s3190 + $0xb0] sm:$0xff]
    %v3214 = vld [vmem:[%s3190 + $0xb8] sm:$0xff]
    %v3215 = vld [vmem:[%s3190 + $0xc0] sm:$0xff]
    %v3216 = vld [vmem:[%s3190 + $0xc8] sm:$0xff]
    %v3217 = vld [vmem:[%s3190 + $0xd0] sm:$0xff]
    %v3218 = vld [vmem:[%s3190 + $0xd8] sm:$0xff]
    %v3219 = vld [vmem:[%s3190 + $0xe0] sm:$0xff]
    %v3220 = vld [vmem:[%s3190 + $0xe8] sm:$0xff]
    %v3221 = vld [vmem:[%s3190 + $0xf0] sm:$0xff]
    %v3222 = vld [vmem:[%s3190 + $0xf8] sm:$0xff]
    %v3223 = vld [vmem:[%s3190 + $0x100] sm:$0xff]
    %v3224 = vld [vmem:[%s3190 + $0x108] sm:$0xff]
    %v3225 = vld [vmem:[%s3190 + $0x110] sm:$0xff]
    %v3226 = vld [vmem:[%s3190 + $0x118] sm:$0xff]
    %v3227 = vld [vmem:[%s3190 + $0x120] sm:$0xff]
    %v3228 = vld [vmem:[%s3190 + $0x128] sm:$0xff]
    %v3229 = vld [vmem:[%s3190 + $0x130] sm:$0xff]
    %v3230 = vld [vmem:[%s3190 + $0x138] sm:$0xff]
    %v3231 = vld [vmem:[%s3190 + $0x140] sm:$0xff]
    %v3232 = vld [vmem:[%s3190 + $0x148] sm:$0xff]
    %v3233 = vld [vmem:[%s3190 + $0x150] sm:$0xff]
    %v3234 = vld [vmem:[%s3190 + $0x158] sm:$0xff]
    %v3235 = vld [vmem:[%s3190 + $0x160] sm:$0xff]
    %v3236 = vld [vmem:[%s3190 + $0x168] sm:$0xff]
    %v3237 = vld [vmem:[%s3190 + $0x170] sm:$0xff]
    %v3238 = vld [vmem:[%s3190 + $0x178] sm:$0xff]
    %v3239 = vld [vmem:[%s3190 + $0x180] sm:$0xff]
    %v3240 = vld [vmem:[%s3190 + $0x188] sm:$0xff]
    %v3241 = vld [vmem:[%s3190 + $0x190] sm:$0xff]
    %v3242 = vld [vmem:[%s3190 + $0x198] sm:$0xff]
    %v3243 = vld [vmem:[%s3190 + $0x1a0] sm:$0xff]
    %v3244 = vld [vmem:[%s3190 + $0x1a8] sm:$0xff]
    %v3245 = vld [vmem:[%s3190 + $0x1b0] sm:$0xff]
    %v3246 = vld [vmem:[%s3190 + $0x1b8] sm:$0xff]
    %v3247 = vld [vmem:[%s3190 + $0x1c0] sm:$0xff]
    %v3248 = vld [vmem:[%s3190 + $0x1c8] sm:$0xff]
    %v3249 = vld [vmem:[%s3190 + $0x1d0] sm:$0xff]
    %v3250 = vld [vmem:[%s3190 + $0x1d8] sm:$0xff]
    %v3251 = vld [vmem:[%s3190 + $0x1e0] sm:$0xff]
    %v3252 = vld [vmem:[%s3190 + $0x1e8] sm:$0xff]
    %v3253 = vld [vmem:[%s3190 + $0x1f0] sm:$0xff]
    %v3254 = vld [vmem:[%s3190 + $0x1f8] sm:$0xff]
    %s3255 = scalar_lea.vmem %s5, 8
    %v3256 = vld [vmem:[%s3255] sm:$0xf]
    %v3258 = vperm.slane %v3256, 0
    %v3259 = vperm.slane %v3256, 1
    %v3260 = vperm.slane %v3256, 2
    %v3261 = vperm.slane %v3256, 3
    %3266 = vmatpush.msra.mxu0 %v3186
    %3267 = vmatpush.msra.mxu0 %v3182
    %3268 = vmatpush.msra.mxu0 %v3178
    %3269 = vmatpush.msra.mxu0 %v3174
    %3270 = vmatpush.msra.mxu0 %v3170
    %3271 = vmatpush.msra.mxu0 %v3166
    %3272 = vmatpush.msra.mxu0 %v3162
    %3273 = vmatpush.msra.mxu0 %v3158
    %3274 = vmatpush.msra.mxu0 %v3154
    %3275 = vmatpush.msra.mxu0 %v3150
    %3276 = vmatpush.msra.mxu0 %v3146
    %3277 = vmatpush.msra.mxu0 %v3142
    %3278 = vmatpush.msra.mxu0 %v3138
    %3279 = vmatpush.msra.mxu0 %v3134
    %3280 = vmatpush.msra.mxu0 %v3130
    %3281 = vmatpush.msra.mxu0 %v3126
    %3282 = vmatmul.f32.gmra.mxu0 %v3124
    %v3283 = vpop.f32.mrf.mxu0
    %v3284 = vadd.f32 %v3258, %v3283
    %3285 = vdwg.mxu0
    %3286 = vmatpush.msra.mxu0 %v3187
    %3287 = vmatpush.msra.mxu0 %v3183
    %3288 = vmatpush.msra.mxu0 %v3179
    %3289 = vmatpush.msra.mxu0 %v3175
    %3290 = vmatpush.msra.mxu0 %v3171
    %3291 = vmatpush.msra.mxu0 %v3167
    %3292 = vmatpush.msra.mxu0 %v3163
    %3293 = vmatpush.msra.mxu0 %v3159
    %3294 = vmatpush.msra.mxu0 %v3155
    %3295 = vmatpush.msra.mxu0 %v3151
    %3296 = vmatpush.msra.mxu0 %v3147
    %3297 = vmatpush.msra.mxu0 %v3143
    %3298 = vmatpush.msra.mxu0 %v3139
    %3299 = vmatpush.msra.mxu0 %v3135
    %3300 = vmatpush.msra.mxu0 %v3131
    %3301 = vmatpush.msra.mxu0 %v3127
    %3302 = vmatmul.f32.gmra.mxu0 %v3124
    %v3303 = vpop.f32.mrf.mxu0
    %v3304 = vadd.f32 %v3259, %v3303
    %3305 = vdwg.mxu0
    %3306 = vmatpush.msra.mxu0 %v3188
    %3307 = vmatpush.msra.mxu0 %v3184
    %3308 = vmatpush.msra.mxu0 %v3180
    %3309 = vmatpush.msra.mxu0 %v3176
    %3310 = vmatpush.msra.mxu0 %v3172
    %3311 = vmatpush.msra.mxu0 %v3168
    %3312 = vmatpush.msra.mxu0 %v3164
    %3313 = vmatpush.msra.mxu0 %v3160
    %3314 = vmatpush.msra.mxu0 %v3156
    %3315 = vmatpush.msra.mxu0 %v3152
    %3316 = vmatpush.msra.mxu0 %v3148
    %3317 = vmatpush.msra.mxu0 %v3144
    %3318 = vmatpush.msra.mxu0 %v3140
    %3319 = vmatpush.msra.mxu0 %v3136
    %3320 = vmatpush.msra.mxu0 %v3132
    %3321 = vmatpush.msra.mxu0 %v3128
    %3322 = vmatmul.f32.gmra.mxu0 %v3124
    %v3323 = vpop.f32.mrf.mxu0
    %v3324 = vadd.f32 %v3260, %v3323
    %3325 = vdwg.mxu0
    %3326 = vmatpush.msra.mxu0 %v3189
    %3327 = vmatpush.msra.mxu0 %v3185
    %3328 = vmatpush.msra.mxu0 %v3181
    %3329 = vmatpush.msra.mxu0 %v3177
    %3330 = vmatpush.msra.mxu0 %v3173
    %3331 = vmatpush.msra.mxu0 %v3169
    %3332 = vmatpush.msra.mxu0 %v3165
    %3333 = vmatpush.msra.mxu0 %v3161
    %3334 = vmatpush.msra.mxu0 %v3157
    %3335 = vmatpush.msra.mxu0 %v3153
    %3336 = vmatpush.msra.mxu0 %v3149
    %3337 = vmatpush.msra.mxu0 %v3145
    %3338 = vmatpush.msra.mxu0 %v3141
    %3339 = vmatpush.msra.mxu0 %v3137
    %3340 = vmatpush.msra.mxu0 %v3133
    %3341 = vmatpush.msra.mxu0 %v3129
    %3342 = vmatmul.f32.gmra.mxu0 %v3124
    %v3343 = vpop.f32.mrf.mxu0
    %v3344 = vadd.f32 %v3261, %v3343
    %3345 = vdwg.mxu0
    %s3346 = scalar_lea.vmem %s1, 2
    %v3347 = vld [vmem:[%s3346] sm:$0x1]
    %s3348 = scalar_lea.vmem %s2, 2
    %v3349 = vld [vmem:[%s3348] sm:$0x1]
    %3350 = vmatpush.msra.mxu0 %v3251
    %3351 = vmatpush.msra.mxu0 %v3247
    %3352 = vmatpush.msra.mxu0 %v3243
    %3353 = vmatpush.msra.mxu0 %v3239
    %3354 = vmatpush.msra.mxu0 %v3235
    %3355 = vmatpush.msra.mxu0 %v3231
    %3356 = vmatpush.msra.mxu0 %v3227
    %3357 = vmatpush.msra.mxu0 %v3223
    %3358 = vmatpush.msra.mxu0 %v3219
    %3359 = vmatpush.msra.mxu0 %v3215
    %3360 = vmatpush.msra.mxu0 %v3211
    %3361 = vmatpush.msra.mxu0 %v3207
    %3362 = vmatpush.msra.mxu0 %v3203
    %3363 = vmatpush.msra.mxu0 %v3199
    %3364 = vmatpush.msra.mxu0 %v3195
    %3365 = vmatpush.msra.mxu0 %v3191
    %3366 = vmatmul.f32.gmra.mxu0 %v3347
    %v3367 = vpop.f32.mrf.mxu0
    %v3368 = vadd.f32 0.0, %v3367
    %3369 = vdwg.mxu0
    %3370 = vmatpush.msra.mxu0 %v3252
    %3371 = vmatpush.msra.mxu0 %v3248
    %3372 = vmatpush.msra.mxu0 %v3244
    %3373 = vmatpush.msra.mxu0 %v3240
    %3374 = vmatpush.msra.mxu0 %v3236
    %3375 = vmatpush.msra.mxu0 %v3232
    %3376 = vmatpush.msra.mxu0 %v3228
    %3377 = vmatpush.msra.mxu0 %v3224
    %3378 = vmatpush.msra.mxu0 %v3220
    %3379 = vmatpush.msra.mxu0 %v3216
    %3380 = vmatpush.msra.mxu0 %v3212
    %3381 = vmatpush.msra.mxu0 %v3208
    %3382 = vmatpush.msra.mxu0 %v3204
    %3383 = vmatpush.msra.mxu0 %v3200
    %3384 = vmatpush.msra.mxu0 %v3196
    %3385 = vmatpush.msra.mxu0 %v3192
    %3386 = vmatmul.f32.gmra.mxu0 %v3347
    %v3387 = vpop.f32.mrf.mxu0
    %v3388 = vadd.f32 0.0, %v3387
    %3389 = vdwg.mxu0
    %3390 = vmatpush.msra.mxu0 %v3253
    %3391 = vmatpush.msra.mxu0 %v3249
    %3392 = vmatpush.msra.mxu0 %v3245
    %3393 = vmatpush.msra.mxu0 %v3241
    %3394 = vmatpush.msra.mxu0 %v3237
    %3395 = vmatpush.msra.mxu0 %v3233
    %3396 = vmatpush.msra.mxu0 %v3229
    %3397 = vmatpush.msra.mxu0 %v3225
    %3398 = vmatpush.msra.mxu0 %v3221
    %3399 = vmatpush.msra.mxu0 %v3217
    %3400 = vmatpush.msra.mxu0 %v3213
    %3401 = vmatpush.msra.mxu0 %v3209
    %3402 = vmatpush.msra.mxu0 %v3205
    %3403 = vmatpush.msra.mxu0 %v3201
    %3404 = vmatpush.msra.mxu0 %v3197
    %3405 = vmatpush.msra.mxu0 %v3193
    %3406 = vmatmul.f32.gmra.mxu0 %v3347
    %v3407 = vpop.f32.mrf.mxu0
    %v3408 = vadd.f32 0.0, %v3407
    %3409 = vdwg.mxu0
    %3410 = vmatpush.msra.mxu0 %v3254
    %3411 = vmatpush.msra.mxu0 %v3250
    %3412 = vmatpush.msra.mxu0 %v3246
    %3413 = vmatpush.msra.mxu0 %v3242
    %3414 = vmatpush.msra.mxu0 %v3238
    %3415 = vmatpush.msra.mxu0 %v3234
    %3416 = vmatpush.msra.mxu0 %v3230
    %3417 = vmatpush.msra.mxu0 %v3226
    %3418 = vmatpush.msra.mxu0 %v3222
    %3419 = vmatpush.msra.mxu0 %v3218
    %3420 = vmatpush.msra.mxu0 %v3214
    %3421 = vmatpush.msra.mxu0 %v3210
    %3422 = vmatpush.msra.mxu0 %v3206
    %3423 = vmatpush.msra.mxu0 %v3202
    %3424 = vmatpush.msra.mxu0 %v3198
    %3425 = vmatpush.msra.mxu0 %v3194
    %3426 = vmatmul.f32.gmra.mxu0 %v3347
    %v3427 = vpop.f32.mrf.mxu0
    %v3428 = vadd.f32 0.0, %v3427
    %3429 = vdwg.mxu0
    %v3430 = vadd.f32 %v3284, %v3368
    %v3431 = vadd.f32 %v3304, %v3388
    %v3432 = vadd.f32 %v3324, %v3408
    %v3433 = vadd.f32 %v3344, %v3428
    %v3434 = vxor.u32 %v3430, 2147483648
    %v3435 = vxor.u32 %v3431, 2147483648
    %v3436 = vxor.u32 %v3432, 2147483648
    %v3437 = vmul.f32 %v3434, 1.442695
    %v3438 = vpow.pop %v3437
    %v3439 = vmul.f32 %v3435, 1.442695
    %v3440 = vpow.pop %v3439
    %v3441 = vmul.f32 %v3436, 1.442695
    %v3442 = vpow.pop %v3441
    %v3443 = vadd.f32 %v3438, 1.0
    %v3444 = vadd.f32 %v3440, 1.0
    %v3445 = vadd.f32 %v3442, 1.0
    %v3446 = vrcp.pop %v3443
    %v3447 = vmul.f32 %v3443, %v3446
    %v3448 = vsub.f32 1.0, %v3447
    %v3449 = vmul.f32 %v3446, %v3448
    %v3450 = vadd.f32 %v3446, %v3449
    %vm3451 = vweird.f32 %v3443
    %vm3452 = vweird.f32 %v3446
    %vm3453 = vmor %vm3451, %vm3452
    %v3454 = vsel %vm3453, %v3446, %v3450
    %v3455 = vand.u32 2147483647, %v3443
    %vm3456 = vcmp.eq.f32.partialorder %v3455, 8.507059e+37
    %v3457 = vand.u32 %v3443, 2147483648
    %v3458 = vor.u32 1.1754944e-38, %v3457
    %v3459 = vsel %vm3456, %v3458, %v3454
    %v3460 = vmul.f32 1.0, %v3459
    %v3461 = vrcp.pop %v3444
    %v3462 = vmul.f32 %v3444, %v3461
    %v3463 = vsub.f32 1.0, %v3462
    %v3464 = vmul.f32 %v3461, %v3463
    %v3465 = vadd.f32 %v3461, %v3464
    %vm3466 = vweird.f32 %v3444
    %vm3467 = vweird.f32 %v3461
    %vm3468 = vmor %vm3466, %vm3467
    %v3469 = vsel %vm3468, %v3461, %v3465
    %v3470 = vand.u32 2147483647, %v3444
    %vm3471 = vcmp.eq.f32.partialorder %v3470, 8.507059e+37
    %v3472 = vand.u32 %v3444, 2147483648
    %v3473 = vor.u32 1.1754944e-38, %v3472
    %v3474 = vsel %vm3471, %v3473, %v3469
    %v3475 = vmul.f32 1.0, %v3474
    %v3476 = vrcp.pop %v3445
    %v3477 = vmul.f32 %v3445, %v3476
    %v3478 = vsub.f32 1.0, %v3477
    %v3479 = vmul.f32 %v3476, %v3478
    %v3480 = vadd.f32 %v3476, %v3479
    %vm3481 = vweird.f32 %v3445
    %vm3482 = vweird.f32 %v3476
    %vm3483 = vmor %vm3481, %vm3482
    %v3484 = vsel %vm3483, %v3476, %v3480
    %v3485 = vand.u32 2147483647, %v3445
    %vm3486 = vcmp.eq.f32.partialorder %v3485, 8.507059e+37
    %v3487 = vand.u32 %v3445, 2147483648
    %v3488 = vor.u32 1.1754944e-38, %v3487
    %v3489 = vsel %vm3486, %v3488, %v3484
    %v3490 = vmul.f32 1.0, %v3489
    %v3491 = vtanh.pop %v3433
    %v3492 = vmul.f32 %v3475, %v3349
    %v3493 = vmul.f32 %v3460, %v3491
    %v3494 = vadd.f32 %v3492, %v3493
    %v3495 = vtanh.pop %v3494
    %v3496 = vmul.f32 %v3490, %v3495
    %3497 = vmatpush.msra.mxu0 %v3251
    %3498 = vmatpush.msra.mxu0 %v3247
    %3499 = vmatpush.msra.mxu0 %v3243
    %3500 = vmatpush.msra.mxu0 %v3239
    %3501 = vmatpush.msra.mxu0 %v3235
    %3502 = vmatpush.msra.mxu0 %v3231
    %3503 = vmatpush.msra.mxu0 %v3227
    %3504 = vmatpush.msra.mxu0 %v3223
    %3505 = vmatpush.msra.mxu0 %v3219
    %3506 = vmatpush.msra.mxu0 %v3215
    %3507 = vmatpush.msra.mxu0 %v3211
    %3508 = vmatpush.msra.mxu0 %v3207
    %3509 = vmatpush.msra.mxu0 %v3203
    %3510 = vmatpush.msra.mxu0 %v3199
    %3511 = vmatpush.msra.mxu0 %v3195
    %3512 = vmatpush.msra.mxu0 %v3191
    %3513 = vmatmul.f32.gmra.mxu0 %v3496
    %v3514 = vpop.f32.mrf.mxu0
    %v3515 = vadd.f32 0.0, %v3514
    %3516 = vdwg.mxu0
    %3517 = vmatpush.msra.mxu0 %v3252
    %3518 = vmatpush.msra.mxu0 %v3248
    %3519 = vmatpush.msra.mxu0 %v3244
    %3520 = vmatpush.msra.mxu0 %v3240
    %3521 = vmatpush.msra.mxu0 %v3236
    %3522 = vmatpush.msra.mxu0 %v3232
    %3523 = vmatpush.msra.mxu0 %v3228
    %3524 = vmatpush.msra.mxu0 %v3224
    %3525 = vmatpush.msra.mxu0 %v3220
    %3526 = vmatpush.msra.mxu0 %v3216
    %3527 = vmatpush.msra.mxu0 %v3212
    %3528 = vmatpush.msra.mxu0 %v3208
    %3529 = vmatpush.msra.mxu0 %v3204
    %3530 = vmatpush.msra.mxu0 %v3200
    %3531 = vmatpush.msra.mxu0 %v3196
    %3532 = vmatpush.msra.mxu0 %v3192
    %3533 = vmatmul.f32.gmra.mxu0 %v3496
    %v3534 = vpop.f32.mrf.mxu0
    %v3535 = vadd.f32 0.0, %v3534
    %3536 = vdwg.mxu0
    %3537 = vmatpush.msra.mxu0 %v3253
    %3538 = vmatpush.msra.mxu0 %v3249
    %3539 = vmatpush.msra.mxu0 %v3245
    %3540 = vmatpush.msra.mxu0 %v3241
    %3541 = vmatpush.msra.mxu0 %v3237
    %3542 = vmatpush.msra.mxu0 %v3233
    %3543 = vmatpush.msra.mxu0 %v3229
    %3544 = vmatpush.msra.mxu0 %v3225
    %3545 = vmatpush.msra.mxu0 %v3221
    %3546 = vmatpush.msra.mxu0 %v3217
    %3547 = vmatpush.msra.mxu0 %v3213
    %3548 = vmatpush.msra.mxu0 %v3209
    %3549 = vmatpush.msra.mxu0 %v3205
    %3550 = vmatpush.msra.mxu0 %v3201
    %3551 = vmatpush.msra.mxu0 %v3197
    %3552 = vmatpush.msra.mxu0 %v3193
    %3553 = vmatmul.f32.gmra.mxu0 %v3496
    %v3554 = vpop.f32.mrf.mxu0
    %v3555 = vadd.f32 0.0, %v3554
    %3556 = vdwg.mxu0
    %3557 = vmatpush.msra.mxu0 %v3254
    %3558 = vmatpush.msra.mxu0 %v3250
    %3559 = vmatpush.msra.mxu0 %v3246
    %3560 = vmatpush.msra.mxu0 %v3242
    %3561 = vmatpush.msra.mxu0 %v3238
    %3562 = vmatpush.msra.mxu0 %v3234
    %3563 = vmatpush.msra.mxu0 %v3230
    %3564 = vmatpush.msra.mxu0 %v3226
    %3565 = vmatpush.msra.mxu0 %v3222
    %3566 = vmatpush.msra.mxu0 %v3218
    %3567 = vmatpush.msra.mxu0 %v3214
    %3568 = vmatpush.msra.mxu0 %v3210
    %3569 = vmatpush.msra.mxu0 %v3206
    %3570 = vmatpush.msra.mxu0 %v3202
    %3571 = vmatpush.msra.mxu0 %v3198
    %3572 = vmatpush.msra.mxu0 %v3194
    %3573 = vmatmul.f32.gmra.mxu0 %v3496
    %v3574 = vpop.f32.mrf.mxu0
    %v3575 = vadd.f32 0.0, %v3574
    %3576 = vdwg.mxu0
    %v3581 = vrot.slane %v3515, 7
    %v3582 = vrot.slane %v3535, 7
    %v3583 = vrot.slane %v3555, 7
    %v3584 = vrot.slane %v3575, 7
    %v3589 = vadd.f32 %v3284, %v3581
    %v3590 = vadd.f32 %v3304, %v3582
    %v3591 = vadd.f32 %v3324, %v3583
    %v3592 = vadd.f32 %v3344, %v3584
    %v3593 = vxor.u32 %v3589, 2147483648
    %v3594 = vxor.u32 %v3590, 2147483648
    %v3595 = vxor.u32 %v3591, 2147483648
    %v3596 = vmul.f32 %v3593, 1.442695
    %v3597 = vpow.pop %v3596
    %v3598 = vmul.f32 %v3594, 1.442695
    %v3599 = vpow.pop %v3598
    %v3600 = vmul.f32 %v3595, 1.442695
    %v3601 = vpow.pop %v3600
    %v3602 = vadd.f32 %v3597, 1.0
    %v3603 = vadd.f32 %v3599, 1.0
    %v3604 = vadd.f32 %v3601, 1.0
    %v3605 = vrcp.pop %v3602
    %v3606 = vmul.f32 %v3602, %v3605
    %v3607 = vsub.f32 1.0, %v3606
    %v3608 = vmul.f32 %v3605, %v3607
    %v3609 = vadd.f32 %v3605, %v3608
    %vm3610 = vweird.f32 %v3602
    %vm3611 = vweird.f32 %v3605
    %vm3612 = vmor %vm3610, %vm3611
    %v3613 = vsel %vm3612, %v3605, %v3609
    %v3614 = vand.u32 2147483647, %v3602
    %vm3615 = vcmp.eq.f32.partialorder %v3614, 8.507059e+37
    %v3616 = vand.u32 %v3602, 2147483648
    %v3617 = vor.u32 1.1754944e-38, %v3616
    %v3618 = vsel %vm3615, %v3617, %v3613
    %v3619 = vmul.f32 1.0, %v3618
    %v3620 = vrcp.pop %v3603
    %v3621 = vmul.f32 %v3603, %v3620
    %v3622 = vsub.f32 1.0, %v3621
    %v3623 = vmul.f32 %v3620, %v3622
    %v3624 = vadd.f32 %v3620, %v3623
    %vm3625 = vweird.f32 %v3603
    %vm3626 = vweird.f32 %v3620
    %vm3627 = vmor %vm3625, %vm3626
    %v3628 = vsel %vm3627, %v3620, %v3624
    %v3629 = vand.u32 2147483647, %v3603
    %vm3630 = vcmp.eq.f32.partialorder %v3629, 8.507059e+37
    %v3631 = vand.u32 %v3603, 2147483648
    %v3632 = vor.u32 1.1754944e-38, %v3631
    %v3633 = vsel %vm3630, %v3632, %v3628
    %v3634 = vmul.f32 1.0, %v3633
    %v3635 = vrcp.pop %v3604
    %v3636 = vmul.f32 %v3604, %v3635
    %v3637 = vsub.f32 1.0, %v3636
    %v3638 = vmul.f32 %v3635, %v3637
    %v3639 = vadd.f32 %v3635, %v3638
    %vm3640 = vweird.f32 %v3604
    %vm3641 = vweird.f32 %v3635
    %vm3642 = vmor %vm3640, %vm3641
    %v3643 = vsel %vm3642, %v3635, %v3639
    %v3644 = vand.u32 2147483647, %v3604
    %vm3645 = vcmp.eq.f32.partialorder %v3644, 8.507059e+37
    %v3646 = vand.u32 %v3604, 2147483648
    %v3647 = vor.u32 1.1754944e-38, %v3646
    %v3648 = vsel %vm3645, %v3647, %v3643
    %v3649 = vmul.f32 1.0, %v3648
    %v3650 = vtanh.pop %v3592
    %v3652 = vrot.slane %v3494, 7
    %v3654 = vmul.f32 %v3634, %v3652
    %v3655 = vmul.f32 %v3619, %v3650
    %v3656 = vadd.f32 %v3654, %v3655
    %v3657 = vtanh.pop %v3656
    %v3658 = vmul.f32 %v3649, %v3657
    %v3660 = vrot.slane %v3658, 1
    %3662 = vmatpush.msra.mxu0 %v3251
    %3663 = vmatpush.msra.mxu0 %v3247
    %3664 = vmatpush.msra.mxu0 %v3243
    %3665 = vmatpush.msra.mxu0 %v3239
    %3666 = vmatpush.msra.mxu0 %v3235
    %3667 = vmatpush.msra.mxu0 %v3231
    %3668 = vmatpush.msra.mxu0 %v3227
    %3669 = vmatpush.msra.mxu0 %v3223
    %3670 = vmatpush.msra.mxu0 %v3219
    %3671 = vmatpush.msra.mxu0 %v3215
    %3672 = vmatpush.msra.mxu0 %v3211
    %3673 = vmatpush.msra.mxu0 %v3207
    %3674 = vmatpush.msra.mxu0 %v3203
    %3675 = vmatpush.msra.mxu0 %v3199
    %3676 = vmatpush.msra.mxu0 %v3195
    %3677 = vmatpush.msra.mxu0 %v3191
    %3678 = vmatmul.f32.gmra.mxu0 %v3660
    %v3679 = vpop.f32.mrf.mxu0
    %v3680 = vadd.f32 0.0, %v3679
    %3681 = vdwg.mxu0
    %3682 = vmatpush.msra.mxu0 %v3252
    %3683 = vmatpush.msra.mxu0 %v3248
    %3684 = vmatpush.msra.mxu0 %v3244
    %3685 = vmatpush.msra.mxu0 %v3240
    %3686 = vmatpush.msra.mxu0 %v3236
    %3687 = vmatpush.msra.mxu0 %v3232
    %3688 = vmatpush.msra.mxu0 %v3228
    %3689 = vmatpush.msra.mxu0 %v3224
    %3690 = vmatpush.msra.mxu0 %v3220
    %3691 = vmatpush.msra.mxu0 %v3216
    %3692 = vmatpush.msra.mxu0 %v3212
    %3693 = vmatpush.msra.mxu0 %v3208
    %3694 = vmatpush.msra.mxu0 %v3204
    %3695 = vmatpush.msra.mxu0 %v3200
    %3696 = vmatpush.msra.mxu0 %v3196
    %3697 = vmatpush.msra.mxu0 %v3192
    %3698 = vmatmul.f32.gmra.mxu0 %v3660
    %v3699 = vpop.f32.mrf.mxu0
    %v3700 = vadd.f32 0.0, %v3699
    %3701 = vdwg.mxu0
    %3702 = vmatpush.msra.mxu0 %v3253
    %3703 = vmatpush.msra.mxu0 %v3249
    %3704 = vmatpush.msra.mxu0 %v3245
    %3705 = vmatpush.msra.mxu0 %v3241
    %3706 = vmatpush.msra.mxu0 %v3237
    %3707 = vmatpush.msra.mxu0 %v3233
    %3708 = vmatpush.msra.mxu0 %v3229
    %3709 = vmatpush.msra.mxu0 %v3225
    %3710 = vmatpush.msra.mxu0 %v3221
    %3711 = vmatpush.msra.mxu0 %v3217
    %3712 = vmatpush.msra.mxu0 %v3213
    %3713 = vmatpush.msra.mxu0 %v3209
    %3714 = vmatpush.msra.mxu0 %v3205
    %3715 = vmatpush.msra.mxu0 %v3201
    %3716 = vmatpush.msra.mxu0 %v3197
    %3717 = vmatpush.msra.mxu0 %v3193
    %3718 = vmatmul.f32.gmra.mxu0 %v3660
    %v3719 = vpop.f32.mrf.mxu0
    %v3720 = vadd.f32 0.0, %v3719
    %3721 = vdwg.mxu0
    %3722 = vmatpush.msra.mxu0 %v3254
    %3723 = vmatpush.msra.mxu0 %v3250
    %3724 = vmatpush.msra.mxu0 %v3246
    %3725 = vmatpush.msra.mxu0 %v3242
    %3726 = vmatpush.msra.mxu0 %v3238
    %3727 = vmatpush.msra.mxu0 %v3234
    %3728 = vmatpush.msra.mxu0 %v3230
    %3729 = vmatpush.msra.mxu0 %v3226
    %3730 = vmatpush.msra.mxu0 %v3222
    %3731 = vmatpush.msra.mxu0 %v3218
    %3732 = vmatpush.msra.mxu0 %v3214
    %3733 = vmatpush.msra.mxu0 %v3210
    %3734 = vmatpush.msra.mxu0 %v3206
    %3735 = vmatpush.msra.mxu0 %v3202
    %3736 = vmatpush.msra.mxu0 %v3198
    %3737 = vmatpush.msra.mxu0 %v3194
    %3738 = vmatmul.f32.gmra.mxu0 %v3660
    %v3739 = vpop.f32.mrf.mxu0
    %v3740 = vadd.f32 0.0, %v3739
    %3741 = vdwg.mxu0
    %v3746 = vrot.slane %v3680, 6
    %v3747 = vrot.slane %v3700, 6
    %v3748 = vrot.slane %v3720, 6
    %v3749 = vrot.slane %v3740, 6
    %v3754 = vadd.f32 %v3284, %v3746
    %v3755 = vadd.f32 %v3304, %v3747
    %v3756 = vadd.f32 %v3324, %v3748
    %v3757 = vadd.f32 %v3344, %v3749
    %v3758 = vxor.u32 %v3754, 2147483648
    %v3759 = vxor.u32 %v3755, 2147483648
    %v3760 = vxor.u32 %v3756, 2147483648
    %v3761 = vmul.f32 %v3758, 1.442695
    %v3762 = vpow.pop %v3761
    %v3763 = vmul.f32 %v3759, 1.442695
    %v3764 = vpow.pop %v3763
    %v3765 = vmul.f32 %v3760, 1.442695
    %v3766 = vpow.pop %v3765
    %v3767 = vadd.f32 %v3762, 1.0
    %v3768 = vadd.f32 %v3764, 1.0
    %v3769 = vadd.f32 %v3766, 1.0
    %v3770 = vrcp.pop %v3767
    %v3771 = vmul.f32 %v3767, %v3770
    %v3772 = vsub.f32 1.0, %v3771
    %v3773 = vmul.f32 %v3770, %v3772
    %v3774 = vadd.f32 %v3770, %v3773
    %vm3775 = vweird.f32 %v3767
    %vm3776 = vweird.f32 %v3770
    %vm3777 = vmor %vm3775, %vm3776
    %v3778 = vsel %vm3777, %v3770, %v3774
    %v3779 = vand.u32 2147483647, %v3767
    %vm3780 = vcmp.eq.f32.partialorder %v3779, 8.507059e+37
    %v3781 = vand.u32 %v3767, 2147483648
    %v3782 = vor.u32 1.1754944e-38, %v3781
    %v3783 = vsel %vm3780, %v3782, %v3778
    %v3784 = vmul.f32 1.0, %v3783
    %v3785 = vrcp.pop %v3768
    %v3786 = vmul.f32 %v3768, %v3785
    %v3787 = vsub.f32 1.0, %v3786
    %v3788 = vmul.f32 %v3785, %v3787
    %v3789 = vadd.f32 %v3785, %v3788
    %vm3790 = vweird.f32 %v3768
    %vm3791 = vweird.f32 %v3785
    %vm3792 = vmor %vm3790, %vm3791
    %v3793 = vsel %vm3792, %v3785, %v3789
    %v3794 = vand.u32 2147483647, %v3768
    %vm3795 = vcmp.eq.f32.partialorder %v3794, 8.507059e+37
    %v3796 = vand.u32 %v3768, 2147483648
    %v3797 = vor.u32 1.1754944e-38, %v3796
    %v3798 = vsel %vm3795, %v3797, %v3793
    %v3799 = vmul.f32 1.0, %v3798
    %v3800 = vrcp.pop %v3769
    %v3801 = vmul.f32 %v3769, %v3800
    %v3802 = vsub.f32 1.0, %v3801
    %v3803 = vmul.f32 %v3800, %v3802
    %v3804 = vadd.f32 %v3800, %v3803
    %vm3805 = vweird.f32 %v3769
    %vm3806 = vweird.f32 %v3800
    %vm3807 = vmor %vm3805, %vm3806
    %v3808 = vsel %vm3807, %v3800, %v3804
    %v3809 = vand.u32 2147483647, %v3769
    %vm3810 = vcmp.eq.f32.partialorder %v3809, 8.507059e+37
    %v3811 = vand.u32 %v3769, 2147483648
    %v3812 = vor.u32 1.1754944e-38, %v3811
    %v3813 = vsel %vm3810, %v3812, %v3808
    %v3814 = vmul.f32 1.0, %v3813
    %v3815 = vtanh.pop %v3757
    %v3817 = vrot.slane %v3656, 7
    %v3819 = vmul.f32 %v3799, %v3817
    %v3820 = vmul.f32 %v3784, %v3815
    %v3821 = vadd.f32 %v3819, %v3820
    %v3822 = vtanh.pop %v3821
    %v3823 = vmul.f32 %v3814, %v3822
    %v3825 = vrot.slane %v3823, 2
    %3827 = vmatpush.msra.mxu0 %v3251
    %3828 = vmatpush.msra.mxu0 %v3247
    %3829 = vmatpush.msra.mxu0 %v3243
    %3830 = vmatpush.msra.mxu0 %v3239
    %3831 = vmatpush.msra.mxu0 %v3235
    %3832 = vmatpush.msra.mxu0 %v3231
    %3833 = vmatpush.msra.mxu0 %v3227
    %3834 = vmatpush.msra.mxu0 %v3223
    %3835 = vmatpush.msra.mxu0 %v3219
    %3836 = vmatpush.msra.mxu0 %v3215
    %3837 = vmatpush.msra.mxu0 %v3211
    %3838 = vmatpush.msra.mxu0 %v3207
    %3839 = vmatpush.msra.mxu0 %v3203
    %3840 = vmatpush.msra.mxu0 %v3199
    %3841 = vmatpush.msra.mxu0 %v3195
    %3842 = vmatpush.msra.mxu0 %v3191
    %3843 = vmatmul.f32.gmra.mxu0 %v3825
    %v3844 = vpop.f32.mrf.mxu0
    %v3845 = vadd.f32 0.0, %v3844
    %3846 = vdwg.mxu0
    %3847 = vmatpush.msra.mxu0 %v3252
    %3848 = vmatpush.msra.mxu0 %v3248
    %3849 = vmatpush.msra.mxu0 %v3244
    %3850 = vmatpush.msra.mxu0 %v3240
    %3851 = vmatpush.msra.mxu0 %v3236
    %3852 = vmatpush.msra.mxu0 %v3232
    %3853 = vmatpush.msra.mxu0 %v3228
    %3854 = vmatpush.msra.mxu0 %v3224
    %3855 = vmatpush.msra.mxu0 %v3220
    %3856 = vmatpush.msra.mxu0 %v3216
    %3857 = vmatpush.msra.mxu0 %v3212
    %3858 = vmatpush.msra.mxu0 %v3208
    %3859 = vmatpush.msra.mxu0 %v3204
    %3860 = vmatpush.msra.mxu0 %v3200
    %3861 = vmatpush.msra.mxu0 %v3196
    %3862 = vmatpush.msra.mxu0 %v3192
    %3863 = vmatmul.f32.gmra.mxu0 %v3825
    %v3864 = vpop.f32.mrf.mxu0
    %v3865 = vadd.f32 0.0, %v3864
    %3866 = vdwg.mxu0
    %3867 = vmatpush.msra.mxu0 %v3253
    %3868 = vmatpush.msra.mxu0 %v3249
    %3869 = vmatpush.msra.mxu0 %v3245
    %3870 = vmatpush.msra.mxu0 %v3241
    %3871 = vmatpush.msra.mxu0 %v3237
    %3872 = vmatpush.msra.mxu0 %v3233
    %3873 = vmatpush.msra.mxu0 %v3229
    %3874 = vmatpush.msra.mxu0 %v3225
    %3875 = vmatpush.msra.mxu0 %v3221
    %3876 = vmatpush.msra.mxu0 %v3217
    %3877 = vmatpush.msra.mxu0 %v3213
    %3878 = vmatpush.msra.mxu0 %v3209
    %3879 = vmatpush.msra.mxu0 %v3205
    %3880 = vmatpush.msra.mxu0 %v3201
    %3881 = vmatpush.msra.mxu0 %v3197
    %3882 = vmatpush.msra.mxu0 %v3193
    %3883 = vmatmul.f32.gmra.mxu0 %v3825
    %v3884 = vpop.f32.mrf.mxu0
    %v3885 = vadd.f32 0.0, %v3884
    %3886 = vdwg.mxu0
    %3887 = vmatpush.msra.mxu0 %v3254
    %3888 = vmatpush.msra.mxu0 %v3250
    %3889 = vmatpush.msra.mxu0 %v3246
    %3890 = vmatpush.msra.mxu0 %v3242
    %3891 = vmatpush.msra.mxu0 %v3238
    %3892 = vmatpush.msra.mxu0 %v3234
    %3893 = vmatpush.msra.mxu0 %v3230
    %3894 = vmatpush.msra.mxu0 %v3226
    %3895 = vmatpush.msra.mxu0 %v3222
    %3896 = vmatpush.msra.mxu0 %v3218
    %3897 = vmatpush.msra.mxu0 %v3214
    %3898 = vmatpush.msra.mxu0 %v3210
    %3899 = vmatpush.msra.mxu0 %v3206
    %3900 = vmatpush.msra.mxu0 %v3202
    %3901 = vmatpush.msra.mxu0 %v3198
    %3902 = vmatpush.msra.mxu0 %v3194
    %3903 = vmatmul.f32.gmra.mxu0 %v3825
    %v3904 = vpop.f32.mrf.mxu0
    %v3905 = vadd.f32 0.0, %v3904
    %3906 = vdwg.mxu0
    %v3911 = vrot.slane %v3845, 5
    %v3912 = vrot.slane %v3865, 5
    %v3913 = vrot.slane %v3885, 5
    %v3914 = vrot.slane %v3905, 5
    %v3919 = vadd.f32 %v3284, %v3911
    %v3920 = vadd.f32 %v3304, %v3912
    %v3921 = vadd.f32 %v3324, %v3913
    %v3922 = vadd.f32 %v3344, %v3914
    %v3923 = vxor.u32 %v3919, 2147483648
    %v3924 = vxor.u32 %v3920, 2147483648
    %v3925 = vxor.u32 %v3921, 2147483648
    %v3926 = vmul.f32 %v3923, 1.442695
    %v3927 = vpow.pop %v3926
    %v3928 = vmul.f32 %v3924, 1.442695
    %v3929 = vpow.pop %v3928
    %v3930 = vmul.f32 %v3925, 1.442695
    %v3931 = vpow.pop %v3930
    %v3932 = vadd.f32 %v3927, 1.0
    %v3933 = vadd.f32 %v3929, 1.0
    %v3934 = vadd.f32 %v3931, 1.0
    %v3935 = vrcp.pop %v3932
    %v3936 = vmul.f32 %v3932, %v3935
    %v3937 = vsub.f32 1.0, %v3936
    %v3938 = vmul.f32 %v3935, %v3937
    %v3939 = vadd.f32 %v3935, %v3938
    %vm3940 = vweird.f32 %v3932
    %vm3941 = vweird.f32 %v3935
    %vm3942 = vmor %vm3940, %vm3941
    %v3943 = vsel %vm3942, %v3935, %v3939
    %v3944 = vand.u32 2147483647, %v3932
    %vm3945 = vcmp.eq.f32.partialorder %v3944, 8.507059e+37
    %v3946 = vand.u32 %v3932, 2147483648
    %v3947 = vor.u32 1.1754944e-38, %v3946
    %v3948 = vsel %vm3945, %v3947, %v3943
    %v3949 = vmul.f32 1.0, %v3948
    %v3950 = vrcp.pop %v3933
    %v3951 = vmul.f32 %v3933, %v3950
    %v3952 = vsub.f32 1.0, %v3951
    %v3953 = vmul.f32 %v3950, %v3952
    %v3954 = vadd.f32 %v3950, %v3953
    %vm3955 = vweird.f32 %v3933
    %vm3956 = vweird.f32 %v3950
    %vm3957 = vmor %vm3955, %vm3956
    %v3958 = vsel %vm3957, %v3950, %v3954
    %v3959 = vand.u32 2147483647, %v3933
    %vm3960 = vcmp.eq.f32.partialorder %v3959, 8.507059e+37
    %v3961 = vand.u32 %v3933, 2147483648
    %v3962 = vor.u32 1.1754944e-38, %v3961
    %v3963 = vsel %vm3960, %v3962, %v3958
    %v3964 = vmul.f32 1.0, %v3963
    %v3965 = vrcp.pop %v3934
    %v3966 = vmul.f32 %v3934, %v3965
    %v3967 = vsub.f32 1.0, %v3966
    %v3968 = vmul.f32 %v3965, %v3967
    %v3969 = vadd.f32 %v3965, %v3968
    %vm3970 = vweird.f32 %v3934
    %vm3971 = vweird.f32 %v3965
    %vm3972 = vmor %vm3970, %vm3971
    %v3973 = vsel %vm3972, %v3965, %v3969
    %v3974 = vand.u32 2147483647, %v3934
    %vm3975 = vcmp.eq.f32.partialorder %v3974, 8.507059e+37
    %v3976 = vand.u32 %v3934, 2147483648
    %v3977 = vor.u32 1.1754944e-38, %v3976
    %v3978 = vsel %vm3975, %v3977, %v3973
    %v3979 = vmul.f32 1.0, %v3978
    %v3980 = vtanh.pop %v3922
    %v3982 = vrot.slane %v3821, 7
    %v3984 = vmul.f32 %v3964, %v3982
    %v3985 = vmul.f32 %v3949, %v3980
    %v3986 = vadd.f32 %v3984, %v3985
    %v3987 = vtanh.pop %v3986
    %v3988 = vmul.f32 %v3979, %v3987
    %v3990 = vrot.slane %v3988, 3
    %3992 = vmatpush.msra.mxu0 %v3251
    %3993 = vmatpush.msra.mxu0 %v3247
    %3994 = vmatpush.msra.mxu0 %v3243
    %3995 = vmatpush.msra.mxu0 %v3239
    %3996 = vmatpush.msra.mxu0 %v3235
    %3997 = vmatpush.msra.mxu0 %v3231
    %3998 = vmatpush.msra.mxu0 %v3227
    %3999 = vmatpush.msra.mxu0 %v3223
    %4000 = vmatpush.msra.mxu0 %v3219
    %4001 = vmatpush.msra.mxu0 %v3215
    %4002 = vmatpush.msra.mxu0 %v3211
    %4003 = vmatpush.msra.mxu0 %v3207
    %4004 = vmatpush.msra.mxu0 %v3203
    %4005 = vmatpush.msra.mxu0 %v3199
    %4006 = vmatpush.msra.mxu0 %v3195
    %4007 = vmatpush.msra.mxu0 %v3191
    %4008 = vmatmul.f32.gmra.mxu0 %v3990
    %v4009 = vpop.f32.mrf.mxu0
    %v4010 = vadd.f32 0.0, %v4009
    %4011 = vdwg.mxu0
    %4012 = vmatpush.msra.mxu0 %v3252
    %4013 = vmatpush.msra.mxu0 %v3248
    %4014 = vmatpush.msra.mxu0 %v3244
    %4015 = vmatpush.msra.mxu0 %v3240
    %4016 = vmatpush.msra.mxu0 %v3236
    %4017 = vmatpush.msra.mxu0 %v3232
    %4018 = vmatpush.msra.mxu0 %v3228
    %4019 = vmatpush.msra.mxu0 %v3224
    %4020 = vmatpush.msra.mxu0 %v3220
    %4021 = vmatpush.msra.mxu0 %v3216
    %4022 = vmatpush.msra.mxu0 %v3212
    %4023 = vmatpush.msra.mxu0 %v3208
    %4024 = vmatpush.msra.mxu0 %v3204
    %4025 = vmatpush.msra.mxu0 %v3200
    %4026 = vmatpush.msra.mxu0 %v3196
    %4027 = vmatpush.msra.mxu0 %v3192
    %4028 = vmatmul.f32.gmra.mxu0 %v3990
    %v4029 = vpop.f32.mrf.mxu0
    %v4030 = vadd.f32 0.0, %v4029
    %4031 = vdwg.mxu0
    %4032 = vmatpush.msra.mxu0 %v3253
    %4033 = vmatpush.msra.mxu0 %v3249
    %4034 = vmatpush.msra.mxu0 %v3245
    %4035 = vmatpush.msra.mxu0 %v3241
    %4036 = vmatpush.msra.mxu0 %v3237
    %4037 = vmatpush.msra.mxu0 %v3233
    %4038 = vmatpush.msra.mxu0 %v3229
    %4039 = vmatpush.msra.mxu0 %v3225
    %4040 = vmatpush.msra.mxu0 %v3221
    %4041 = vmatpush.msra.mxu0 %v3217
    %4042 = vmatpush.msra.mxu0 %v3213
    %4043 = vmatpush.msra.mxu0 %v3209
    %4044 = vmatpush.msra.mxu0 %v3205
    %4045 = vmatpush.msra.mxu0 %v3201
    %4046 = vmatpush.msra.mxu0 %v3197
    %4047 = vmatpush.msra.mxu0 %v3193
    %4048 = vmatmul.f32.gmra.mxu0 %v3990
    %v4049 = vpop.f32.mrf.mxu0
    %v4050 = vadd.f32 0.0, %v4049
    %4051 = vdwg.mxu0
    %4052 = vmatpush.msra.mxu0 %v3254
    %4053 = vmatpush.msra.mxu0 %v3250
    %4054 = vmatpush.msra.mxu0 %v3246
    %4055 = vmatpush.msra.mxu0 %v3242
    %4056 = vmatpush.msra.mxu0 %v3238
    %4057 = vmatpush.msra.mxu0 %v3234
    %4058 = vmatpush.msra.mxu0 %v3230
    %4059 = vmatpush.msra.mxu0 %v3226
    %4060 = vmatpush.msra.mxu0 %v3222
    %4061 = vmatpush.msra.mxu0 %v3218
    %4062 = vmatpush.msra.mxu0 %v3214
    %4063 = vmatpush.msra.mxu0 %v3210
    %4064 = vmatpush.msra.mxu0 %v3206
    %4065 = vmatpush.msra.mxu0 %v3202
    %4066 = vmatpush.msra.mxu0 %v3198
    %4067 = vmatpush.msra.mxu0 %v3194
    %4068 = vmatmul.f32.gmra.mxu0 %v3990
    %v4069 = vpop.f32.mrf.mxu0
    %v4070 = vadd.f32 0.0, %v4069
    %4071 = vdwg.mxu0
    %v4076 = vrot.slane %v4010, 4
    %v4077 = vrot.slane %v4030, 4
    %v4078 = vrot.slane %v4050, 4
    %v4079 = vrot.slane %v4070, 4
    %v4084 = vadd.f32 %v3284, %v4076
    %v4085 = vadd.f32 %v3304, %v4077
    %v4086 = vadd.f32 %v3324, %v4078
    %v4087 = vadd.f32 %v3344, %v4079
    %v4088 = vxor.u32 %v4084, 2147483648
    %v4089 = vxor.u32 %v4085, 2147483648
    %v4090 = vxor.u32 %v4086, 2147483648
    %v4091 = vmul.f32 %v4088, 1.442695
    %v4092 = vpow.pop %v4091
    %v4093 = vmul.f32 %v4089, 1.442695
    %v4094 = vpow.pop %v4093
    %v4095 = vmul.f32 %v4090, 1.442695
    %v4096 = vpow.pop %v4095
    %v4097 = vadd.f32 %v4092, 1.0
    %v4098 = vadd.f32 %v4094, 1.0
    %v4099 = vadd.f32 %v4096, 1.0
    %v4100 = vrcp.pop %v4097
    %v4101 = vmul.f32 %v4097, %v4100
    %v4102 = vsub.f32 1.0, %v4101
    %v4103 = vmul.f32 %v4100, %v4102
    %v4104 = vadd.f32 %v4100, %v4103
    %vm4105 = vweird.f32 %v4097
    %vm4106 = vweird.f32 %v4100
    %vm4107 = vmor %vm4105, %vm4106
    %v4108 = vsel %vm4107, %v4100, %v4104
    %v4109 = vand.u32 2147483647, %v4097
    %vm4110 = vcmp.eq.f32.partialorder %v4109, 8.507059e+37
    %v4111 = vand.u32 %v4097, 2147483648
    %v4112 = vor.u32 1.1754944e-38, %v4111
    %v4113 = vsel %vm4110, %v4112, %v4108
    %v4114 = vmul.f32 1.0, %v4113
    %v4115 = vrcp.pop %v4098
    %v4116 = vmul.f32 %v4098, %v4115
    %v4117 = vsub.f32 1.0, %v4116
    %v4118 = vmul.f32 %v4115, %v4117
    %v4119 = vadd.f32 %v4115, %v4118
    %vm4120 = vweird.f32 %v4098
    %vm4121 = vweird.f32 %v4115
    %vm4122 = vmor %vm4120, %vm4121
    %v4123 = vsel %vm4122, %v4115, %v4119
    %v4124 = vand.u32 2147483647, %v4098
    %vm4125 = vcmp.eq.f32.partialorder %v4124, 8.507059e+37
    %v4126 = vand.u32 %v4098, 2147483648
    %v4127 = vor.u32 1.1754944e-38, %v4126
    %v4128 = vsel %vm4125, %v4127, %v4123
    %v4129 = vmul.f32 1.0, %v4128
    %v4130 = vrcp.pop %v4099
    %v4131 = vmul.f32 %v4099, %v4130
    %v4132 = vsub.f32 1.0, %v4131
    %v4133 = vmul.f32 %v4130, %v4132
    %v4134 = vadd.f32 %v4130, %v4133
    %vm4135 = vweird.f32 %v4099
    %vm4136 = vweird.f32 %v4130
    %vm4137 = vmor %vm4135, %vm4136
    %v4138 = vsel %vm4137, %v4130, %v4134
    %v4139 = vand.u32 2147483647, %v4099
    %vm4140 = vcmp.eq.f32.partialorder %v4139, 8.507059e+37
    %v4141 = vand.u32 %v4099, 2147483648
    %v4142 = vor.u32 1.1754944e-38, %v4141
    %v4143 = vsel %vm4140, %v4142, %v4138
    %v4144 = vmul.f32 1.0, %v4143
    %v4145 = vtanh.pop %v4087
    %v4147 = vrot.slane %v3986, 7
    %v4149 = vmul.f32 %v4129, %v4147
    %v4150 = vmul.f32 %v4114, %v4145
    %v4151 = vadd.f32 %v4149, %v4150
    %v4152 = vtanh.pop %v4151
    %v4153 = vmul.f32 %v4144, %v4152
    %v4155 = vrot.slane %v4153, 4
    %4157 = vmatpush.msra.mxu0 %v3251
    %4158 = vmatpush.msra.mxu0 %v3247
    %4159 = vmatpush.msra.mxu0 %v3243
    %4160 = vmatpush.msra.mxu0 %v3239
    %4161 = vmatpush.msra.mxu0 %v3235
    %4162 = vmatpush.msra.mxu0 %v3231
    %4163 = vmatpush.msra.mxu0 %v3227
    %4164 = vmatpush.msra.mxu0 %v3223
    %4165 = vmatpush.msra.mxu0 %v3219
    %4166 = vmatpush.msra.mxu0 %v3215
    %4167 = vmatpush.msra.mxu0 %v3211
    %4168 = vmatpush.msra.mxu0 %v3207
    %4169 = vmatpush.msra.mxu0 %v3203
    %4170 = vmatpush.msra.mxu0 %v3199
    %4171 = vmatpush.msra.mxu0 %v3195
    %4172 = vmatpush.msra.mxu0 %v3191
    %4173 = vmatmul.f32.gmra.mxu0 %v4155
    %v4174 = vpop.f32.mrf.mxu0
    %v4175 = vadd.f32 0.0, %v4174
    %4176 = vdwg.mxu0
    %4177 = vmatpush.msra.mxu0 %v3252
    %4178 = vmatpush.msra.mxu0 %v3248
    %4179 = vmatpush.msra.mxu0 %v3244
    %4180 = vmatpush.msra.mxu0 %v3240
    %4181 = vmatpush.msra.mxu0 %v3236
    %4182 = vmatpush.msra.mxu0 %v3232
    %4183 = vmatpush.msra.mxu0 %v3228
    %4184 = vmatpush.msra.mxu0 %v3224
    %4185 = vmatpush.msra.mxu0 %v3220
    %4186 = vmatpush.msra.mxu0 %v3216
    %4187 = vmatpush.msra.mxu0 %v3212
    %4188 = vmatpush.msra.mxu0 %v3208
    %4189 = vmatpush.msra.mxu0 %v3204
    %4190 = vmatpush.msra.mxu0 %v3200
    %4191 = vmatpush.msra.mxu0 %v3196
    %4192 = vmatpush.msra.mxu0 %v3192
    %4193 = vmatmul.f32.gmra.mxu0 %v4155
    %v4194 = vpop.f32.mrf.mxu0
    %v4195 = vadd.f32 0.0, %v4194
    %4196 = vdwg.mxu0
    %4197 = vmatpush.msra.mxu0 %v3253
    %4198 = vmatpush.msra.mxu0 %v3249
    %4199 = vmatpush.msra.mxu0 %v3245
    %4200 = vmatpush.msra.mxu0 %v3241
    %4201 = vmatpush.msra.mxu0 %v3237
    %4202 = vmatpush.msra.mxu0 %v3233
    %4203 = vmatpush.msra.mxu0 %v3229
    %4204 = vmatpush.msra.mxu0 %v3225
    %4205 = vmatpush.msra.mxu0 %v3221
    %4206 = vmatpush.msra.mxu0 %v3217
    %4207 = vmatpush.msra.mxu0 %v3213
    %4208 = vmatpush.msra.mxu0 %v3209
    %4209 = vmatpush.msra.mxu0 %v3205
    %4210 = vmatpush.msra.mxu0 %v3201
    %4211 = vmatpush.msra.mxu0 %v3197
    %4212 = vmatpush.msra.mxu0 %v3193
    %4213 = vmatmul.f32.gmra.mxu0 %v4155
    %v4214 = vpop.f32.mrf.mxu0
    %v4215 = vadd.f32 0.0, %v4214
    %4216 = vdwg.mxu0
    %4217 = vmatpush.msra.mxu0 %v3254
    %4218 = vmatpush.msra.mxu0 %v3250
    %4219 = vmatpush.msra.mxu0 %v3246
    %4220 = vmatpush.msra.mxu0 %v3242
    %4221 = vmatpush.msra.mxu0 %v3238
    %4222 = vmatpush.msra.mxu0 %v3234
    %4223 = vmatpush.msra.mxu0 %v3230
    %4224 = vmatpush.msra.mxu0 %v3226
    %4225 = vmatpush.msra.mxu0 %v3222
    %4226 = vmatpush.msra.mxu0 %v3218
    %4227 = vmatpush.msra.mxu0 %v3214
    %4228 = vmatpush.msra.mxu0 %v3210
    %4229 = vmatpush.msra.mxu0 %v3206
    %4230 = vmatpush.msra.mxu0 %v3202
    %4231 = vmatpush.msra.mxu0 %v3198
    %4232 = vmatpush.msra.mxu0 %v3194
    %4233 = vmatmul.f32.gmra.mxu0 %v4155
    %v4234 = vpop.f32.mrf.mxu0
    %v4235 = vadd.f32 0.0, %v4234
    %4236 = vdwg.mxu0
    %v4241 = vrot.slane %v4175, 3
    %v4242 = vrot.slane %v4195, 3
    %v4243 = vrot.slane %v4215, 3
    %v4244 = vrot.slane %v4235, 3
    %v4249 = vadd.f32 %v3284, %v4241
    %v4250 = vadd.f32 %v3304, %v4242
    %v4251 = vadd.f32 %v3324, %v4243
    %v4252 = vadd.f32 %v3344, %v4244
    %v4253 = vxor.u32 %v4249, 2147483648
    %v4254 = vxor.u32 %v4250, 2147483648
    %v4255 = vxor.u32 %v4251, 2147483648
    %v4256 = vmul.f32 %v4253, 1.442695
    %v4257 = vpow.pop %v4256
    %v4258 = vmul.f32 %v4254, 1.442695
    %v4259 = vpow.pop %v4258
    %v4260 = vmul.f32 %v4255, 1.442695
    %v4261 = vpow.pop %v4260
    %v4262 = vadd.f32 %v4257, 1.0
    %v4263 = vadd.f32 %v4259, 1.0
    %v4264 = vadd.f32 %v4261, 1.0
    %v4265 = vrcp.pop %v4262
    %v4266 = vmul.f32 %v4262, %v4265
    %v4267 = vsub.f32 1.0, %v4266
    %v4268 = vmul.f32 %v4265, %v4267
    %v4269 = vadd.f32 %v4265, %v4268
    %vm4270 = vweird.f32 %v4262
    %vm4271 = vweird.f32 %v4265
    %vm4272 = vmor %vm4270, %vm4271
    %v4273 = vsel %vm4272, %v4265, %v4269
    %v4274 = vand.u32 2147483647, %v4262
    %vm4275 = vcmp.eq.f32.partialorder %v4274, 8.507059e+37
    %v4276 = vand.u32 %v4262, 2147483648
    %v4277 = vor.u32 1.1754944e-38, %v4276
    %v4278 = vsel %vm4275, %v4277, %v4273
    %v4279 = vmul.f32 1.0, %v4278
    %v4280 = vrcp.pop %v4263
    %v4281 = vmul.f32 %v4263, %v4280
    %v4282 = vsub.f32 1.0, %v4281
    %v4283 = vmul.f32 %v4280, %v4282
    %v4284 = vadd.f32 %v4280, %v4283
    %vm4285 = vweird.f32 %v4263
    %vm4286 = vweird.f32 %v4280
    %vm4287 = vmor %vm4285, %vm4286
    %v4288 = vsel %vm4287, %v4280, %v4284
    %v4289 = vand.u32 2147483647, %v4263
    %vm4290 = vcmp.eq.f32.partialorder %v4289, 8.507059e+37
    %v4291 = vand.u32 %v4263, 2147483648
    %v4292 = vor.u32 1.1754944e-38, %v4291
    %v4293 = vsel %vm4290, %v4292, %v4288
    %v4294 = vmul.f32 1.0, %v4293
    %v4295 = vrcp.pop %v4264
    %v4296 = vmul.f32 %v4264, %v4295
    %v4297 = vsub.f32 1.0, %v4296
    %v4298 = vmul.f32 %v4295, %v4297
    %v4299 = vadd.f32 %v4295, %v4298
    %vm4300 = vweird.f32 %v4264
    %vm4301 = vweird.f32 %v4295
    %vm4302 = vmor %vm4300, %vm4301
    %v4303 = vsel %vm4302, %v4295, %v4299
    %v4304 = vand.u32 2147483647, %v4264
    %vm4305 = vcmp.eq.f32.partialorder %v4304, 8.507059e+37
    %v4306 = vand.u32 %v4264, 2147483648
    %v4307 = vor.u32 1.1754944e-38, %v4306
    %v4308 = vsel %vm4305, %v4307, %v4303
    %v4309 = vmul.f32 1.0, %v4308
    %v4310 = vtanh.pop %v4252
    %v4312 = vrot.slane %v4151, 7
    %v4314 = vmul.f32 %v4294, %v4312
    %v4315 = vmul.f32 %v4279, %v4310
    %v4316 = vadd.f32 %v4314, %v4315
    %v4317 = vtanh.pop %v4316
    %v4318 = vmul.f32 %v4309, %v4317
    %v4320 = vrot.slane %v4318, 5
    %4322 = vmatpush.msra.mxu0 %v3251
    %4323 = vmatpush.msra.mxu0 %v3247
    %4324 = vmatpush.msra.mxu0 %v3243
    %4325 = vmatpush.msra.mxu0 %v3239
    %4326 = vmatpush.msra.mxu0 %v3235
    %4327 = vmatpush.msra.mxu0 %v3231
    %4328 = vmatpush.msra.mxu0 %v3227
    %4329 = vmatpush.msra.mxu0 %v3223
    %4330 = vmatpush.msra.mxu0 %v3219
    %4331 = vmatpush.msra.mxu0 %v3215
    %4332 = vmatpush.msra.mxu0 %v3211
    %4333 = vmatpush.msra.mxu0 %v3207
    %4334 = vmatpush.msra.mxu0 %v3203
    %4335 = vmatpush.msra.mxu0 %v3199
    %4336 = vmatpush.msra.mxu0 %v3195
    %4337 = vmatpush.msra.mxu0 %v3191
    %4338 = vmatmul.f32.gmra.mxu0 %v4320
    %v4339 = vpop.f32.mrf.mxu0
    %v4340 = vadd.f32 0.0, %v4339
    %4341 = vdwg.mxu0
    %4342 = vmatpush.msra.mxu0 %v3252
    %4343 = vmatpush.msra.mxu0 %v3248
    %4344 = vmatpush.msra.mxu0 %v3244
    %4345 = vmatpush.msra.mxu0 %v3240
    %4346 = vmatpush.msra.mxu0 %v3236
    %4347 = vmatpush.msra.mxu0 %v3232
    %4348 = vmatpush.msra.mxu0 %v3228
    %4349 = vmatpush.msra.mxu0 %v3224
    %4350 = vmatpush.msra.mxu0 %v3220
    %4351 = vmatpush.msra.mxu0 %v3216
    %4352 = vmatpush.msra.mxu0 %v3212
    %4353 = vmatpush.msra.mxu0 %v3208
    %4354 = vmatpush.msra.mxu0 %v3204
    %4355 = vmatpush.msra.mxu0 %v3200
    %4356 = vmatpush.msra.mxu0 %v3196
    %4357 = vmatpush.msra.mxu0 %v3192
    %4358 = vmatmul.f32.gmra.mxu0 %v4320
    %v4359 = vpop.f32.mrf.mxu0
    %v4360 = vadd.f32 0.0, %v4359
    %4361 = vdwg.mxu0
    %4362 = vmatpush.msra.mxu0 %v3253
    %4363 = vmatpush.msra.mxu0 %v3249
    %4364 = vmatpush.msra.mxu0 %v3245
    %4365 = vmatpush.msra.mxu0 %v3241
    %4366 = vmatpush.msra.mxu0 %v3237
    %4367 = vmatpush.msra.mxu0 %v3233
    %4368 = vmatpush.msra.mxu0 %v3229
    %4369 = vmatpush.msra.mxu0 %v3225
    %4370 = vmatpush.msra.mxu0 %v3221
    %4371 = vmatpush.msra.mxu0 %v3217
    %4372 = vmatpush.msra.mxu0 %v3213
    %4373 = vmatpush.msra.mxu0 %v3209
    %4374 = vmatpush.msra.mxu0 %v3205
    %4375 = vmatpush.msra.mxu0 %v3201
    %4376 = vmatpush.msra.mxu0 %v3197
    %4377 = vmatpush.msra.mxu0 %v3193
    %4378 = vmatmul.f32.gmra.mxu0 %v4320
    %v4379 = vpop.f32.mrf.mxu0
    %v4380 = vadd.f32 0.0, %v4379
    %4381 = vdwg.mxu0
    %4382 = vmatpush.msra.mxu0 %v3254
    %4383 = vmatpush.msra.mxu0 %v3250
    %4384 = vmatpush.msra.mxu0 %v3246
    %4385 = vmatpush.msra.mxu0 %v3242
    %4386 = vmatpush.msra.mxu0 %v3238
    %4387 = vmatpush.msra.mxu0 %v3234
    %4388 = vmatpush.msra.mxu0 %v3230
    %4389 = vmatpush.msra.mxu0 %v3226
    %4390 = vmatpush.msra.mxu0 %v3222
    %4391 = vmatpush.msra.mxu0 %v3218
    %4392 = vmatpush.msra.mxu0 %v3214
    %4393 = vmatpush.msra.mxu0 %v3210
    %4394 = vmatpush.msra.mxu0 %v3206
    %4395 = vmatpush.msra.mxu0 %v3202
    %4396 = vmatpush.msra.mxu0 %v3198
    %4397 = vmatpush.msra.mxu0 %v3194
    %4398 = vmatmul.f32.gmra.mxu0 %v4320
    %v4399 = vpop.f32.mrf.mxu0
    %v4400 = vadd.f32 0.0, %v4399
    %4401 = vdwg.mxu0
    %v4406 = vrot.slane %v4340, 2
    %v4407 = vrot.slane %v4360, 2
    %v4408 = vrot.slane %v4380, 2
    %v4409 = vrot.slane %v4400, 2
    %v4414 = vadd.f32 %v3284, %v4406
    %v4415 = vadd.f32 %v3304, %v4407
    %v4416 = vadd.f32 %v3324, %v4408
    %v4417 = vadd.f32 %v3344, %v4409
    %v4418 = vxor.u32 %v4414, 2147483648
    %v4419 = vxor.u32 %v4415, 2147483648
    %v4420 = vxor.u32 %v4416, 2147483648
    %v4421 = vmul.f32 %v4418, 1.442695
    %v4422 = vpow.pop %v4421
    %v4423 = vmul.f32 %v4419, 1.442695
    %v4424 = vpow.pop %v4423
    %v4425 = vmul.f32 %v4420, 1.442695
    %v4426 = vpow.pop %v4425
    %v4427 = vadd.f32 %v4422, 1.0
    %v4428 = vadd.f32 %v4424, 1.0
    %v4429 = vadd.f32 %v4426, 1.0
    %v4430 = vrcp.pop %v4427
    %v4431 = vmul.f32 %v4427, %v4430
    %v4432 = vsub.f32 1.0, %v4431
    %v4433 = vmul.f32 %v4430, %v4432
    %v4434 = vadd.f32 %v4430, %v4433
    %vm4435 = vweird.f32 %v4427
    %vm4436 = vweird.f32 %v4430
    %vm4437 = vmor %vm4435, %vm4436
    %v4438 = vsel %vm4437, %v4430, %v4434
    %v4439 = vand.u32 2147483647, %v4427
    %vm4440 = vcmp.eq.f32.partialorder %v4439, 8.507059e+37
    %v4441 = vand.u32 %v4427, 2147483648
    %v4442 = vor.u32 1.1754944e-38, %v4441
    %v4443 = vsel %vm4440, %v4442, %v4438
    %v4444 = vmul.f32 1.0, %v4443
    %v4445 = vrcp.pop %v4428
    %v4446 = vmul.f32 %v4428, %v4445
    %v4447 = vsub.f32 1.0, %v4446
    %v4448 = vmul.f32 %v4445, %v4447
    %v4449 = vadd.f32 %v4445, %v4448
    %vm4450 = vweird.f32 %v4428
    %vm4451 = vweird.f32 %v4445
    %vm4452 = vmor %vm4450, %vm4451
    %v4453 = vsel %vm4452, %v4445, %v4449
    %v4454 = vand.u32 2147483647, %v4428
    %vm4455 = vcmp.eq.f32.partialorder %v4454, 8.507059e+37
    %v4456 = vand.u32 %v4428, 2147483648
    %v4457 = vor.u32 1.1754944e-38, %v4456
    %v4458 = vsel %vm4455, %v4457, %v4453
    %v4459 = vmul.f32 1.0, %v4458
    %v4460 = vrcp.pop %v4429
    %v4461 = vmul.f32 %v4429, %v4460
    %v4462 = vsub.f32 1.0, %v4461
    %v4463 = vmul.f32 %v4460, %v4462
    %v4464 = vadd.f32 %v4460, %v4463
    %vm4465 = vweird.f32 %v4429
    %vm4466 = vweird.f32 %v4460
    %vm4467 = vmor %vm4465, %vm4466
    %v4468 = vsel %vm4467, %v4460, %v4464
    %v4469 = vand.u32 2147483647, %v4429
    %vm4470 = vcmp.eq.f32.partialorder %v4469, 8.507059e+37
    %v4471 = vand.u32 %v4429, 2147483648
    %v4472 = vor.u32 1.1754944e-38, %v4471
    %v4473 = vsel %vm4470, %v4472, %v4468
    %v4474 = vmul.f32 1.0, %v4473
    %v4475 = vtanh.pop %v4417
    %v4477 = vrot.slane %v4316, 7
    %v4479 = vmul.f32 %v4459, %v4477
    %v4480 = vmul.f32 %v4444, %v4475
    %v4481 = vadd.f32 %v4479, %v4480
    %v4482 = vtanh.pop %v4481
    %v4483 = vmul.f32 %v4474, %v4482
    %v4485 = vrot.slane %v4483, 6
    %4487 = vmatpush.msra.mxu0 %v3251
    %4488 = vmatpush.msra.mxu0 %v3247
    %4489 = vmatpush.msra.mxu0 %v3243
    %4490 = vmatpush.msra.mxu0 %v3239
    %4491 = vmatpush.msra.mxu0 %v3235
    %4492 = vmatpush.msra.mxu0 %v3231
    %4493 = vmatpush.msra.mxu0 %v3227
    %4494 = vmatpush.msra.mxu0 %v3223
    %4495 = vmatpush.msra.mxu0 %v3219
    %4496 = vmatpush.msra.mxu0 %v3215
    %4497 = vmatpush.msra.mxu0 %v3211
    %4498 = vmatpush.msra.mxu0 %v3207
    %4499 = vmatpush.msra.mxu0 %v3203
    %4500 = vmatpush.msra.mxu0 %v3199
    %4501 = vmatpush.msra.mxu0 %v3195
    %4502 = vmatpush.msra.mxu0 %v3191
    %4503 = vmatmul.f32.gmra.mxu0 %v4485
    %v4504 = vpop.f32.mrf.mxu0
    %v4505 = vadd.f32 0.0, %v4504
    %4506 = vdwg.mxu0
    %4507 = vmatpush.msra.mxu0 %v3252
    %4508 = vmatpush.msra.mxu0 %v3248
    %4509 = vmatpush.msra.mxu0 %v3244
    %4510 = vmatpush.msra.mxu0 %v3240
    %4511 = vmatpush.msra.mxu0 %v3236
    %4512 = vmatpush.msra.mxu0 %v3232
    %4513 = vmatpush.msra.mxu0 %v3228
    %4514 = vmatpush.msra.mxu0 %v3224
    %4515 = vmatpush.msra.mxu0 %v3220
    %4516 = vmatpush.msra.mxu0 %v3216
    %4517 = vmatpush.msra.mxu0 %v3212
    %4518 = vmatpush.msra.mxu0 %v3208
    %4519 = vmatpush.msra.mxu0 %v3204
    %4520 = vmatpush.msra.mxu0 %v3200
    %4521 = vmatpush.msra.mxu0 %v3196
    %4522 = vmatpush.msra.mxu0 %v3192
    %4523 = vmatmul.f32.gmra.mxu0 %v4485
    %v4524 = vpop.f32.mrf.mxu0
    %v4525 = vadd.f32 0.0, %v4524
    %4526 = vdwg.mxu0
    %4527 = vmatpush.msra.mxu0 %v3253
    %4528 = vmatpush.msra.mxu0 %v3249
    %4529 = vmatpush.msra.mxu0 %v3245
    %4530 = vmatpush.msra.mxu0 %v3241
    %4531 = vmatpush.msra.mxu0 %v3237
    %4532 = vmatpush.msra.mxu0 %v3233
    %4533 = vmatpush.msra.mxu0 %v3229
    %4534 = vmatpush.msra.mxu0 %v3225
    %4535 = vmatpush.msra.mxu0 %v3221
    %4536 = vmatpush.msra.mxu0 %v3217
    %4537 = vmatpush.msra.mxu0 %v3213
    %4538 = vmatpush.msra.mxu0 %v3209
    %4539 = vmatpush.msra.mxu0 %v3205
    %4540 = vmatpush.msra.mxu0 %v3201
    %4541 = vmatpush.msra.mxu0 %v3197
    %4542 = vmatpush.msra.mxu0 %v3193
    %4543 = vmatmul.f32.gmra.mxu0 %v4485
    %v4544 = vpop.f32.mrf.mxu0
    %v4545 = vadd.f32 0.0, %v4544
    %4546 = vdwg.mxu0
    %4547 = vmatpush.msra.mxu0 %v3254
    %4548 = vmatpush.msra.mxu0 %v3250
    %4549 = vmatpush.msra.mxu0 %v3246
    %4550 = vmatpush.msra.mxu0 %v3242
    %4551 = vmatpush.msra.mxu0 %v3238
    %4552 = vmatpush.msra.mxu0 %v3234
    %4553 = vmatpush.msra.mxu0 %v3230
    %4554 = vmatpush.msra.mxu0 %v3226
    %4555 = vmatpush.msra.mxu0 %v3222
    %4556 = vmatpush.msra.mxu0 %v3218
    %4557 = vmatpush.msra.mxu0 %v3214
    %4558 = vmatpush.msra.mxu0 %v3210
    %4559 = vmatpush.msra.mxu0 %v3206
    %4560 = vmatpush.msra.mxu0 %v3202
    %4561 = vmatpush.msra.mxu0 %v3198
    %4562 = vmatpush.msra.mxu0 %v3194
    %4563 = vmatmul.f32.gmra.mxu0 %v4485
    %v4564 = vpop.f32.mrf.mxu0
    %v4565 = vadd.f32 0.0, %v4564
    %4566 = vdwg.mxu0
    %v4571 = vrot.slane %v4505, 1
    %v4572 = vrot.slane %v4525, 1
    %v4573 = vrot.slane %v4545, 1
    %v4574 = vrot.slane %v4565, 1
    %v4579 = vadd.f32 %v3284, %v4571
    %v4580 = vadd.f32 %v3304, %v4572
    %v4581 = vadd.f32 %v3324, %v4573
    %v4582 = vadd.f32 %v3344, %v4574
    %v4583 = vxor.u32 %v4579, 2147483648
    %v4584 = vxor.u32 %v4580, 2147483648
    %v4585 = vxor.u32 %v4581, 2147483648
    %v4586 = vmul.f32 %v4583, 1.442695
    %v4587 = vpow.pop %v4586
    %v4588 = vmul.f32 %v4584, 1.442695
    %v4589 = vpow.pop %v4588
    %v4590 = vmul.f32 %v4585, 1.442695
    %v4591 = vpow.pop %v4590
    %v4592 = vadd.f32 %v4587, 1.0
    %v4593 = vadd.f32 %v4589, 1.0
    %v4594 = vadd.f32 %v4591, 1.0
    %v4595 = vrcp.pop %v4592
    %v4596 = vmul.f32 %v4592, %v4595
    %v4597 = vsub.f32 1.0, %v4596
    %v4598 = vmul.f32 %v4595, %v4597
    %v4599 = vadd.f32 %v4595, %v4598
    %vm4600 = vweird.f32 %v4592
    %vm4601 = vweird.f32 %v4595
    %vm4602 = vmor %vm4600, %vm4601
    %v4603 = vsel %vm4602, %v4595, %v4599
    %v4604 = vand.u32 2147483647, %v4592
    %vm4605 = vcmp.eq.f32.partialorder %v4604, 8.507059e+37
    %v4606 = vand.u32 %v4592, 2147483648
    %v4607 = vor.u32 1.1754944e-38, %v4606
    %v4608 = vsel %vm4605, %v4607, %v4603
    %v4609 = vmul.f32 1.0, %v4608
    %v4610 = vrcp.pop %v4593
    %v4611 = vmul.f32 %v4593, %v4610
    %v4612 = vsub.f32 1.0, %v4611
    %v4613 = vmul.f32 %v4610, %v4612
    %v4614 = vadd.f32 %v4610, %v4613
    %vm4615 = vweird.f32 %v4593
    %vm4616 = vweird.f32 %v4610
    %vm4617 = vmor %vm4615, %vm4616
    %v4618 = vsel %vm4617, %v4610, %v4614
    %v4619 = vand.u32 2147483647, %v4593
    %vm4620 = vcmp.eq.f32.partialorder %v4619, 8.507059e+37
    %v4621 = vand.u32 %v4593, 2147483648
    %v4622 = vor.u32 1.1754944e-38, %v4621
    %v4623 = vsel %vm4620, %v4622, %v4618
    %v4624 = vmul.f32 1.0, %v4623
    %v4625 = vrcp.pop %v4594
    %v4626 = vmul.f32 %v4594, %v4625
    %v4627 = vsub.f32 1.0, %v4626
    %v4628 = vmul.f32 %v4625, %v4627
    %v4629 = vadd.f32 %v4625, %v4628
    %vm4630 = vweird.f32 %v4594
    %vm4631 = vweird.f32 %v4625
    %vm4632 = vmor %vm4630, %vm4631
    %v4633 = vsel %vm4632, %v4625, %v4629
    %v4634 = vand.u32 2147483647, %v4594
    %vm4635 = vcmp.eq.f32.partialorder %v4634, 8.507059e+37
    %v4636 = vand.u32 %v4594, 2147483648
    %v4637 = vor.u32 1.1754944e-38, %v4636
    %v4638 = vsel %vm4635, %v4637, %v4633
    %v4639 = vmul.f32 1.0, %v4638
    %v4640 = vtanh.pop %v4582
    %v4642 = vrot.slane %v4481, 7
    %v4644 = vmul.f32 %v4624, %v4642
    %v4645 = vmul.f32 %v4609, %v4640
    %v4646 = vadd.f32 %v4644, %v4645
    %v4647 = vtanh.pop %v4646
    %v4648 = vmul.f32 %v4639, %v4647
    %v4649 = vsel %vm1580, %v3496, %v3658
    %v4650 = vsel %vm1582, %v4649, %v3823
    %v4651 = vsel %vm1584, %v4650, %v3988
    %v4652 = vsel %vm1586, %v4651, %v4153
    %v4653 = vsel %vm1588, %v4652, %v4318
    %v4654 = vsel %vm1590, %v4653, %v4483
    %v4655 = vsel %vm1592, %v4654, %v4648
    %4656 = vst [vmem:[#allocation7] sm:$0xff] %v4655
    %4657 = vst [vmem:[#allocation8 - $0x7] sm:$0x80] %v1579
    %4658 = vst [vmem:[#allocation8 - $0x6] sm:$0x80] %v3117
    %4659 = vst [vmem:[#allocation8 - $0x5] sm:$0x80] %v4648
    %4660 = vst [vmem:[#allocation10 - $0x7] sm:$0x80] %v1577
    %4661 = vst [vmem:[#allocation10 - $0x6] sm:$0x80] %v3115
    %4662 = vst [vmem:[#allocation10 - $0x5] sm:$0x80] %v4646
    // Predicated region
    $region34: #{lstm_forward.1} parent=1 // pred_check
      _
    $region35: #{lstm_forward.1} parent=1 // pred_check_branch
      %4664 = sbr.rel (0) target = $region37
    $region36: #{lstm_forward.1} parent=1 // pred_region
      %4666 = vsyncadd [#allocation4], 0
      %s4668 = sshll.u32 [#allocation7], 4
      %s4669 = int_to_ptr.vmem [resolvable:$true] %s4668
      %s4670 = sshll.u32 %s6, 4
      %s4671 = int_to_ptr.hbm [resolvable:$true] %s4670
      %4673 = dma.vmem_to_hbm [thread:$0]  %s4669, 128, %s4671, [#allocation4]
    $region37: #{lstm_forward.1} parent=1 // pred_fallthru
      _
    // Predicated region
    $region38: #{lstm_forward.1} parent=1 // pred_check
      _
    $region39: #{lstm_forward.1} parent=1 // pred_check_branch
      %4675 = sbr.rel (0) target = $region41
    $region40: #{lstm_forward.1} parent=1 // pred_region
      %4677 = vsyncadd [#allocation9], 0
      %s4678 = sshll.u32 [#allocation8], 4
      %s4679 = int_to_ptr.vmem [resolvable:$true] %s4678
      %s4680 = sshll.u32 %s7, 4
      %s4681 = int_to_ptr.hbm [resolvable:$true] %s4680
      %4686 = dma.vmem_to_hbm [thread:$0]  %s4679, 48, %s4681, [#allocation9], 16, 16, 1
    $region41: #{lstm_forward.1} parent=1 // pred_fallthru
      _
    // Predicated region
    $region42: #{lstm_forward.1} parent=1 // pred_check
      _
    $region43: #{lstm_forward.1} parent=1 // pred_check_branch
      %4688 = sbr.rel (0) target = $region45
    $region44: #{lstm_forward.1} parent=1 // pred_region
      %4690 = vsyncadd [#allocation9], 0
      %s4691 = sshll.u32 [#allocation10], 4
      %s4692 = int_to_ptr.vmem [resolvable:$true] %s4691
      %s4693 = sshll.u32 %s8, 4
      %s4694 = int_to_ptr.hbm [resolvable:$true] %s4693
      %4699 = dma.vmem_to_hbm [thread:$0]  %s4692, 48, %s4694, [#allocation9], 16, 16, 1
    $region45: #{lstm_forward.1} parent=1 // pred_fallthru
      _
    // Predicated region
    $region46: #{lstm_forward.1} parent=1 // pred_check
      _
    $region47: #{lstm_forward.1} parent=1 // pred_check_branch
      %4701 = sbr.rel (0) target = $region49
    $region48: #{lstm_forward.1} parent=1 // pred_region
      %4703 = dma.done [#allocation4], 128
    $region49: #{lstm_forward.1} parent=1 // pred_fallthru
      _
    // Predicated region
    $region50: #{lstm_forward.1} parent=1 // pred_check
      _
    $region51: #{lstm_forward.1} parent=1 // pred_check_branch
      %4705 = sbr.rel (0) target = $region53
    $region52: #{lstm_forward.1} parent=1 // pred_region
      %4707 = dma.done [#allocation9], 48
    $region53: #{lstm_forward.1} parent=1 // pred_fallthru
      _
    // Predicated region
    $region54: #{lstm_forward.1} parent=1 // pred_check
      _
    $region55: #{lstm_forward.1} parent=1 // pred_check_branch
      %4709 = sbr.rel (0) target = $region57
    $region56: #{lstm_forward.1} parent=1 // pred_region
      %4711 = dma.done [#allocation9], 48
    $region57: #{lstm_forward.1} parent=1 // pred_fallthru
      _
    %4712 = vsyncpa [#allocation3], 1
    %4713 = vsyncpa [#allocation6], 1
    %4714 = vsyncpa [#allocation4], 1
    %4715 = vsyncpa [#allocation9], 1

</llo_original>
